<compile_context>
chip_gen: v7x
topology: tpu7x:2x2x1
jax: 0.10.0
libtpu: 0.0.40
codegen_flags: <defaults>
</compile_context>

<pallas_src>
import functools
import math

import jax
import jax.numpy as jnp
from jax.experimental import pallas as pl
from jax.experimental.pallas import tpu as pltpu

# ----------------------------- model config ---------------------------------
VOCAB = 50
D_MODEL = 32
FF_D = 64
MAX_SEQ_LEN = 16
NUM_HEADS = 4
NUM_LAYERS = 2
LN_EPS = 1e-5  # PyTorch nn.LayerNorm default


# ----------------------------- fused Pallas kernel --------------------------
def _add_layernorm(x, y, gamma, beta, eps):
    """LayerNorm(x + y) over last dim with affine params (all f32, VPU)."""
    z = x + y
    mu = jnp.mean(z, axis=-1, keepdims=True)
    var = jnp.mean((z - mu) ** 2, axis=-1, keepdims=True)
    return (z - mu) * jax.lax.rsqrt(var + eps) * gamma + beta


def _encoder_kernel(ids_ref, embed_ref, pe_ref,
                    wqkv_ref, bqkv_ref, wo_ref, bo_ref,
                    w1_ref, b1_ref, w2_ref, b2_ref,
                    g1_ref, be1_ref, g2_ref, be2_ref,
                    enc_ref, attn_ref,
                    *, H, num_layers, eps):
    """One grid step == one batch element.  Everything stays in VMEM/vregs."""
    S = ids_ref.shape[0]
    vocab, D = embed_ref.shape

    # ---- Embedding gather as a one-hot matmul (MXU, in-VMEM). --------------
    # TODO(synk): out-of-range ids map to a zero row (nn.Embedding would raise);
    #             ids here are always in range.
    ids = ids_ref[...]                                              # (S, 1) int32
    vocab_iota = jax.lax.broadcasted_iota(jnp.int32, (S, vocab), 1)
    onehot = jnp.where(vocab_iota == ids, 1.0, 0.0).astype(jnp.float32)
    x = jnp.dot(onehot, embed_ref[...], preferred_element_type=jnp.float32)

    # ---- Positional encoding add (dropout = identity, eval mode). ----------
    x = x + pe_ref[...]                                             # (S, D)

    # ---- Encoder layers, statically unrolled; everything stays in VMEM. ----
    for l in range(num_layers):
        # Head-major fused Q|K|V projection: ONE batched matmul over 3*H heads.
        # (wqkv pre-arranged as (3H, D, Dh), q-part pre-scaled by 1/sqrt(Dh)
        #  in the wrapper -> no lane-subset head slices in the kernel.)
        xb = jnp.broadcast_to(x[None], (3 * H,) + x.shape)          # (3H, S, D)
        qkv = jnp.einsum('jse,jed->jsd', xb, wqkv_ref[l],
                         preferred_element_type=jnp.float32) + bqkv_ref[l]  # (3H,S,Dh)
        q = qkv[0 * H:1 * H]                                        # (H, S, Dh)
        k = qkv[1 * H:2 * H]
        v = qkv[2 * H:3 * H]

        # Scores / softmax / context: single batched chains over all heads.
        s = jnp.einsum('hqd,hkd->hqk', q, k,
                       preferred_element_type=jnp.float32)          # (H, S, S)
        m = jnp.max(s, axis=-1, keepdims=True)
        e = jnp.exp(s - m)
        p = e / jnp.sum(e, axis=-1, keepdims=True)                  # exact softmax

        if l == num_layers - 1:
            attn_ref[0] = p                                         # one store, last layer only

        ctx = jnp.einsum('hqk,hkd->hqd', p, v,
                         preferred_element_type=jnp.float32)        # (H, S, Dh)

        # Output projection: one batched matmul + static reduce over heads.
        #   concat_h(ctx_h) @ Wo == sum_h ctx_h @ Wo[h*Dh:(h+1)*Dh, :]
        mha_h = jnp.einsum('hqd,hdo->hqo', ctx, wo_ref[l],
                           preferred_element_type=jnp.float32)      # (H, S, D)
        mha = mha_h[0]
        for h in range(1, H):
            mha = mha + mha_h[h]
        mha = mha + bo_ref[l]                                       # (S, D)

        # Add & LayerNorm 1.
        x = _add_layernorm(x, mha, g1_ref[l], be1_ref[l], eps)

        # Feed-forward: Linear -> ReLU -> Linear.
        h1 = jnp.dot(x, w1_ref[l],
                     preferred_element_type=jnp.float32) + b1_ref[l]
        h1 = jnp.maximum(h1, 0.0)
        ff = jnp.dot(h1, w2_ref[l],
                     preferred_element_type=jnp.float32) + b2_ref[l]

        # Add & LayerNorm 2.
        x = _add_layernorm(x, ff, g2_ref[l], be2_ref[l], eps)

    enc_ref[...] = x


# ----------------------------- parameter setup ------------------------------
def sinusoidal_pe(max_len, d_model):
    pos = jnp.arange(max_len, dtype=jnp.float32)[:, None]
    i = jnp.arange(0, d_model, 2, dtype=jnp.float32)[None, :]
    div = jnp.exp(-math.log(10000.0) * i / d_model)
    pe = jnp.zeros((max_len, d_model), dtype=jnp.float32)
    pe = pe.at[:, 0::2].set(jnp.sin(pos * div))
    pe = pe.at[:, 1::2].set(jnp.cos(pos * div))
    return pe  # (max_len, d_model)


def init_params(key):
    keys = jax.random.split(key, 2 + NUM_LAYERS)
    params = {}
    params["embed"] = 0.02 * jax.random.normal(keys[0], (VOCAB, D_MODEL), jnp.float32)
    params["pe"] = sinusoidal_pe(MAX_SEQ_LEN, D_MODEL)
    layers = []
    for l in range(NUM_LAYERS):
        lk = jax.random.split(keys[2 + l], 6)

        def w(k, shape):
            return 0.02 * jax.random.normal(k, shape, jnp.float32)

        layers.append(dict(
            wq=w(lk[0], (D_MODEL, D_MODEL)), bq=jnp.zeros((1, D_MODEL), jnp.float32),
            wk=w(lk[1], (D_MODEL, D_MODEL)), bk=jnp.zeros((1, D_MODEL), jnp.float32),
            wv=w(lk[2], (D_MODEL, D_MODEL)), bv=jnp.zeros((1, D_MODEL), jnp.float32),
            wo=w(lk[3], (D_MODEL, D_MODEL)), bo=jnp.zeros((1, D_MODEL), jnp.float32),
            w1=w(lk[4], (D_MODEL, FF_D)),    bf1=jnp.zeros((1, FF_D), jnp.float32),
            w2=w(lk[5], (FF_D, D_MODEL)),    bf2=jnp.zeros((1, D_MODEL), jnp.float32),
            g1=jnp.ones((1, D_MODEL), jnp.float32), be1=jnp.zeros((1, D_MODEL), jnp.float32),
            g2=jnp.ones((1, D_MODEL), jnp.float32), be2=jnp.zeros((1, D_MODEL), jnp.float32),
        ))
    params["layers"] = layers
    return params


# ----------------------------- forward (single pallas_call, grid over B) ----
def _stack(layers, name):
    return jnp.stack([l[name] for l in layers], axis=0)


def _encoder_forward_impl(params, token_ids):
    """Matches Encoder.forward: returns (encoding, last-layer attention)."""
    B, S = token_ids.shape
    D, H, L, FF = D_MODEL, NUM_HEADS, NUM_LAYERS, FF_D
    Dh = D // H
    layers = params["layers"]
    scale = 1.0 / math.sqrt(Dh)

    ids = token_ids.reshape(B * S, 1).astype(jnp.int32)
    pe = params["pe"][:S]                                           # (S, D)

    # Pre-arrange projection weights head-major (done once, in plain XLA).
    def heads_w(wmat):   # (D, D) -> (H, D, Dh)
        return wmat.reshape(D, H, Dh).transpose(1, 0, 2)

    def heads_b(bvec):   # (1, D) -> (H, 1, Dh)
        return bvec.reshape(H, Dh)[:, None, :]

    wqkv = jnp.stack([jnp.concatenate([heads_w(p["wq"] * scale),   # scale folded into q
                                       heads_w(p["wk"]),
                                       heads_w(p["wv"])], axis=0)
                      for p in layers], axis=0)                     # (L, 3H, D, Dh)
    bqkv = jnp.stack([jnp.concatenate([heads_b(p["bq"] * scale),
                                       heads_b(p["bk"]),
                                       heads_b(p["bv"])], axis=0)
                      for p in layers], axis=0)                     # (L, 3H, 1, Dh)
    wo = jnp.stack([p["wo"].reshape(H, Dh, D) for p in layers], axis=0)  # (L, H, Dh, D)

    kernel = functools.partial(_encoder_kernel, H=H, num_layers=L, eps=LN_EPS)

    const2 = lambda b: (0, 0)
    const3 = lambda b: (0, 0, 0)
    const4 = lambda b: (0, 0, 0, 0)

    enc, attn = pl.pallas_call(
        kernel,
        grid=(B,),
        in_specs=[
            pl.BlockSpec((S, 1), lambda b: (b, 0)),                 # token ids (per batch)
            pl.BlockSpec((VOCAB, D), const2),                       # embedding table
            pl.BlockSpec((S, D), const2),                           # positional encoding
            pl.BlockSpec((L, 3 * H, D, Dh), const4),                # head-major Wq|Wk|Wv
            pl.BlockSpec((L, 3 * H, 1, Dh), const4),                # head-major bq|bk|bv
            pl.BlockSpec((L, H, Dh, D), const4),                    # head-major Wo
            pl.BlockSpec((L, 1, D), const3),                        # bo
            pl.BlockSpec((L, D, FF), const3),                       # w1
            pl.BlockSpec((L, 1, FF), const3),                       # b1
            pl.BlockSpec((L, FF, D), const3),                       # w2
            pl.BlockSpec((L, 1, D), const3),                        # b2
            pl.BlockSpec((L, 1, D), const3),                        # ln1 gamma
            pl.BlockSpec((L, 1, D), const3),                        # ln1 beta
            pl.BlockSpec((L, 1, D), const3),                        # ln2 gamma
            pl.BlockSpec((L, 1, D), const3),                        # ln2 beta
        ],
        out_specs=(
            pl.BlockSpec((S, D), lambda b: (b, 0)),                 # encoding rows
            pl.BlockSpec((1, H, S, S), lambda b: (b, 0, 0, 0)),     # last-layer attention
        ),
        out_shape=(jax.ShapeDtypeStruct((B * S, D), jnp.float32),
                   jax.ShapeDtypeStruct((B, H, S, S), jnp.float32)),
        compiler_params=pltpu.CompilerParams(
            dimension_semantics=("parallel",)),                     # 2nd TensorCore on v7x
    )(ids, params["embed"], pe, wqkv, bqkv, wo,
      _stack(layers, "bo"),
      _stack(layers, "w1"), _stack(layers, "bf1"),
      _stack(layers, "w2"), _stack(layers, "bf2"),
      _stack(layers, "g1"), _stack(layers, "be1"),
      _stack(layers, "g2"), _stack(layers, "be2"))

    return enc.reshape(B, S, D), attn


encoder_forward = jax.jit(_encoder_forward_impl)


# ----------------------------- pure-JAX reference ---------------------------
def reference_forward(params, token_ids):
    B, S = token_ids.shape
    D, H = D_MODEL, NUM_HEADS
    Dh = D // H
    x = jnp.take(params["embed"], token_ids, axis=0) + params["pe"][:S][None]
    attn = None
    for p in params["layers"]:
        x2 = x.reshape(B * S, D)
        q = (x2 @ p["wq"] + p["bq"]).reshape(B, S, H, Dh).transpose(0, 2, 1, 3)
        k = (x2 @ p["wk"] + p["bk"]).reshape(B, S, H, Dh).transpose(0, 2, 1, 3)
        v = (x2 @ p["wv"] + p["bv"]).reshape(B, S, H, Dh).transpose(0, 2, 1, 3)
        s = jnp.einsum("bhqd,bhkd->bhqk", q, k) / math.sqrt(Dh)
        attn = jax.nn.softmax(s, axis=-1)
        ctx = jnp.einsum("bhqk,bhkd->bhqd", attn, v).transpose(0, 2, 1, 3).reshape(B * S, D)
        mha = ctx @ p["wo"] + p["bo"]

        def ln(z, g, b):
            mu = z.mean(-1, keepdims=True)
            var = ((z - mu) ** 2).mean(-1, keepdims=True)
            return (z - mu) / jnp.sqrt(var + LN_EPS) * g + b

        x1 = ln(x2 + mha, p["g1"], p["be1"])
        ff = jnp.maximum(x1 @ p["w1"] + p["bf1"], 0.0) @ p["w2"] + p["bf2"]
        x = ln(x1 + ff, p["g2"], p["be2"]).reshape(B, S, D)
    return x, attn


# ----------------------------- main ------------------------------------------
if __name__ == "__main__":
    key = jax.random.PRNGKey(0)
    pkey, dkey = jax.random.split(key)
    params = init_params(pkey)

    B, S = 2, 8
    token_ids = jax.random.randint(dkey, (B, S), 0, VOCAB, dtype=jnp.int32)

    encoding, attn = encoder_forward(params, token_ids)
    jax.block_until_ready((encoding, attn))

    ref_enc, ref_attn = reference_forward(params, token_ids)

    assert encoding.shape == (B, S, D_MODEL)
    assert attn.shape == (B, NUM_HEADS, S, S)
    assert bool(jnp.all(jnp.isfinite(encoding))) and bool(jnp.all(jnp.isfinite(attn)))
    # Exact softmax now: rows sum to 1 tightly.
    assert bool(jnp.allclose(jnp.sum(attn, axis=-1), 1.0, atol=1e-4))
    # Match the pure-JAX f32 reference closely (no approx reciprocal anymore).
    assert bool(jnp.allclose(attn, ref_attn, atol=1e-4))
    assert bool(jnp.allclose(encoding, ref_enc, rtol=1e-3, atol=1e-3))

    print("KERNEL_OK")
</pallas_src>

<mosaic_0001>
module attributes {stable_mosaic.version = 11 : i64} {
  func.func @_encoder_kernel(%arg0: i32, %arg1: memref<8x1xi32, #tpu.memory_space<vmem>>, %arg2: memref<50x32xf32, #tpu.memory_space<vmem>>, %arg3: memref<8x32xf32, #tpu.memory_space<vmem>>, %arg4: memref<2x12x32x8xf32, #tpu.memory_space<vmem>>, %arg5: memref<2x12x1x8xf32, #tpu.memory_space<vmem>>, %arg6: memref<2x4x8x32xf32, #tpu.memory_space<vmem>>, %arg7: memref<2x1x32xf32, #tpu.memory_space<vmem>>, %arg8: memref<2x32x64xf32, #tpu.memory_space<vmem>>, %arg9: memref<2x1x64xf32, #tpu.memory_space<vmem>>, %arg10: memref<2x64x32xf32, #tpu.memory_space<vmem>>, %arg11: memref<2x1x32xf32, #tpu.memory_space<vmem>>, %arg12: memref<2x1x32xf32, #tpu.memory_space<vmem>>, %arg13: memref<2x1x32xf32, #tpu.memory_space<vmem>>, %arg14: memref<2x1x32xf32, #tpu.memory_space<vmem>>, %arg15: memref<2x1x32xf32, #tpu.memory_space<vmem>>, %arg16: memref<8x32xf32, #tpu.memory_space<vmem>>, %arg17: memref<1x4x8x8xf32, #tpu.memory_space<vmem>>) attributes {dimension_semantics = [#tpu.dimension_semantics<parallel>], iteration_bounds = array<i64: 2>, scalar_prefetch = 0 : i64, scratch_operands = 0 : i64, tpu.core_type = #tpu.core_type<tc>, window_params = [{transform_indices = @transform_0, window_bounds = array<i64: 8, 1>}, {pipeline_mode = #tpu.pipeline_mode<synchronous>, transform_indices = @transform_1, window_bounds = array<i64: 50, 32>}, {pipeline_mode = #tpu.pipeline_mode<synchronous>, transform_indices = @transform_2, window_bounds = array<i64: 8, 32>}, {pipeline_mode = #tpu.pipeline_mode<synchronous>, transform_indices = @transform_3, window_bounds = array<i64: 2, 12, 32, 8>}, {pipeline_mode = #tpu.pipeline_mode<synchronous>, transform_indices = @transform_4, window_bounds = array<i64: 2, 12, 1, 8>}, {pipeline_mode = #tpu.pipeline_mode<synchronous>, transform_indices = @transform_5, window_bounds = array<i64: 2, 4, 8, 32>}, {pipeline_mode = #tpu.pipeline_mode<synchronous>, transform_indices = @transform_6, window_bounds = array<i64: 2, 1, 32>}, {pipeline_mode = #tpu.pipeline_mode<synchronous>, transform_indices = @transform_7, window_bounds = array<i64: 2, 32, 64>}, {pipeline_mode = #tpu.pipeline_mode<synchronous>, transform_indices = @transform_8, window_bounds = array<i64: 2, 1, 64>}, {pipeline_mode = #tpu.pipeline_mode<synchronous>, transform_indices = @transform_9, window_bounds = array<i64: 2, 64, 32>}, {pipeline_mode = #tpu.pipeline_mode<synchronous>, transform_indices = @transform_10, window_bounds = array<i64: 2, 1, 32>}, {pipeline_mode = #tpu.pipeline_mode<synchronous>, transform_indices = @transform_11, window_bounds = array<i64: 2, 1, 32>}, {pipeline_mode = #tpu.pipeline_mode<synchronous>, transform_indices = @transform_12, window_bounds = array<i64: 2, 1, 32>}, {pipeline_mode = #tpu.pipeline_mode<synchronous>, transform_indices = @transform_13, window_bounds = array<i64: 2, 1, 32>}, {pipeline_mode = #tpu.pipeline_mode<synchronous>, transform_indices = @transform_14, window_bounds = array<i64: 2, 1, 32>}, {transform_indices = @transform_15, window_bounds = array<i64: 8, 32>}, {transform_indices = @transform_16, window_bounds = array<i64: 1, 4, 8, 8>}]} {
    %c0 = arith.constant 0 : index
    %c0_0 = arith.constant 0 : index
    %0 = vector.load %arg1[%c0, %c0_0] : memref<8x1xi32, #tpu.memory_space<vmem>>, vector<8x1xi32>
    %1 = tpu.iota {dimensions = array<i32: 1>} : vector<8x50xi32>
    %2 = vector.broadcast %0 : vector<8x1xi32> to vector<8x50xi32>
    %3 = arith.cmpi eq, %1, %2 : vector<8x50xi32>
    %cst = arith.constant 1.000000e+00 : f32
    %cst_1 = arith.constant 0.000000e+00 : f32
    %4 = vector.broadcast %cst : f32 to vector<8x50xf32>
    %5 = vector.broadcast %cst_1 : f32 to vector<8x50xf32>
    %6 = arith.select %3, %4, %5 : vector<8x50xi1>, vector<8x50xf32>
    %c0_2 = arith.constant 0 : index
    %c0_3 = arith.constant 0 : index
    %7 = vector.load %arg2[%c0_2, %c0_3] : memref<50x32xf32, #tpu.memory_space<vmem>>, vector<50x32xf32>
    %cst_4 = arith.constant dense<0.000000e+00> : vector<8x32xf32>
    %8 = tpu.matmul %6, %7, %cst_4 {dimension_numbers = #tpu.dot_dimension_numbers<[1], [0], [0], [1], [0, 0, 1, 1], [], []>} : vector<8x50xf32>, vector<50x32xf32>, vector<8x32xf32> -> vector<8x32xf32>
    %c0_5 = arith.constant 0 : index
    %c0_6 = arith.constant 0 : index
    %9 = vector.load %arg3[%c0_5, %c0_6] : memref<8x32xf32, #tpu.memory_space<vmem>>, vector<8x32xf32>
    %10 = arith.addf %8, %9 : vector<8x32xf32>
    %11 = vector.shape_cast %10 : vector<8x32xf32> to vector<1x8x32xf32>
    %12 = vector.shape_cast %11 : vector<1x8x32xf32> to vector<1x8x32xf32>
    %13 = vector.broadcast %12 : vector<1x8x32xf32> to vector<12x8x32xf32>
    %c0_7 = arith.constant 0 : index
    %c0_8 = arith.constant 0 : index
    %c0_9 = arith.constant 0 : index
    %c0_10 = arith.constant 0 : index
    %14 = vector.load %arg4[%c0_7, %c0_8, %c0_9, %c0_10] : memref<2x12x32x8xf32, #tpu.memory_space<vmem>>, vector<1x12x32x8xf32>
    %15 = vector.shape_cast %14 : vector<1x12x32x8xf32> to vector<12x32x8xf32>
    "tpu.trace_start"() <{level = 10 : i32, message = "jse,jed->jsd"}> : () -> ()
    %cst_11 = arith.constant dense<0.000000e+00> : vector<12x8x8xf32>
    %16 = tpu.matmul %13, %15, %cst_11 {dimension_numbers = #tpu.dot_dimension_numbers<[2], [1], [1], [2], [0, 0, 0, 1, 1, 2], [0], [0]>} : vector<12x8x32xf32>, vector<12x32x8xf32>, vector<12x8x8xf32> -> vector<12x8x8xf32>
    "tpu.trace_stop"() : () -> ()
    %c0_12 = arith.constant 0 : index
    %c0_13 = arith.constant 0 : index
    %c0_14 = arith.constant 0 : index
    %c0_15 = arith.constant 0 : index
    %17 = vector.load %arg5[%c0_12, %c0_13, %c0_14, %c0_15] : memref<2x12x1x8xf32, #tpu.memory_space<vmem>>, vector<1x12x1x8xf32>
    %18 = vector.shape_cast %17 : vector<1x12x1x8xf32> to vector<12x1x8xf32>
    %19 = vector.broadcast %18 : vector<12x1x8xf32> to vector<12x8x8xf32>
    %20 = arith.addf %16, %19 : vector<12x8x8xf32>
    %21 = vector.extract_strided_slice %20 {offsets = [0, 0, 0], sizes = [4, 8, 8], strides = [1, 1, 1]} : vector<12x8x8xf32> to vector<4x8x8xf32>
    %22 = vector.extract_strided_slice %20 {offsets = [4, 0, 0], sizes = [4, 8, 8], strides = [1, 1, 1]} : vector<12x8x8xf32> to vector<4x8x8xf32>
    %23 = vector.extract_strided_slice %20 {offsets = [8, 0, 0], sizes = [4, 8, 8], strides = [1, 1, 1]} : vector<12x8x8xf32> to vector<4x8x8xf32>
    "tpu.trace_start"() <{level = 10 : i32, message = "hqd,hkd->hqk"}> : () -> ()
    %cst_16 = arith.constant dense<0.000000e+00> : vector<4x8x8xf32>
    %24 = tpu.matmul %21, %22, %cst_16 {dimension_numbers = #tpu.dot_dimension_numbers<[2], [2], [1], [1], [0, 0, 0, 1, 1, 1], [0], [0]>} : vector<4x8x8xf32>, vector<4x8x8xf32>, vector<4x8x8xf32> -> vector<4x8x8xf32>
    "tpu.trace_stop"() : () -> ()
    %cst_17 = arith.constant dense<0xFF800000> : vector<4x8xf32>
    %25 = vector.multi_reduction <maximumf>, %24, %cst_17 [2] : vector<4x8x8xf32> to vector<4x8xf32>
    %26 = vector.shape_cast %25 : vector<4x8xf32> to vector<4x8x1xf32>
    %27 = vector.broadcast %26 : vector<4x8x1xf32> to vector<4x8x8xf32>
    %28 = arith.subf %24, %27 : vector<4x8x8xf32>
    %29 = math.exp %28 : vector<4x8x8xf32>
    %cst_18 = arith.constant dense<0.000000e+00> : vector<4x8xf32>
    %30 = vector.multi_reduction <add>, %29, %cst_18 [2] : vector<4x8x8xf32> to vector<4x8xf32>
    %31 = vector.shape_cast %30 : vector<4x8xf32> to vector<4x8x1xf32>
    %32 = vector.broadcast %31 : vector<4x8x1xf32> to vector<4x8x8xf32>
    %33 = arith.divf %29, %32 : vector<4x8x8xf32>
    "tpu.trace_start"() <{level = 10 : i32, message = "hqk,hkd->hqd"}> : () -> ()
    %cst_19 = arith.constant dense<0.000000e+00> : vector<4x8x8xf32>
    %34 = tpu.matmul %33, %23, %cst_19 {dimension_numbers = #tpu.dot_dimension_numbers<[2], [1], [1], [2], [0, 0, 0, 1, 1, 2], [0], [0]>} : vector<4x8x8xf32>, vector<4x8x8xf32>, vector<4x8x8xf32> -> vector<4x8x8xf32>
    "tpu.trace_stop"() : () -> ()
    %c0_20 = arith.constant 0 : index
    %c0_21 = arith.constant 0 : index
    %c0_22 = arith.constant 0 : index
    %c0_23 = arith.constant 0 : index
    %35 = vector.load %arg6[%c0_20, %c0_21, %c0_22, %c0_23] : memref<2x4x8x32xf32, #tpu.memory_space<vmem>>, vector<1x4x8x32xf32>
    %36 = vector.shape_cast %35 : vector<1x4x8x32xf32> to vector<4x8x32xf32>
    "tpu.trace_start"() <{level = 10 : i32, message = "hqd,hdo->hqo"}> : () -> ()
    %cst_24 = arith.constant dense<0.000000e+00> : vector<4x8x32xf32>
    %37 = tpu.matmul %34, %36, %cst_24 {dimension_numbers = #tpu.dot_dimension_numbers<[2], [1], [1], [2], [0, 0, 0, 1, 1, 2], [0], [0]>} : vector<4x8x8xf32>, vector<4x8x32xf32>, vector<4x8x32xf32> -> vector<4x8x32xf32>
    "tpu.trace_stop"() : () -> ()
    %38 = vector.extract_strided_slice %37 {offsets = [0, 0, 0], sizes = [1, 8, 32], strides = [1, 1, 1]} : vector<4x8x32xf32> to vector<1x8x32xf32>
    %39 = vector.shape_cast %38 : vector<1x8x32xf32> to vector<8x32xf32>
    %40 = vector.extract_strided_slice %37 {offsets = [1, 0, 0], sizes = [1, 8, 32], strides = [1, 1, 1]} : vector<4x8x32xf32> to vector<1x8x32xf32>
    %41 = vector.shape_cast %40 : vector<1x8x32xf32> to vector<8x32xf32>
    %42 = arith.addf %39, %41 : vector<8x32xf32>
    %43 = vector.extract_strided_slice %37 {offsets = [2, 0, 0], sizes = [1, 8, 32], strides = [1, 1, 1]} : vector<4x8x32xf32> to vector<1x8x32xf32>
    %44 = vector.shape_cast %43 : vector<1x8x32xf32> to vector<8x32xf32>
    %45 = arith.addf %42, %44 : vector<8x32xf32>
    %46 = vector.extract_strided_slice %37 {offsets = [3, 0, 0], sizes = [1, 8, 32], strides = [1, 1, 1]} : vector<4x8x32xf32> to vector<1x8x32xf32>
    %47 = vector.shape_cast %46 : vector<1x8x32xf32> to vector<8x32xf32>
    %48 = arith.addf %45, %47 : vector<8x32xf32>
    %c0_25 = arith.constant 0 : index
    %c0_26 = arith.constant 0 : index
    %c0_27 = arith.constant 0 : index
    %49 = vector.load %arg7[%c0_25, %c0_26, %c0_27] : memref<2x1x32xf32, #tpu.memory_space<vmem>>, vector<1x1x32xf32>
    %50 = vector.shape_cast %49 : vector<1x1x32xf32> to vector<1x32xf32>
    %51 = vector.broadcast %50 : vector<1x32xf32> to vector<8x32xf32>
    %52 = arith.addf %48, %51 : vector<8x32xf32>
    %c0_28 = arith.constant 0 : index
    %c0_29 = arith.constant 0 : index
    %c0_30 = arith.constant 0 : index
    %53 = vector.load %arg12[%c0_28, %c0_29, %c0_30] : memref<2x1x32xf32, #tpu.memory_space<vmem>>, vector<1x1x32xf32>
    %54 = vector.shape_cast %53 : vector<1x1x32xf32> to vector<1x32xf32>
    %c0_31 = arith.constant 0 : index
    %c0_32 = arith.constant 0 : index
    %c0_33 = arith.constant 0 : index
    %55 = vector.load %arg13[%c0_31, %c0_32, %c0_33] : memref<2x1x32xf32, #tpu.memory_space<vmem>>, vector<1x1x32xf32>
    %56 = vector.shape_cast %55 : vector<1x1x32xf32> to vector<1x32xf32>
    %57 = arith.addf %10, %52 : vector<8x32xf32>
    %cst_34 = arith.constant dense<0.000000e+00> : vector<8xf32>
    %58 = vector.multi_reduction <add>, %57, %cst_34 [1] : vector<8x32xf32> to vector<8xf32>
    %59 = vector.shape_cast %58 : vector<8xf32> to vector<8x1xf32>
    %cst_35 = arith.constant 3.200000e+01 : f32
    %60 = vector.broadcast %cst_35 : f32 to vector<8x1xf32>
    %61 = arith.divf %59, %60 : vector<8x1xf32>
    %62 = vector.broadcast %61 : vector<8x1xf32> to vector<8x32xf32>
    %63 = arith.subf %57, %62 : vector<8x32xf32>
    %64 = arith.mulf %63, %63 : vector<8x32xf32>
    %cst_36 = arith.constant dense<0.000000e+00> : vector<8xf32>
    %65 = vector.multi_reduction <add>, %64, %cst_36 [1] : vector<8x32xf32> to vector<8xf32>
    %66 = vector.shape_cast %65 : vector<8xf32> to vector<8x1xf32>
    %cst_37 = arith.constant 3.200000e+01 : f32
    %67 = vector.broadcast %cst_37 : f32 to vector<8x1xf32>
    %68 = arith.divf %66, %67 : vector<8x1xf32>
    %69 = vector.broadcast %61 : vector<8x1xf32> to vector<8x32xf32>
    %70 = arith.subf %57, %69 : vector<8x32xf32>
    %cst_38 = arith.constant 9.99999974E-6 : f32
    %71 = vector.broadcast %cst_38 : f32 to vector<8x1xf32>
    %72 = arith.addf %68, %71 : vector<8x1xf32>
    %73 = math.rsqrt %72 : vector<8x1xf32>
    %74 = vector.broadcast %73 : vector<8x1xf32> to vector<8x32xf32>
    %75 = arith.mulf %70, %74 : vector<8x32xf32>
    %76 = vector.broadcast %54 : vector<1x32xf32> to vector<8x32xf32>
    %77 = arith.mulf %75, %76 : vector<8x32xf32>
    %78 = vector.broadcast %56 : vector<1x32xf32> to vector<8x32xf32>
    %79 = arith.addf %77, %78 : vector<8x32xf32>
    %c0_39 = arith.constant 0 : index
    %c0_40 = arith.constant 0 : index
    %c0_41 = arith.constant 0 : index
    %80 = vector.load %arg8[%c0_39, %c0_40, %c0_41] : memref<2x32x64xf32, #tpu.memory_space<vmem>>, vector<1x32x64xf32>
    %81 = vector.shape_cast %80 : vector<1x32x64xf32> to vector<32x64xf32>
    %cst_42 = arith.constant dense<0.000000e+00> : vector<8x64xf32>
    %82 = tpu.matmul %79, %81, %cst_42 {dimension_numbers = #tpu.dot_dimension_numbers<[1], [0], [0], [1], [0, 0, 1, 1], [], []>} : vector<8x32xf32>, vector<32x64xf32>, vector<8x64xf32> -> vector<8x64xf32>
    %c0_43 = arith.constant 0 : index
    %c0_44 = arith.constant 0 : index
    %c0_45 = arith.constant 0 : index
    %83 = vector.load %arg9[%c0_43, %c0_44, %c0_45] : memref<2x1x64xf32, #tpu.memory_space<vmem>>, vector<1x1x64xf32>
    %84 = vector.shape_cast %83 : vector<1x1x64xf32> to vector<1x64xf32>
    %85 = vector.broadcast %84 : vector<1x64xf32> to vector<8x64xf32>
    %86 = arith.addf %82, %85 : vector<8x64xf32>
    %cst_46 = arith.constant 0.000000e+00 : f32
    %87 = vector.broadcast %cst_46 : f32 to vector<8x64xf32>
    %88 = arith.maximumf %86, %87 : vector<8x64xf32>
    %c0_47 = arith.constant 0 : index
    %c0_48 = arith.constant 0 : index
    %c0_49 = arith.constant 0 : index
    %89 = vector.load %arg10[%c0_47, %c0_48, %c0_49] : memref<2x64x32xf32, #tpu.memory_space<vmem>>, vector<1x64x32xf32>
    %90 = vector.shape_cast %89 : vector<1x64x32xf32> to vector<64x32xf32>
    %cst_50 = arith.constant dense<0.000000e+00> : vector<8x32xf32>
    %91 = tpu.matmul %88, %90, %cst_50 {dimension_numbers = #tpu.dot_dimension_numbers<[1], [0], [0], [1], [0, 0, 1, 1], [], []>} : vector<8x64xf32>, vector<64x32xf32>, vector<8x32xf32> -> vector<8x32xf32>
    %c0_51 = arith.constant 0 : index
    %c0_52 = arith.constant 0 : index
    %c0_53 = arith.constant 0 : index
    %92 = vector.load %arg11[%c0_51, %c0_52, %c0_53] : memref<2x1x32xf32, #tpu.memory_space<vmem>>, vector<1x1x32xf32>
    %93 = vector.shape_cast %92 : vector<1x1x32xf32> to vector<1x32xf32>
    %94 = vector.broadcast %93 : vector<1x32xf32> to vector<8x32xf32>
    %95 = arith.addf %91, %94 : vector<8x32xf32>
    %c0_54 = arith.constant 0 : index
    %c0_55 = arith.constant 0 : index
    %c0_56 = arith.constant 0 : index
    %96 = vector.load %arg14[%c0_54, %c0_55, %c0_56] : memref<2x1x32xf32, #tpu.memory_space<vmem>>, vector<1x1x32xf32>
    %97 = vector.shape_cast %96 : vector<1x1x32xf32> to vector<1x32xf32>
    %c0_57 = arith.constant 0 : index
    %c0_58 = arith.constant 0 : index
    %c0_59 = arith.constant 0 : index
    %98 = vector.load %arg15[%c0_57, %c0_58, %c0_59] : memref<2x1x32xf32, #tpu.memory_space<vmem>>, vector<1x1x32xf32>
    %99 = vector.shape_cast %98 : vector<1x1x32xf32> to vector<1x32xf32>
    %100 = arith.addf %79, %95 : vector<8x32xf32>
    %cst_60 = arith.constant dense<0.000000e+00> : vector<8xf32>
    %101 = vector.multi_reduction <add>, %100, %cst_60 [1] : vector<8x32xf32> to vector<8xf32>
    %102 = vector.shape_cast %101 : vector<8xf32> to vector<8x1xf32>
    %cst_61 = arith.constant 3.200000e+01 : f32
    %103 = vector.broadcast %cst_61 : f32 to vector<8x1xf32>
    %104 = arith.divf %102, %103 : vector<8x1xf32>
    %105 = vector.broadcast %104 : vector<8x1xf32> to vector<8x32xf32>
    %106 = arith.subf %100, %105 : vector<8x32xf32>
    %107 = arith.mulf %106, %106 : vector<8x32xf32>
    %cst_62 = arith.constant dense<0.000000e+00> : vector<8xf32>
    %108 = vector.multi_reduction <add>, %107, %cst_62 [1] : vector<8x32xf32> to vector<8xf32>
    %109 = vector.shape_cast %108 : vector<8xf32> to vector<8x1xf32>
    %cst_63 = arith.constant 3.200000e+01 : f32
    %110 = vector.broadcast %cst_63 : f32 to vector<8x1xf32>
    %111 = arith.divf %109, %110 : vector<8x1xf32>
    %112 = vector.broadcast %104 : vector<8x1xf32> to vector<8x32xf32>
    %113 = arith.subf %100, %112 : vector<8x32xf32>
    %cst_64 = arith.constant 9.99999974E-6 : f32
    %114 = vector.broadcast %cst_64 : f32 to vector<8x1xf32>
    %115 = arith.addf %111, %114 : vector<8x1xf32>
    %116 = math.rsqrt %115 : vector<8x1xf32>
    %117 = vector.broadcast %116 : vector<8x1xf32> to vector<8x32xf32>
    %118 = arith.mulf %113, %117 : vector<8x32xf32>
    %119 = vector.broadcast %97 : vector<1x32xf32> to vector<8x32xf32>
    %120 = arith.mulf %118, %119 : vector<8x32xf32>
    %121 = vector.broadcast %99 : vector<1x32xf32> to vector<8x32xf32>
    %122 = arith.addf %120, %121 : vector<8x32xf32>
    %123 = vector.shape_cast %122 : vector<8x32xf32> to vector<1x8x32xf32>
    %124 = vector.shape_cast %123 : vector<1x8x32xf32> to vector<1x8x32xf32>
    %125 = vector.broadcast %124 : vector<1x8x32xf32> to vector<12x8x32xf32>
    %c1 = arith.constant 1 : index
    %c0_65 = arith.constant 0 : index
    %c0_66 = arith.constant 0 : index
    %c0_67 = arith.constant 0 : index
    %126 = vector.load %arg4[%c1, %c0_65, %c0_66, %c0_67] : memref<2x12x32x8xf32, #tpu.memory_space<vmem>>, vector<1x12x32x8xf32>
    %127 = vector.shape_cast %126 : vector<1x12x32x8xf32> to vector<12x32x8xf32>
    "tpu.trace_start"() <{level = 10 : i32, message = "jse,jed->jsd"}> : () -> ()
    %cst_68 = arith.constant dense<0.000000e+00> : vector<12x8x8xf32>
    %128 = tpu.matmul %125, %127, %cst_68 {dimension_numbers = #tpu.dot_dimension_numbers<[2], [1], [1], [2], [0, 0, 0, 1, 1, 2], [0], [0]>} : vector<12x8x32xf32>, vector<12x32x8xf32>, vector<12x8x8xf32> -> vector<12x8x8xf32>
    "tpu.trace_stop"() : () -> ()
    %c1_69 = arith.constant 1 : index
    %c0_70 = arith.constant 0 : index
    %c0_71 = arith.constant 0 : index
    %c0_72 = arith.constant 0 : index
    %129 = vector.load %arg5[%c1_69, %c0_70, %c0_71, %c0_72] : memref<2x12x1x8xf32, #tpu.memory_space<vmem>>, vector<1x12x1x8xf32>
    %130 = vector.shape_cast %129 : vector<1x12x1x8xf32> to vector<12x1x8xf32>
    %131 = vector.broadcast %130 : vector<12x1x8xf32> to vector<12x8x8xf32>
    %132 = arith.addf %128, %131 : vector<12x8x8xf32>
    %133 = vector.extract_strided_slice %132 {offsets = [0, 0, 0], sizes = [4, 8, 8], strides = [1, 1, 1]} : vector<12x8x8xf32> to vector<4x8x8xf32>
    %134 = vector.extract_strided_slice %132 {offsets = [4, 0, 0], sizes = [4, 8, 8], strides = [1, 1, 1]} : vector<12x8x8xf32> to vector<4x8x8xf32>
    %135 = vector.extract_strided_slice %132 {offsets = [8, 0, 0], sizes = [4, 8, 8], strides = [1, 1, 1]} : vector<12x8x8xf32> to vector<4x8x8xf32>
    "tpu.trace_start"() <{level = 10 : i32, message = "hqd,hkd->hqk"}> : () -> ()
    %cst_73 = arith.constant dense<0.000000e+00> : vector<4x8x8xf32>
    %136 = tpu.matmul %133, %134, %cst_73 {dimension_numbers = #tpu.dot_dimension_numbers<[2], [2], [1], [1], [0, 0, 0, 1, 1, 1], [0], [0]>} : vector<4x8x8xf32>, vector<4x8x8xf32>, vector<4x8x8xf32> -> vector<4x8x8xf32>
    "tpu.trace_stop"() : () -> ()
    %cst_74 = arith.constant dense<0xFF800000> : vector<4x8xf32>
    %137 = vector.multi_reduction <maximumf>, %136, %cst_74 [2] : vector<4x8x8xf32> to vector<4x8xf32>
    %138 = vector.shape_cast %137 : vector<4x8xf32> to vector<4x8x1xf32>
    %139 = vector.broadcast %138 : vector<4x8x1xf32> to vector<4x8x8xf32>
    %140 = arith.subf %136, %139 : vector<4x8x8xf32>
    %141 = math.exp %140 : vector<4x8x8xf32>
    %cst_75 = arith.constant dense<0.000000e+00> : vector<4x8xf32>
    %142 = vector.multi_reduction <add>, %141, %cst_75 [2] : vector<4x8x8xf32> to vector<4x8xf32>
    %143 = vector.shape_cast %142 : vector<4x8xf32> to vector<4x8x1xf32>
    %144 = vector.broadcast %143 : vector<4x8x1xf32> to vector<4x8x8xf32>
    %145 = arith.divf %141, %144 : vector<4x8x8xf32>
    %c0_76 = arith.constant 0 : index
    %c0_77 = arith.constant 0 : index
    %c0_78 = arith.constant 0 : index
    %c0_79 = arith.constant 0 : index
    %146 = vector.load %arg17[%c0_76, %c0_77, %c0_78, %c0_79] : memref<1x4x8x8xf32, #tpu.memory_space<vmem>>, vector<1x4x8x8xf32>
    %147 = vector.shape_cast %146 : vector<1x4x8x8xf32> to vector<4x8x8xf32>
    %148 = vector.shape_cast %145 : vector<4x8x8xf32> to vector<1x4x8x8xf32>
    tpu.vector_store %arg17[%c0_76, %c0_77, %c0_78, %c0_79], %148 {strides = array<i32>} : memref<1x4x8x8xf32, #tpu.memory_space<vmem>>, vector<1x4x8x8xf32>,
    "tpu.trace_start"() <{level = 10 : i32, message = "hqk,hkd->hqd"}> : () -> ()
    %cst_80 = arith.constant dense<0.000000e+00> : vector<4x8x8xf32>
    %149 = tpu.matmul %145, %135, %cst_80 {dimension_numbers = #tpu.dot_dimension_numbers<[2], [1], [1], [2], [0, 0, 0, 1, 1, 2], [0], [0]>} : vector<4x8x8xf32>, vector<4x8x8xf32>, vector<4x8x8xf32> -> vector<4x8x8xf32>
    "tpu.trace_stop"() : () -> ()
    %c1_81 = arith.constant 1 : index
    %c0_82 = arith.constant 0 : index
    %c0_83 = arith.constant 0 : index
    %c0_84 = arith.constant 0 : index
    %150 = vector.load %arg6[%c1_81, %c0_82, %c0_83, %c0_84] : memref<2x4x8x32xf32, #tpu.memory_space<vmem>>, vector<1x4x8x32xf32>
    %151 = vector.shape_cast %150 : vector<1x4x8x32xf32> to vector<4x8x32xf32>
    "tpu.trace_start"() <{level = 10 : i32, message = "hqd,hdo->hqo"}> : () -> ()
    %cst_85 = arith.constant dense<0.000000e+00> : vector<4x8x32xf32>
    %152 = tpu.matmul %149, %151, %cst_85 {dimension_numbers = #tpu.dot_dimension_numbers<[2], [1], [1], [2], [0, 0, 0, 1, 1, 2], [0], [0]>} : vector<4x8x8xf32>, vector<4x8x32xf32>, vector<4x8x32xf32> -> vector<4x8x32xf32>
    "tpu.trace_stop"() : () -> ()
    %153 = vector.extract_strided_slice %152 {offsets = [0, 0, 0], sizes = [1, 8, 32], strides = [1, 1, 1]} : vector<4x8x32xf32> to vector<1x8x32xf32>
    %154 = vector.shape_cast %153 : vector<1x8x32xf32> to vector<8x32xf32>
    %155 = vector.extract_strided_slice %152 {offsets = [1, 0, 0], sizes = [1, 8, 32], strides = [1, 1, 1]} : vector<4x8x32xf32> to vector<1x8x32xf32>
    %156 = vector.shape_cast %155 : vector<1x8x32xf32> to vector<8x32xf32>
    %157 = arith.addf %154, %156 : vector<8x32xf32>
    %158 = vector.extract_strided_slice %152 {offsets = [2, 0, 0], sizes = [1, 8, 32], strides = [1, 1, 1]} : vector<4x8x32xf32> to vector<1x8x32xf32>
    %159 = vector.shape_cast %158 : vector<1x8x32xf32> to vector<8x32xf32>
    %160 = arith.addf %157, %159 : vector<8x32xf32>
    %161 = vector.extract_strided_slice %152 {offsets = [3, 0, 0], sizes = [1, 8, 32], strides = [1, 1, 1]} : vector<4x8x32xf32> to vector<1x8x32xf32>
    %162 = vector.shape_cast %161 : vector<1x8x32xf32> to vector<8x32xf32>
    %163 = arith.addf %160, %162 : vector<8x32xf32>
    %c1_86 = arith.constant 1 : index
    %c0_87 = arith.constant 0 : index
    %c0_88 = arith.constant 0 : index
    %164 = vector.load %arg7[%c1_86, %c0_87, %c0_88] : memref<2x1x32xf32, #tpu.memory_space<vmem>>, vector<1x1x32xf32>
    %165 = vector.shape_cast %164 : vector<1x1x32xf32> to vector<1x32xf32>
    %166 = vector.broadcast %165 : vector<1x32xf32> to vector<8x32xf32>
    %167 = arith.addf %163, %166 : vector<8x32xf32>
    %c1_89 = arith.constant 1 : index
    %c0_90 = arith.constant 0 : index
    %c0_91 = arith.constant 0 : index
    %168 = vector.load %arg12[%c1_89, %c0_90, %c0_91] : memref<2x1x32xf32, #tpu.memory_space<vmem>>, vector<1x1x32xf32>
    %169 = vector.shape_cast %168 : vector<1x1x32xf32> to vector<1x32xf32>
    %c1_92 = arith.constant 1 : index
    %c0_93 = arith.constant 0 : index
    %c0_94 = arith.constant 0 : index
    %170 = vector.load %arg13[%c1_92, %c0_93, %c0_94] : memref<2x1x32xf32, #tpu.memory_space<vmem>>, vector<1x1x32xf32>
    %171 = vector.shape_cast %170 : vector<1x1x32xf32> to vector<1x32xf32>
    %172 = arith.addf %122, %167 : vector<8x32xf32>
    %cst_95 = arith.constant dense<0.000000e+00> : vector<8xf32>
    %173 = vector.multi_reduction <add>, %172, %cst_95 [1] : vector<8x32xf32> to vector<8xf32>
    %174 = vector.shape_cast %173 : vector<8xf32> to vector<8x1xf32>
    %cst_96 = arith.constant 3.200000e+01 : f32
    %175 = vector.broadcast %cst_96 : f32 to vector<8x1xf32>
    %176 = arith.divf %174, %175 : vector<8x1xf32>
    %177 = vector.broadcast %176 : vector<8x1xf32> to vector<8x32xf32>
    %178 = arith.subf %172, %177 : vector<8x32xf32>
    %179 = arith.mulf %178, %178 : vector<8x32xf32>
    %cst_97 = arith.constant dense<0.000000e+00> : vector<8xf32>
    %180 = vector.multi_reduction <add>, %179, %cst_97 [1] : vector<8x32xf32> to vector<8xf32>
    %181 = vector.shape_cast %180 : vector<8xf32> to vector<8x1xf32>
    %cst_98 = arith.constant 3.200000e+01 : f32
    %182 = vector.broadcast %cst_98 : f32 to vector<8x1xf32>
    %183 = arith.divf %181, %182 : vector<8x1xf32>
    %184 = vector.broadcast %176 : vector<8x1xf32> to vector<8x32xf32>
    %185 = arith.subf %172, %184 : vector<8x32xf32>
    %cst_99 = arith.constant 9.99999974E-6 : f32
    %186 = vector.broadcast %cst_99 : f32 to vector<8x1xf32>
    %187 = arith.addf %183, %186 : vector<8x1xf32>
    %188 = math.rsqrt %187 : vector<8x1xf32>
    %189 = vector.broadcast %188 : vector<8x1xf32> to vector<8x32xf32>
    %190 = arith.mulf %185, %189 : vector<8x32xf32>
    %191 = vector.broadcast %169 : vector<1x32xf32> to vector<8x32xf32>
    %192 = arith.mulf %190, %191 : vector<8x32xf32>
    %193 = vector.broadcast %171 : vector<1x32xf32> to vector<8x32xf32>
    %194 = arith.addf %192, %193 : vector<8x32xf32>
    %c1_100 = arith.constant 1 : index
    %c0_101 = arith.constant 0 : index
    %c0_102 = arith.constant 0 : index
    %195 = vector.load %arg8[%c1_100, %c0_101, %c0_102] : memref<2x32x64xf32, #tpu.memory_space<vmem>>, vector<1x32x64xf32>
    %196 = vector.shape_cast %195 : vector<1x32x64xf32> to vector<32x64xf32>
    %cst_103 = arith.constant dense<0.000000e+00> : vector<8x64xf32>
    %197 = tpu.matmul %194, %196, %cst_103 {dimension_numbers = #tpu.dot_dimension_numbers<[1], [0], [0], [1], [0, 0, 1, 1], [], []>} : vector<8x32xf32>, vector<32x64xf32>, vector<8x64xf32> -> vector<8x64xf32>
    %c1_104 = arith.constant 1 : index
    %c0_105 = arith.constant 0 : index
    %c0_106 = arith.constant 0 : index
    %198 = vector.load %arg9[%c1_104, %c0_105, %c0_106] : memref<2x1x64xf32, #tpu.memory_space<vmem>>, vector<1x1x64xf32>
    %199 = vector.shape_cast %198 : vector<1x1x64xf32> to vector<1x64xf32>
    %200 = vector.broadcast %199 : vector<1x64xf32> to vector<8x64xf32>
    %201 = arith.addf %197, %200 : vector<8x64xf32>
    %cst_107 = arith.constant 0.000000e+00 : f32
    %202 = vector.broadcast %cst_107 : f32 to vector<8x64xf32>
    %203 = arith.maximumf %201, %202 : vector<8x64xf32>
    %c1_108 = arith.constant 1 : index
    %c0_109 = arith.constant 0 : index
    %c0_110 = arith.constant 0 : index
    %204 = vector.load %arg10[%c1_108, %c0_109, %c0_110] : memref<2x64x32xf32, #tpu.memory_space<vmem>>, vector<1x64x32xf32>
    %205 = vector.shape_cast %204 : vector<1x64x32xf32> to vector<64x32xf32>
    %cst_111 = arith.constant dense<0.000000e+00> : vector<8x32xf32>
    %206 = tpu.matmul %203, %205, %cst_111 {dimension_numbers = #tpu.dot_dimension_numbers<[1], [0], [0], [1], [0, 0, 1, 1], [], []>} : vector<8x64xf32>, vector<64x32xf32>, vector<8x32xf32> -> vector<8x32xf32>
    %c1_112 = arith.constant 1 : index
    %c0_113 = arith.constant 0 : index
    %c0_114 = arith.constant 0 : index
    %207 = vector.load %arg11[%c1_112, %c0_113, %c0_114] : memref<2x1x32xf32, #tpu.memory_space<vmem>>, vector<1x1x32xf32>
    %208 = vector.shape_cast %207 : vector<1x1x32xf32> to vector<1x32xf32>
    %209 = vector.broadcast %208 : vector<1x32xf32> to vector<8x32xf32>
    %210 = arith.addf %206, %209 : vector<8x32xf32>
    %c1_115 = arith.constant 1 : index
    %c0_116 = arith.constant 0 : index
    %c0_117 = arith.constant 0 : index
    %211 = vector.load %arg14[%c1_115, %c0_116, %c0_117] : memref<2x1x32xf32, #tpu.memory_space<vmem>>, vector<1x1x32xf32>
    %212 = vector.shape_cast %211 : vector<1x1x32xf32> to vector<1x32xf32>
    %c1_118 = arith.constant 1 : index
    %c0_119 = arith.constant 0 : index
    %c0_120 = arith.constant 0 : index
    %213 = vector.load %arg15[%c1_118, %c0_119, %c0_120] : memref<2x1x32xf32, #tpu.memory_space<vmem>>, vector<1x1x32xf32>
    %214 = vector.shape_cast %213 : vector<1x1x32xf32> to vector<1x32xf32>
    %215 = arith.addf %194, %210 : vector<8x32xf32>
    %cst_121 = arith.constant dense<0.000000e+00> : vector<8xf32>
    %216 = vector.multi_reduction <add>, %215, %cst_121 [1] : vector<8x32xf32> to vector<8xf32>
    %217 = vector.shape_cast %216 : vector<8xf32> to vector<8x1xf32>
    %cst_122 = arith.constant 3.200000e+01 : f32
    %218 = vector.broadcast %cst_122 : f32 to vector<8x1xf32>
    %219 = arith.divf %217, %218 : vector<8x1xf32>
    %220 = vector.broadcast %219 : vector<8x1xf32> to vector<8x32xf32>
    %221 = arith.subf %215, %220 : vector<8x32xf32>
    %222 = arith.mulf %221, %221 : vector<8x32xf32>
    %cst_123 = arith.constant dense<0.000000e+00> : vector<8xf32>
    %223 = vector.multi_reduction <add>, %222, %cst_123 [1] : vector<8x32xf32> to vector<8xf32>
    %224 = vector.shape_cast %223 : vector<8xf32> to vector<8x1xf32>
    %cst_124 = arith.constant 3.200000e+01 : f32
    %225 = vector.broadcast %cst_124 : f32 to vector<8x1xf32>
    %226 = arith.divf %224, %225 : vector<8x1xf32>
    %227 = vector.broadcast %219 : vector<8x1xf32> to vector<8x32xf32>
    %228 = arith.subf %215, %227 : vector<8x32xf32>
    %cst_125 = arith.constant 9.99999974E-6 : f32
    %229 = vector.broadcast %cst_125 : f32 to vector<8x1xf32>
    %230 = arith.addf %226, %229 : vector<8x1xf32>
    %231 = math.rsqrt %230 : vector<8x1xf32>
    %232 = vector.broadcast %231 : vector<8x1xf32> to vector<8x32xf32>
    %233 = arith.mulf %228, %232 : vector<8x32xf32>
    %234 = vector.broadcast %212 : vector<1x32xf32> to vector<8x32xf32>
    %235 = arith.mulf %233, %234 : vector<8x32xf32>
    %236 = vector.broadcast %214 : vector<1x32xf32> to vector<8x32xf32>
    %237 = arith.addf %235, %236 : vector<8x32xf32>
    %c0_126 = arith.constant 0 : index
    %c0_127 = arith.constant 0 : index
    %238 = vector.load %arg16[%c0_126, %c0_127] : memref<8x32xf32, #tpu.memory_space<vmem>>, vector<8x32xf32>
    tpu.vector_store %arg16[%c0_126, %c0_127], %237 {strides = array<i32>} : memref<8x32xf32, #tpu.memory_space<vmem>>, vector<8x32xf32>,
    return
  }
  func.func @transform_0(%arg0: i32) -> (i32, i32) {
    %c0_i32 = arith.constant 0 : i32
    %c0_i32_0 = arith.constant 0 : i32
    return %arg0, %c0_i32 : i32, i32
  }
  func.func @transform_1(%arg0: i32) -> (i32, i32) {
    %c0_i32 = arith.constant 0 : i32
    %c0_i32_0 = arith.constant 0 : i32
    %c0_i32_1 = arith.constant 0 : i32
    return %c0_i32, %c0_i32_0 : i32, i32
  }
  func.func @transform_2(%arg0: i32) -> (i32, i32) {
    %c0_i32 = arith.constant 0 : i32
    %c0_i32_0 = arith.constant 0 : i32
    %c0_i32_1 = arith.constant 0 : i32
    return %c0_i32, %c0_i32_0 : i32, i32
  }
  func.func @transform_3(%arg0: i32) -> (i32, i32, i32, i32) {
    %c0_i32 = arith.constant 0 : i32
    %c0_i32_0 = arith.constant 0 : i32
    %c0_i32_1 = arith.constant 0 : i32
    %c0_i32_2 = arith.constant 0 : i32
    %c0_i32_3 = arith.constant 0 : i32
    return %c0_i32, %c0_i32_0, %c0_i32_1, %c0_i32_2 : i32, i32, i32, i32
  }
  func.func @transform_4(%arg0: i32) -> (i32, i32, i32, i32) {
    %c0_i32 = arith.constant 0 : i32
    %c0_i32_0 = arith.constant 0 : i32
    %c0_i32_1 = arith.constant 0 : i32
    %c0_i32_2 = arith.constant 0 : i32
    %c0_i32_3 = arith.constant 0 : i32
    return %c0_i32, %c0_i32_0, %c0_i32_1, %c0_i32_2 : i32, i32, i32, i32
  }
  func.func @transform_5(%arg0: i32) -> (i32, i32, i32, i32) {
    %c0_i32 = arith.constant 0 : i32
    %c0_i32_0 = arith.constant 0 : i32
    %c0_i32_1 = arith.constant 0 : i32
    %c0_i32_2 = arith.constant 0 : i32
    %c0_i32_3 = arith.constant 0 : i32
    return %c0_i32, %c0_i32_0, %c0_i32_1, %c0_i32_2 : i32, i32, i32, i32
  }
  func.func @transform_6(%arg0: i32) -> (i32, i32, i32) {
    %c0_i32 = arith.constant 0 : i32
    %c0_i32_0 = arith.constant 0 : i32
    %c0_i32_1 = arith.constant 0 : i32
    %c0_i32_2 = arith.constant 0 : i32
    return %c0_i32, %c0_i32_0, %c0_i32_1 : i32, i32, i32
  }
  func.func @transform_7(%arg0: i32) -> (i32, i32, i32) {
    %c0_i32 = arith.constant 0 : i32
    %c0_i32_0 = arith.constant 0 : i32
    %c0_i32_1 = arith.constant 0 : i32
    %c0_i32_2 = arith.constant 0 : i32
    return %c0_i32, %c0_i32_0, %c0_i32_1 : i32, i32, i32
  }
  func.func @transform_8(%arg0: i32) -> (i32, i32, i32) {
    %c0_i32 = arith.constant 0 : i32
    %c0_i32_0 = arith.constant 0 : i32
    %c0_i32_1 = arith.constant 0 : i32
    %c0_i32_2 = arith.constant 0 : i32
    return %c0_i32, %c0_i32_0, %c0_i32_1 : i32, i32, i32
  }
  func.func @transform_9(%arg0: i32) -> (i32, i32, i32) {
    %c0_i32 = arith.constant 0 : i32
    %c0_i32_0 = arith.constant 0 : i32
    %c0_i32_1 = arith.constant 0 : i32
    %c0_i32_2 = arith.constant 0 : i32
    return %c0_i32, %c0_i32_0, %c0_i32_1 : i32, i32, i32
  }
  func.func @transform_10(%arg0: i32) -> (i32, i32, i32) {
    %c0_i32 = arith.constant 0 : i32
    %c0_i32_0 = arith.constant 0 : i32
    %c0_i32_1 = arith.constant 0 : i32
    %c0_i32_2 = arith.constant 0 : i32
    return %c0_i32, %c0_i32_0, %c0_i32_1 : i32, i32, i32
  }
  func.func @transform_11(%arg0: i32) -> (i32, i32, i32) {
    %c0_i32 = arith.constant 0 : i32
    %c0_i32_0 = arith.constant 0 : i32
    %c0_i32_1 = arith.constant 0 : i32
    %c0_i32_2 = arith.constant 0 : i32
    return %c0_i32, %c0_i32_0, %c0_i32_1 : i32, i32, i32
  }
  func.func @transform_12(%arg0: i32) -> (i32, i32, i32) {
    %c0_i32 = arith.constant 0 : i32
    %c0_i32_0 = arith.constant 0 : i32
    %c0_i32_1 = arith.constant 0 : i32
    %c0_i32_2 = arith.constant 0 : i32
    return %c0_i32, %c0_i32_0, %c0_i32_1 : i32, i32, i32
  }
  func.func @transform_13(%arg0: i32) -> (i32, i32, i32) {
    %c0_i32 = arith.constant 0 : i32
    %c0_i32_0 = arith.constant 0 : i32
    %c0_i32_1 = arith.constant 0 : i32
    %c0_i32_2 = arith.constant 0 : i32
    return %c0_i32, %c0_i32_0, %c0_i32_1 : i32, i32, i32
  }
  func.func @transform_14(%arg0: i32) -> (i32, i32, i32) {
    %c0_i32 = arith.constant 0 : i32
    %c0_i32_0 = arith.constant 0 : i32
    %c0_i32_1 = arith.constant 0 : i32
    %c0_i32_2 = arith.constant 0 : i32
    return %c0_i32, %c0_i32_0, %c0_i32_1 : i32, i32, i32
  }
  func.func @transform_15(%arg0: i32) -> (i32, i32) {
    %c0_i32 = arith.constant 0 : i32
    %c0_i32_0 = arith.constant 0 : i32
    return %arg0, %c0_i32 : i32, i32
  }
  func.func @transform_16(%arg0: i32) -> (i32, i32, i32, i32) {
    %c0_i32 = arith.constant 0 : i32
    %c0_i32_0 = arith.constant 0 : i32
    %c0_i32_1 = arith.constant 0 : i32
    %c0_i32_2 = arith.constant 0 : i32
    return %arg0, %c0_i32, %c0_i32_0, %c0_i32_1 : i32, i32, i32, i32
  }
}

</mosaic_0001>

<llo_original>
// kernel: _encoder_forward_impl.1
$region0: #{_encoder_forward_impl.1}
  #allocation0 [shape = 'u32[]', space=smem, size = 0x4, offset = 0x4, fixed_abs, tag = 'smem constant byte address 0x4 - core index']
  #allocation1 [shape = 'u32[144,128]{1,0:T(1,128)}', space=vmem, size = 0x12000, scoped, tag = 'internal scratch']
  %s0 = inlined_call_operand.vmem [shape: s32[16,1], index: 0, kind: input, shape index: {}]
  %s1 = inlined_call_operand.vmem [shape: f32[50,32], index: 1, kind: input, shape index: {}]
  %s2 = inlined_call_operand.vmem [shape: f32[8,32], index: 2, kind: input, shape index: {}]
  %s3 = inlined_call_operand.vmem [shape: f32[2,12,32,8], index: 3, kind: input, shape index: {}]
  %s4 = inlined_call_operand.vmem [shape: f32[2,12,1,8], index: 4, kind: input, shape index: {}]
  %s5 = inlined_call_operand.vmem [shape: f32[2,4,8,32], index: 5, kind: input, shape index: {}]
  %s6 = inlined_call_operand.vmem [shape: f32[2,1,32], index: 6, kind: input, shape index: {}]
  %s7 = inlined_call_operand.vmem [shape: f32[2,32,64], index: 7, kind: input, shape index: {}]
  %s8 = inlined_call_operand.vmem [shape: f32[2,1,64], index: 8, kind: input, shape index: {}]
  %s9 = inlined_call_operand.vmem [shape: f32[2,64,32], index: 9, kind: input, shape index: {}]
  %s10 = inlined_call_operand.vmem [shape: f32[2,1,32], index: 10, kind: input, shape index: {}]
  %s11 = inlined_call_operand.vmem [shape: f32[2,1,32], index: 11, kind: input, shape index: {}]
  %s12 = inlined_call_operand.vmem [shape: f32[2,1,32], index: 12, kind: input, shape index: {}]
  %s13 = inlined_call_operand.vmem [shape: f32[2,1,32], index: 13, kind: input, shape index: {}]
  %s14 = inlined_call_operand.vmem [shape: f32[2,1,32], index: 14, kind: input, shape index: {}]
  %s15 = inlined_call_operand.hbm [shape: f32[16,32], index: 15, kind: output, shape index: {0}]
  %s16 = inlined_call_operand.hbm [shape: f32[2,4,8,8], index: 16, kind: output, shape index: {1}]
  %17 = xla_tuple %s15, %s16
  %s18 = sld [smem:[#allocation0]]
  $region101: #{_encoder_forward_impl.1} parent=0
    _
  %s20 = ssub.s32 1, %s18
  %s21 = scalar_select 0, %s20, %s18
  $region1: #{_encoder_forward_impl.1} parent=0
    #allocation2 [shape = 'u8[8192]{0}', space=vmem, size = 0x2000, scoped, tag = 'output window, operand 0']
    #allocation3 [shape = 's32[2]{0}', space=sflag, size = 0x8, scoped, tag = 'scoped memory for _encoder_forward_impl.1']
    #allocation4 [shape = 'u8[32768]{0}', space=vmem, size = 0x8000, scoped, tag = 'output window, operand 1']
    #allocation5 [shape = 's32[2]{0}', space=sflag, size = 0x8, scoped, tag = 'scoped memory for _encoder_forward_impl.1']
    %22 = vsyncpa [#allocation3], 0
    %s23 = scalar_lea.sflag [#allocation3], 1
    %24 = vsyncpa %s23, 0
    %25 = vsyncpa [#allocation5], 0
    %s26 = scalar_lea.sflag [#allocation5], 1
    %27 = vsyncpa %s26, 0
    loop: start=0, step=1, limit=4
    $region2: #{_encoder_forward_impl.1} parent=1 // loop_pre_header
      _
    $region3: #{_encoder_forward_impl.1} parent=1 // loop_header
      %s29 = sphi 0, %s33
      %p30 = scmp.ge.s32.totalorder %s29, 4
      %s39 = sphi 0, %s41
      %s42 = sphi 0, %s39
      %s43 = sphi 0, %s42
      %s59 = sphi 0, %s43
      %s63 = sphi 0, %s63
      %s65 = sphi 0, %s63
      %s66 = sphi 0, %s65
      %s80 = sphi 0, %s66
      %s84 = sphi 0, %s84
      %s86 = sphi 0, %s84
      %s87 = sphi 0, %s86
      %s101 = sphi 0, %s87
      %s105 = sphi 0, %s105
      %s107 = sphi 0, %s105
      %s108 = sphi 0, %s107
      %s122 = sphi 0, %s108
      %s126 = sphi 0, %s126
      %s128 = sphi 0, %s126
      %s129 = sphi 0, %s128
      %s143 = sphi 0, %s129
      %s147 = sphi 0, %s147
      %s149 = sphi 0, %s147
      %s150 = sphi 0, %s149
      %s164 = sphi 0, %s150
      %s168 = sphi 0, %s168
      %s170 = sphi 0, %s168
      %s171 = sphi 0, %s170
      %s185 = sphi 0, %s171
      %s189 = sphi 0, %s189
      %s191 = sphi 0, %s189
      %s192 = sphi 0, %s191
      %s206 = sphi 0, %s192
      %s210 = sphi 0, %s210
      %s212 = sphi 0, %s210
      %s213 = sphi 0, %s212
      %s227 = sphi 0, %s213
      %s231 = sphi 0, %s231
      %s233 = sphi 0, %s231
      %s234 = sphi 0, %s233
      %s248 = sphi 0, %s234
      %s252 = sphi 0, %s252
      %s254 = sphi 0, %s252
      %s255 = sphi 0, %s254
      %s269 = sphi 0, %s255
      %s273 = sphi 0, %s273
      %s275 = sphi 0, %s273
      %s276 = sphi 0, %s275
      %s290 = sphi 0, %s276
      %s294 = sphi 0, %s294
      %s296 = sphi 0, %s294
      %s297 = sphi 0, %s296
      %s311 = sphi 0, %s297
      %s315 = sphi 0, %s315
      %s317 = sphi 0, %s315
      %s318 = sphi 0, %s317
      %s332 = sphi 0, %s318
      %s336 = sphi 0, %s336
      %s338 = sphi 0, %s336
      %s339 = sphi 0, %s338
      %s353 = sphi 0, %s339
      %s359 = sphi 0, %s361
      %s362 = sphi 0, %s359
      %s363 = sphi 0, %s362
      %s379 = sphi 0, %s363
      %s385 = sphi 0, %s387
      %s388 = sphi 0, %s385
      %s389 = sphi 0, %s388
      %s405 = sphi 0, %s389
    $region4: #{_encoder_forward_impl.1} parent=1 // loop_header_branch
      %32 = sbr.rel (%p30) target = $region8
    $region5: #{_encoder_forward_impl.1} parent=1 // loop_body
      %s34 = ssub.s32 %s29, 1
      %s35 = ssub.s32 %s29, 2
      %s36 = sadd.s32 %s29, 1
      %s37 = ssub.s32 %s29, %s36
      %p38 = scmp.eq.s32.totalorder %s37, 0
      %s40 = sadd.s32 %s39, 1
      %s41 = scalar_select %p38, %s39, %s40
      %p44 = pneg %p38
      %p45 = scmp.eq.s32.totalorder %s29, 1
      %p46 = por %p44, %p45
      %p47 = scmp.ne.s32.totalorder %s39, %s42
      %p48 = scmp.eq.s32.totalorder %s29, 0
      %p49 = por %p47, %p48
      %p50 = scmp.ne.s32.totalorder %s39, %s42
      %p51 = scmp.eq.s32.totalorder %s34, 1
      %p52 = por %p50, %p51
      %p53 = scmp.ne.s32.totalorder %s42, %s43
      %p54 = scmp.eq.s32.totalorder %s34, 0
      %p55 = por %p53, %p54
      %p56 = scmp.ne.s32.totalorder %s42, %s43
      %p57 = scmp.eq.s32.totalorder %s35, 1
      %p58 = por %p56, %p57
      %p60 = scmp.ne.s32.totalorder %s43, %s59
      %p61 = scmp.eq.s32.totalorder %s35, 0
      %p62 = por %p60, %p61
      %s64 = sadd.s32 %s63, 1
      %p67 = scmp.eq.s32.totalorder %s29, 1
      %p68 = scmp.ne.s32.totalorder %s63, %s65
      %p69 = scmp.eq.s32.totalorder %s29, 0
      %p70 = por %p68, %p69
      %p71 = scmp.ne.s32.totalorder %s63, %s65
      %p72 = scmp.eq.s32.totalorder %s34, 1
      %p73 = por %p71, %p72
      %p74 = scmp.ne.s32.totalorder %s65, %s66
      %p75 = scmp.eq.s32.totalorder %s34, 0
      %p76 = por %p74, %p75
      %p77 = scmp.ne.s32.totalorder %s65, %s66
      %p78 = scmp.eq.s32.totalorder %s35, 1
      %p79 = por %p77, %p78
      %p81 = scmp.ne.s32.totalorder %s66, %s80
      %p82 = scmp.eq.s32.totalorder %s35, 0
      %p83 = por %p81, %p82
      %s85 = sadd.s32 %s84, 1
      %p88 = scmp.eq.s32.totalorder %s29, 1
      %p89 = scmp.ne.s32.totalorder %s84, %s86
      %p90 = scmp.eq.s32.totalorder %s29, 0
      %p91 = por %p89, %p90
      %p92 = scmp.ne.s32.totalorder %s84, %s86
      %p93 = scmp.eq.s32.totalorder %s34, 1
      %p94 = por %p92, %p93
      %p95 = scmp.ne.s32.totalorder %s86, %s87
      %p96 = scmp.eq.s32.totalorder %s34, 0
      %p97 = por %p95, %p96
      %p98 = scmp.ne.s32.totalorder %s86, %s87
      %p99 = scmp.eq.s32.totalorder %s35, 1
      %p100 = por %p98, %p99
      %p102 = scmp.ne.s32.totalorder %s87, %s101
      %p103 = scmp.eq.s32.totalorder %s35, 0
      %p104 = por %p102, %p103
      %s106 = sadd.s32 %s105, 1
      %p109 = scmp.eq.s32.totalorder %s29, 1
      %p110 = scmp.ne.s32.totalorder %s105, %s107
      %p111 = scmp.eq.s32.totalorder %s29, 0
      %p112 = por %p110, %p111
      %p113 = scmp.ne.s32.totalorder %s105, %s107
      %p114 = scmp.eq.s32.totalorder %s34, 1
      %p115 = por %p113, %p114
      %p116 = scmp.ne.s32.totalorder %s107, %s108
      %p117 = scmp.eq.s32.totalorder %s34, 0
      %p118 = por %p116, %p117
      %p119 = scmp.ne.s32.totalorder %s107, %s108
      %p120 = scmp.eq.s32.totalorder %s35, 1
      %p121 = por %p119, %p120
      %p123 = scmp.ne.s32.totalorder %s108, %s122
      %p124 = scmp.eq.s32.totalorder %s35, 0
      %p125 = por %p123, %p124
      %s127 = sadd.s32 %s126, 1
      %p130 = scmp.eq.s32.totalorder %s29, 1
      %p131 = scmp.ne.s32.totalorder %s126, %s128
      %p132 = scmp.eq.s32.totalorder %s29, 0
      %p133 = por %p131, %p132
      %p134 = scmp.ne.s32.totalorder %s126, %s128
      %p135 = scmp.eq.s32.totalorder %s34, 1
      %p136 = por %p134, %p135
      %p137 = scmp.ne.s32.totalorder %s128, %s129
      %p138 = scmp.eq.s32.totalorder %s34, 0
      %p139 = por %p137, %p138
      %p140 = scmp.ne.s32.totalorder %s128, %s129
      %p141 = scmp.eq.s32.totalorder %s35, 1
      %p142 = por %p140, %p141
      %p144 = scmp.ne.s32.totalorder %s129, %s143
      %p145 = scmp.eq.s32.totalorder %s35, 0
      %p146 = por %p144, %p145
      %s148 = sadd.s32 %s147, 1
      %p151 = scmp.eq.s32.totalorder %s29, 1
      %p152 = scmp.ne.s32.totalorder %s147, %s149
      %p153 = scmp.eq.s32.totalorder %s29, 0
      %p154 = por %p152, %p153
      %p155 = scmp.ne.s32.totalorder %s147, %s149
      %p156 = scmp.eq.s32.totalorder %s34, 1
      %p157 = por %p155, %p156
      %p158 = scmp.ne.s32.totalorder %s149, %s150
      %p159 = scmp.eq.s32.totalorder %s34, 0
      %p160 = por %p158, %p159
      %p161 = scmp.ne.s32.totalorder %s149, %s150
      %p162 = scmp.eq.s32.totalorder %s35, 1
      %p163 = por %p161, %p162
      %p165 = scmp.ne.s32.totalorder %s150, %s164
      %p166 = scmp.eq.s32.totalorder %s35, 0
      %p167 = por %p165, %p166
      %s169 = sadd.s32 %s168, 1
      %p172 = scmp.eq.s32.totalorder %s29, 1
      %p173 = scmp.ne.s32.totalorder %s168, %s170
      %p174 = scmp.eq.s32.totalorder %s29, 0
      %p175 = por %p173, %p174
      %p176 = scmp.ne.s32.totalorder %s168, %s170
      %p177 = scmp.eq.s32.totalorder %s34, 1
      %p178 = por %p176, %p177
      %p179 = scmp.ne.s32.totalorder %s170, %s171
      %p180 = scmp.eq.s32.totalorder %s34, 0
      %p181 = por %p179, %p180
      %p182 = scmp.ne.s32.totalorder %s170, %s171
      %p183 = scmp.eq.s32.totalorder %s35, 1
      %p184 = por %p182, %p183
      %p186 = scmp.ne.s32.totalorder %s171, %s185
      %p187 = scmp.eq.s32.totalorder %s35, 0
      %p188 = por %p186, %p187
      %s190 = sadd.s32 %s189, 1
      %p193 = scmp.eq.s32.totalorder %s29, 1
      %p194 = scmp.ne.s32.totalorder %s189, %s191
      %p195 = scmp.eq.s32.totalorder %s29, 0
      %p196 = por %p194, %p195
      %p197 = scmp.ne.s32.totalorder %s189, %s191
      %p198 = scmp.eq.s32.totalorder %s34, 1
      %p199 = por %p197, %p198
      %p200 = scmp.ne.s32.totalorder %s191, %s192
      %p201 = scmp.eq.s32.totalorder %s34, 0
      %p202 = por %p200, %p201
      %p203 = scmp.ne.s32.totalorder %s191, %s192
      %p204 = scmp.eq.s32.totalorder %s35, 1
      %p205 = por %p203, %p204
      %p207 = scmp.ne.s32.totalorder %s192, %s206
      %p208 = scmp.eq.s32.totalorder %s35, 0
      %p209 = por %p207, %p208
      %s211 = sadd.s32 %s210, 1
      %p214 = scmp.eq.s32.totalorder %s29, 1
      %p215 = scmp.ne.s32.totalorder %s210, %s212
      %p216 = scmp.eq.s32.totalorder %s29, 0
      %p217 = por %p215, %p216
      %p218 = scmp.ne.s32.totalorder %s210, %s212
      %p219 = scmp.eq.s32.totalorder %s34, 1
      %p220 = por %p218, %p219
      %p221 = scmp.ne.s32.totalorder %s212, %s213
      %p222 = scmp.eq.s32.totalorder %s34, 0
      %p223 = por %p221, %p222
      %p224 = scmp.ne.s32.totalorder %s212, %s213
      %p225 = scmp.eq.s32.totalorder %s35, 1
      %p226 = por %p224, %p225
      %p228 = scmp.ne.s32.totalorder %s213, %s227
      %p229 = scmp.eq.s32.totalorder %s35, 0
      %p230 = por %p228, %p229
      %s232 = sadd.s32 %s231, 1
      %p235 = scmp.eq.s32.totalorder %s29, 1
      %p236 = scmp.ne.s32.totalorder %s231, %s233
      %p237 = scmp.eq.s32.totalorder %s29, 0
      %p238 = por %p236, %p237
      %p239 = scmp.ne.s32.totalorder %s231, %s233
      %p240 = scmp.eq.s32.totalorder %s34, 1
      %p241 = por %p239, %p240
      %p242 = scmp.ne.s32.totalorder %s233, %s234
      %p243 = scmp.eq.s32.totalorder %s34, 0
      %p244 = por %p242, %p243
      %p245 = scmp.ne.s32.totalorder %s233, %s234
      %p246 = scmp.eq.s32.totalorder %s35, 1
      %p247 = por %p245, %p246
      %p249 = scmp.ne.s32.totalorder %s234, %s248
      %p250 = scmp.eq.s32.totalorder %s35, 0
      %p251 = por %p249, %p250
      %s253 = sadd.s32 %s252, 1
      %p256 = scmp.eq.s32.totalorder %s29, 1
      %p257 = scmp.ne.s32.totalorder %s252, %s254
      %p258 = scmp.eq.s32.totalorder %s29, 0
      %p259 = por %p257, %p258
      %p260 = scmp.ne.s32.totalorder %s252, %s254
      %p261 = scmp.eq.s32.totalorder %s34, 1
      %p262 = por %p260, %p261
      %p263 = scmp.ne.s32.totalorder %s254, %s255
      %p264 = scmp.eq.s32.totalorder %s34, 0
      %p265 = por %p263, %p264
      %p266 = scmp.ne.s32.totalorder %s254, %s255
      %p267 = scmp.eq.s32.totalorder %s35, 1
      %p268 = por %p266, %p267
      %p270 = scmp.ne.s32.totalorder %s255, %s269
      %p271 = scmp.eq.s32.totalorder %s35, 0
      %p272 = por %p270, %p271
      %s274 = sadd.s32 %s273, 1
      %p277 = scmp.eq.s32.totalorder %s29, 1
      %p278 = scmp.ne.s32.totalorder %s273, %s275
      %p279 = scmp.eq.s32.totalorder %s29, 0
      %p280 = por %p278, %p279
      %p281 = scmp.ne.s32.totalorder %s273, %s275
      %p282 = scmp.eq.s32.totalorder %s34, 1
      %p283 = por %p281, %p282
      %p284 = scmp.ne.s32.totalorder %s275, %s276
      %p285 = scmp.eq.s32.totalorder %s34, 0
      %p286 = por %p284, %p285
      %p287 = scmp.ne.s32.totalorder %s275, %s276
      %p288 = scmp.eq.s32.totalorder %s35, 1
      %p289 = por %p287, %p288
      %p291 = scmp.ne.s32.totalorder %s276, %s290
      %p292 = scmp.eq.s32.totalorder %s35, 0
      %p293 = por %p291, %p292
      %s295 = sadd.s32 %s294, 1
      %p298 = scmp.eq.s32.totalorder %s29, 1
      %p299 = scmp.ne.s32.totalorder %s294, %s296
      %p300 = scmp.eq.s32.totalorder %s29, 0
      %p301 = por %p299, %p300
      %p302 = scmp.ne.s32.totalorder %s294, %s296
      %p303 = scmp.eq.s32.totalorder %s34, 1
      %p304 = por %p302, %p303
      %p305 = scmp.ne.s32.totalorder %s296, %s297
      %p306 = scmp.eq.s32.totalorder %s34, 0
      %p307 = por %p305, %p306
      %p308 = scmp.ne.s32.totalorder %s296, %s297
      %p309 = scmp.eq.s32.totalorder %s35, 1
      %p310 = por %p308, %p309
      %p312 = scmp.ne.s32.totalorder %s297, %s311
      %p313 = scmp.eq.s32.totalorder %s35, 0
      %p314 = por %p312, %p313
      %s316 = sadd.s32 %s315, 1
      %p319 = scmp.eq.s32.totalorder %s29, 1
      %p320 = scmp.ne.s32.totalorder %s315, %s317
      %p321 = scmp.eq.s32.totalorder %s29, 0
      %p322 = por %p320, %p321
      %p323 = scmp.ne.s32.totalorder %s315, %s317
      %p324 = scmp.eq.s32.totalorder %s34, 1
      %p325 = por %p323, %p324
      %p326 = scmp.ne.s32.totalorder %s317, %s318
      %p327 = scmp.eq.s32.totalorder %s34, 0
      %p328 = por %p326, %p327
      %p329 = scmp.ne.s32.totalorder %s317, %s318
      %p330 = scmp.eq.s32.totalorder %s35, 1
      %p331 = por %p329, %p330
      %p333 = scmp.ne.s32.totalorder %s318, %s332
      %p334 = scmp.eq.s32.totalorder %s35, 0
      %p335 = por %p333, %p334
      %s337 = sadd.s32 %s336, 1
      %p340 = scmp.eq.s32.totalorder %s29, 1
      %p341 = scmp.ne.s32.totalorder %s336, %s338
      %p342 = scmp.eq.s32.totalorder %s29, 0
      %p343 = por %p341, %p342
      %p344 = scmp.ne.s32.totalorder %s336, %s338
      %p345 = scmp.eq.s32.totalorder %s34, 1
      %p346 = por %p344, %p345
      %p347 = scmp.ne.s32.totalorder %s338, %s339
      %p348 = scmp.eq.s32.totalorder %s34, 0
      %p349 = por %p347, %p348
      %p350 = scmp.ne.s32.totalorder %s338, %s339
      %p351 = scmp.eq.s32.totalorder %s35, 1
      %p352 = por %p350, %p351
      %p354 = scmp.ne.s32.totalorder %s339, %s353
      %p355 = scmp.eq.s32.totalorder %s35, 0
      %p356 = por %p354, %p355
      %s357 = ssub.s32 %s29, %s36
      %p358 = scmp.eq.s32.totalorder %s357, 0
      %s360 = sadd.s32 %s359, 1
      %s361 = scalar_select %p358, %s359, %s360
      %p364 = pneg %p358
      %p365 = scmp.eq.s32.totalorder %s29, 1
      %p366 = por %p364, %p365
      %p367 = scmp.ne.s32.totalorder %s359, %s362
      %p368 = scmp.eq.s32.totalorder %s29, 0
      %p369 = por %p367, %p368
      %p370 = scmp.ne.s32.totalorder %s359, %s362
      %p371 = scmp.eq.s32.totalorder %s34, 1
      %p372 = por %p370, %p371
      %p373 = scmp.ne.s32.totalorder %s362, %s363
      %p374 = scmp.eq.s32.totalorder %s34, 0
      %p375 = por %p373, %p374
      %p376 = scmp.ne.s32.totalorder %s362, %s363
      %p377 = scmp.eq.s32.totalorder %s35, 1
      %p378 = por %p376, %p377
      %p380 = scmp.ne.s32.totalorder %s363, %s379
      %p381 = scmp.eq.s32.totalorder %s35, 0
      %p382 = por %p380, %p381
      %s383 = ssub.s32 %s29, %s36
      %p384 = scmp.eq.s32.totalorder %s383, 0
      %s386 = sadd.s32 %s385, 1
      %s387 = scalar_select %p384, %s385, %s386
      %p390 = pneg %p384
      %p391 = scmp.eq.s32.totalorder %s29, 1
      %p392 = por %p390, %p391
      %p393 = scmp.ne.s32.totalorder %s385, %s388
      %p394 = scmp.eq.s32.totalorder %s29, 0
      %p395 = por %p393, %p394
      %p396 = scmp.ne.s32.totalorder %s385, %s388
      %p397 = scmp.eq.s32.totalorder %s34, 1
      %p398 = por %p396, %p397
      %p399 = scmp.ne.s32.totalorder %s388, %s389
      %p400 = scmp.eq.s32.totalorder %s34, 0
      %p401 = por %p399, %p400
      %p402 = scmp.ne.s32.totalorder %s388, %s389
      %p403 = scmp.eq.s32.totalorder %s35, 1
      %p404 = por %p402, %p403
      %p406 = scmp.ne.s32.totalorder %s389, %s405
      %p407 = scmp.eq.s32.totalorder %s35, 0
      %p408 = por %p406, %p407
      %p409 = scmp.le.s32.totalorder 1, %s29
      %p410 = scmp.lt.s32.totalorder %s29, 3
      %p411 = pnand %p409, %p410
      %p412 = pneg %p411
      // Predicated region
      $region9: #{_encoder_forward_impl.1} parent=5 // pred_check
        _
      $region10: #{_encoder_forward_impl.1} parent=5 // pred_check_branch
        %414 = sbr.rel (%p411) target = $region12
      $region11: #{_encoder_forward_impl.1} parent=5 // pred_region
        %s415 = ssub.s32 %s29, 1
        // Predicated region
        $region13: #{_encoder_forward_impl.1} parent=11 // pred_check
          %p416 = pneg %p76
        $region14: #{_encoder_forward_impl.1} parent=11 // pred_check_branch
          %418 = sbr.rel (%p416) target = $region16
        $region15: #{_encoder_forward_impl.1} parent=11 // pred_region
          _
        $region16: #{_encoder_forward_impl.1} parent=11 // pred_fallthru
          _
        // Predicated region
        $region17: #{_encoder_forward_impl.1} parent=11 // pred_check
          %p419 = pneg %p97
        $region18: #{_encoder_forward_impl.1} parent=11 // pred_check_branch
          %421 = sbr.rel (%p419) target = $region20
        $region19: #{_encoder_forward_impl.1} parent=11 // pred_region
          _
        $region20: #{_encoder_forward_impl.1} parent=11 // pred_fallthru
          _
        // Predicated region
        $region21: #{_encoder_forward_impl.1} parent=11 // pred_check
          %p422 = pneg %p118
        $region22: #{_encoder_forward_impl.1} parent=11 // pred_check_branch
          %424 = sbr.rel (%p422) target = $region24
        $region23: #{_encoder_forward_impl.1} parent=11 // pred_region
          _
        $region24: #{_encoder_forward_impl.1} parent=11 // pred_fallthru
          _
        // Predicated region
        $region25: #{_encoder_forward_impl.1} parent=11 // pred_check
          %p425 = pneg %p139
        $region26: #{_encoder_forward_impl.1} parent=11 // pred_check_branch
          %427 = sbr.rel (%p425) target = $region28
        $region27: #{_encoder_forward_impl.1} parent=11 // pred_region
          _
        $region28: #{_encoder_forward_impl.1} parent=11 // pred_fallthru
          _
        // Predicated region
        $region29: #{_encoder_forward_impl.1} parent=11 // pred_check
          %p428 = pneg %p160
        $region30: #{_encoder_forward_impl.1} parent=11 // pred_check_branch
          %430 = sbr.rel (%p428) target = $region32
        $region31: #{_encoder_forward_impl.1} parent=11 // pred_region
          _
        $region32: #{_encoder_forward_impl.1} parent=11 // pred_fallthru
          _
        // Predicated region
        $region33: #{_encoder_forward_impl.1} parent=11 // pred_check
          %p431 = pneg %p181
        $region34: #{_encoder_forward_impl.1} parent=11 // pred_check_branch
          %433 = sbr.rel (%p431) target = $region36
        $region35: #{_encoder_forward_impl.1} parent=11 // pred_region
          _
        $region36: #{_encoder_forward_impl.1} parent=11 // pred_fallthru
          _
        // Predicated region
        $region37: #{_encoder_forward_impl.1} parent=11 // pred_check
          %p434 = pneg %p202
        $region38: #{_encoder_forward_impl.1} parent=11 // pred_check_branch
          %436 = sbr.rel (%p434) target = $region40
        $region39: #{_encoder_forward_impl.1} parent=11 // pred_region
          _
        $region40: #{_encoder_forward_impl.1} parent=11 // pred_fallthru
          _
        // Predicated region
        $region41: #{_encoder_forward_impl.1} parent=11 // pred_check
          %p437 = pneg %p223
        $region42: #{_encoder_forward_impl.1} parent=11 // pred_check_branch
          %439 = sbr.rel (%p437) target = $region44
        $region43: #{_encoder_forward_impl.1} parent=11 // pred_region
          _
        $region44: #{_encoder_forward_impl.1} parent=11 // pred_fallthru
          _
        // Predicated region
        $region45: #{_encoder_forward_impl.1} parent=11 // pred_check
          %p440 = pneg %p244
        $region46: #{_encoder_forward_impl.1} parent=11 // pred_check_branch
          %442 = sbr.rel (%p440) target = $region48
        $region47: #{_encoder_forward_impl.1} parent=11 // pred_region
          _
        $region48: #{_encoder_forward_impl.1} parent=11 // pred_fallthru
          _
        // Predicated region
        $region49: #{_encoder_forward_impl.1} parent=11 // pred_check
          %p443 = pneg %p265
        $region50: #{_encoder_forward_impl.1} parent=11 // pred_check_branch
          %445 = sbr.rel (%p443) target = $region52
        $region51: #{_encoder_forward_impl.1} parent=11 // pred_region
          _
        $region52: #{_encoder_forward_impl.1} parent=11 // pred_fallthru
          _
        // Predicated region
        $region53: #{_encoder_forward_impl.1} parent=11 // pred_check
          %p446 = pneg %p286
        $region54: #{_encoder_forward_impl.1} parent=11 // pred_check_branch
          %448 = sbr.rel (%p446) target = $region56
        $region55: #{_encoder_forward_impl.1} parent=11 // pred_region
          _
        $region56: #{_encoder_forward_impl.1} parent=11 // pred_fallthru
          _
        // Predicated region
        $region57: #{_encoder_forward_impl.1} parent=11 // pred_check
          %p449 = pneg %p307
        $region58: #{_encoder_forward_impl.1} parent=11 // pred_check_branch
          %451 = sbr.rel (%p449) target = $region60
        $region59: #{_encoder_forward_impl.1} parent=11 // pred_region
          _
        $region60: #{_encoder_forward_impl.1} parent=11 // pred_fallthru
          _
        // Predicated region
        $region61: #{_encoder_forward_impl.1} parent=11 // pred_check
          %p452 = pneg %p328
        $region62: #{_encoder_forward_impl.1} parent=11 // pred_check_branch
          %454 = sbr.rel (%p452) target = $region64
        $region63: #{_encoder_forward_impl.1} parent=11 // pred_region
          _
        $region64: #{_encoder_forward_impl.1} parent=11 // pred_fallthru
          _
        // Predicated region
        $region65: #{_encoder_forward_impl.1} parent=11 // pred_check
          %p455 = pneg %p349
        $region66: #{_encoder_forward_impl.1} parent=11 // pred_check_branch
          %457 = sbr.rel (%p455) target = $region68
        $region67: #{_encoder_forward_impl.1} parent=11 // pred_region
          _
        $region68: #{_encoder_forward_impl.1} parent=11 // pred_fallthru
          _
      $region12: #{_encoder_forward_impl.1} parent=5 // pred_fallthru
        _
      %p458 = scmp.lt.s32.totalorder %s29, 2
      // Predicated region
      $region69: #{_encoder_forward_impl.1} parent=5 // pred_check
        %p459 = pneg %p458
      $region70: #{_encoder_forward_impl.1} parent=5 // pred_check_branch
        %461 = sbr.rel (%p459) target = $region72
      $region71: #{_encoder_forward_impl.1} parent=5 // pred_region
        // Predicated region
        $region73: #{_encoder_forward_impl.1} parent=71 // pred_check
          %p462 = pneg %p49
        $region74: #{_encoder_forward_impl.1} parent=71 // pred_check_branch
          %464 = sbr.rel (%p462) target = $region76
        $region75: #{_encoder_forward_impl.1} parent=71 // pred_region
          %p465 = scmp.lt.s32.totalorder %s29, 1
          %s466 = scalar_select %p465, %s29, 1
          %s467 = smul.addr %s466, 8
          %s468 = scalar_lea.vmem %s0, %s467
        $region76: #{_encoder_forward_impl.1} parent=71 // pred_fallthru
          _
      $region72: #{_encoder_forward_impl.1} parent=5 // pred_fallthru
        _
      %p469 = scmp.le.s32.totalorder 1, %s29
      %p470 = scmp.lt.s32.totalorder %s29, 3
      %p471 = pnand %p469, %p470
      %p472 = pneg %p471
      // Predicated region
      $region77: #{_encoder_forward_impl.1} parent=5 // pred_check
        _
      $region78: #{_encoder_forward_impl.1} parent=5 // pred_check_branch
        %474 = sbr.rel (%p471) target = $region80
      $region79: #{_encoder_forward_impl.1} parent=5 // pred_region
        %s475 = ssub.s32 %s29, 1
        %p476 = scmp.lt.s32.totalorder %s34, 1
        %s477 = scalar_select %p476, %s34, 1
        %s478 = smul.addr %s477, 8
        %s479 = scalar_lea.vmem %s0, %s478
        %p480 = pneg %p55
        %p481 = pneg %p52
        %p482 = pneg %p76
        %p483 = pneg %p73
        %p484 = pneg %p97
        %p485 = pneg %p94
        %p486 = pneg %p118
        %p487 = pneg %p115
        %p488 = pneg %p139
        %p489 = pneg %p136
        %p490 = pneg %p160
        %p491 = pneg %p157
        %p492 = pneg %p181
        %p493 = pneg %p178
        %p494 = pneg %p202
        %p495 = pneg %p199
        %p496 = pneg %p223
        %p497 = pneg %p220
        %p498 = pneg %p244
        %p499 = pneg %p241
        %p500 = pneg %p265
        %p501 = pneg %p262
        %p502 = pneg %p286
        %p503 = pneg %p283
        %p504 = pneg %p307
        %p505 = pneg %p304
        %p506 = pneg %p328
        %p507 = pneg %p325
        %p508 = pneg %p349
        %p509 = pneg %p346
        %p510 = pneg %p375
        %p511 = pneg %p372
        %s512 = sand.u32 %s362, 1
        %s513 = scalar_lea.sflag [#allocation3], %s512
        %s514 = sand.u32 %s362, 1
        %s515 = smul.addr %s514, 8
        %s516 = scalar_lea.vmem [#allocation2], %s515
        %p517 = pneg %p401
        %p518 = pneg %p398
        %s519 = sand.u32 %s388, 1
        %s520 = scalar_lea.sflag [#allocation5], %s519
        %s521 = sand.u32 %s388, 1
        %s522 = smul.addr %s521, 32
        %s523 = scalar_lea.vmem [#allocation4], %s522
        %p524 = scmp.lt.s32.totalorder %s34, 1
        %s525 = scalar_select %p524, %s34, 1
        %s526 = smul.addr %s525, 8
        %s527 = scalar_lea.vmem %s0, %s526
        %v528 = vld [vmem:[%s527] sm:$0xff]
        %v529 = vlaneseq
        %v530 = vand.u32 %v529, 127
        %531 = vset.pattern.permute.xlu0 0
        %532 = vperm.xlu0 %531, %v528
        %v533 = vpop.permute.xlu0 %532
        %vm534 = vcmp.eq.s32.totalorder %v530, %v533
        %v535 = vsel %vm534, 1.0, 0.0
        %v536 = vld [vmem:[%s1] sm:$0xff]
        %v537 = vld [vmem:[%s1 + $0x8] sm:$0xff]
        %v538 = vld [vmem:[%s1 + $0x10] sm:$0xff]
        %v539 = vld [vmem:[%s1 + $0x18] sm:$0xff]
        %v540 = vld [vmem:[%s1 + $0x20] sm:$0xff]
        %v541 = vld [vmem:[%s1 + $0x28] sm:$0xff]
        %v542 = vld [vmem:[%s1 + $0x30] sm:$0x3]
        %v543 = vld [vmem:[%s2] sm:$0xff]
        %vm544 = vcmask 408576
        %v546 = vsel %vm544, %v535, 0
        %vm548 = vcmask 1041408
        %v550 = vsel %vm548, %v542, 0
        %552 = vmatprep.subr.mxu0 0.0
        %553 = vmatpush1.msra.mxu0 %v536
        %554 = vmatprep.subr.mxu0 0.0
        %555 = vmatpush1.msra.mxu0 %v537
        %556 = vmatprep.subr.mxu0 0.0
        %557 = vmatpush1.msra.mxu0 %v538
        %558 = vmatprep.subr.mxu0 0.0
        %559 = vmatpush1.msra.mxu0 %v539
        %560 = vmatprep.subr.mxu0 0.0
        %561 = vmatpush1.msra.mxu0 %v540
        %562 = vmatprep.subr.mxu0 0.0
        %563 = vmatpush1.msra.mxu0 %v541
        %564 = vmatprep.subr.mxu0 0.0
        %565 = vmatpush1.msra.mxu0 %v550
        %566 = vmatprep.subr.mxu0 0.0
        %567 = vmatpush1.msra.mxu0 0.0
        %568 = vmatprep.subr.mxu0 0.0
        %569 = vmatpush1.msra.mxu0 0.0
        %570 = vmatprep.subr.mxu0 0.0
        %571 = vmatpush1.msra.mxu0 0.0
        %572 = vmatprep.subr.mxu0 0.0
        %573 = vmatpush1.msra.mxu0 0.0
        %574 = vmatprep.subr.mxu0 0.0
        %575 = vmatpush1.msra.mxu0 0.0
        %576 = vmatprep.subr.mxu0 0.0
        %577 = vmatpush1.msra.mxu0 0.0
        %578 = vmatprep.subr.mxu0 0.0
        %579 = vmatpush1.msra.mxu0 0.0
        %580 = vmatprep.subr.mxu0 0.0
        %581 = vmatpush1.msra.mxu0 0.0
        %582 = vmatprep.subr.mxu0 0.0
        %583 = vmatpush1.msra.mxu0 0.0
        %584 = vmatprep.subr.mxu0 0.0
        %585 = vmatpush1.msra.mxu0 0.0
        %586 = vmatprep.subr.mxu0 0.0
        %587 = vmatpush1.msra.mxu0 0.0
        %588 = vmatprep.subr.mxu0 0.0
        %589 = vmatpush1.msra.mxu0 0.0
        %590 = vmatprep.subr.mxu0 0.0
        %591 = vmatpush1.msra.mxu0 0.0
        %592 = vmatprep.subr.mxu0 0.0
        %593 = vmatpush1.msra.mxu0 0.0
        %594 = vmatprep.subr.mxu0 0.0
        %595 = vmatpush1.msra.mxu0 0.0
        %596 = vmatprep.subr.mxu0 0.0
        %597 = vmatpush1.msra.mxu0 0.0
        %598 = vmatprep.subr.mxu0 0.0
        %599 = vmatpush1.msra.mxu0 0.0
        %600 = vmatprep.subr.mxu0 0.0
        %601 = vmatpush1.msra.mxu0 0.0
        %602 = vmatprep.subr.mxu0 0.0
        %603 = vmatpush1.msra.mxu0 0.0
        %604 = vmatprep.subr.mxu0 0.0
        %605 = vmatpush1.msra.mxu0 0.0
        %606 = vmatprep.subr.mxu0 0.0
        %607 = vmatpush1.msra.mxu0 0.0
        %608 = vmatprep.subr.mxu0 0.0
        %609 = vmatpush1.msra.mxu0 0.0
        %610 = vmatprep.subr.mxu0 0.0
        %611 = vmatpush1.msra.mxu0 0.0
        %612 = vmatprep.subr.mxu0 0.0
        %613 = vmatpush1.msra.mxu0 0.0
        %614 = vmatprep.subr.mxu0 0.0
        %615 = vmatpush1.msra.mxu0 0.0
        %616 = vmatprep.mubr.f32.mxu0 0.0
        %617 = vmatmul.mubr.f32.gmra.mrb[0].mxu0 %v546
        %v618 = vpop.f32.mrb[0].mxu0
        %v619 = vadd.f32 %v543, %v618
        %v620 = vpop.f32.mrb[0].mxu0
        %621 = vdwg.mxu0
        %v622 = vld [vmem:[%s3] sm:$0xff]
        %v623 = vld [vmem:[%s3 + $0x8] sm:$0xff]
        %v624 = vld [vmem:[%s3 + $0x10] sm:$0xff]
        %v625 = vld [vmem:[%s3 + $0x18] sm:$0xff]
        %v626 = vld [vmem:[%s3 + $0x20] sm:$0xff]
        %v627 = vld [vmem:[%s3 + $0x28] sm:$0xff]
        %v628 = vld [vmem:[%s3 + $0x30] sm:$0xff]
        %v629 = vld [vmem:[%s3 + $0x38] sm:$0xff]
        %v630 = vld [vmem:[%s3 + $0x40] sm:$0xff]
        %v631 = vld [vmem:[%s3 + $0x48] sm:$0xff]
        %v632 = vld [vmem:[%s3 + $0x50] sm:$0xff]
        %v633 = vld [vmem:[%s3 + $0x58] sm:$0xff]
        %v634 = vld [vmem:[%s3 + $0x60] sm:$0xff]
        %v635 = vld [vmem:[%s3 + $0x68] sm:$0xff]
        %v636 = vld [vmem:[%s3 + $0x70] sm:$0xff]
        %v637 = vld [vmem:[%s3 + $0x78] sm:$0xff]
        %v638 = vld [vmem:[%s3 + $0x80] sm:$0xff]
        %v639 = vld [vmem:[%s3 + $0x88] sm:$0xff]
        %v640 = vld [vmem:[%s3 + $0x90] sm:$0xff]
        %v641 = vld [vmem:[%s3 + $0x98] sm:$0xff]
        %v642 = vld [vmem:[%s3 + $0xa0] sm:$0xff]
        %v643 = vld [vmem:[%s3 + $0xa8] sm:$0xff]
        %v644 = vld [vmem:[%s3 + $0xb0] sm:$0xff]
        %v645 = vld [vmem:[%s3 + $0xb8] sm:$0xff]
        %v646 = vld [vmem:[%s3 + $0xc0] sm:$0xff]
        %v647 = vld [vmem:[%s3 + $0xc8] sm:$0xff]
        %v648 = vld [vmem:[%s3 + $0xd0] sm:$0xff]
        %v649 = vld [vmem:[%s3 + $0xd8] sm:$0xff]
        %v650 = vld [vmem:[%s3 + $0xe0] sm:$0xff]
        %v651 = vld [vmem:[%s3 + $0xe8] sm:$0xff]
        %v652 = vld [vmem:[%s3 + $0xf0] sm:$0xff]
        %v653 = vld [vmem:[%s3 + $0xf8] sm:$0xff]
        %v654 = vld [vmem:[%s3 + $0x100] sm:$0xff]
        %v655 = vld [vmem:[%s3 + $0x108] sm:$0xff]
        %v656 = vld [vmem:[%s3 + $0x110] sm:$0xff]
        %v657 = vld [vmem:[%s3 + $0x118] sm:$0xff]
        %v658 = vld [vmem:[%s3 + $0x120] sm:$0xff]
        %v659 = vld [vmem:[%s3 + $0x128] sm:$0xff]
        %v660 = vld [vmem:[%s3 + $0x130] sm:$0xff]
        %v661 = vld [vmem:[%s3 + $0x138] sm:$0xff]
        %v662 = vld [vmem:[%s3 + $0x140] sm:$0xff]
        %v663 = vld [vmem:[%s3 + $0x148] sm:$0xff]
        %v664 = vld [vmem:[%s3 + $0x150] sm:$0xff]
        %v665 = vld [vmem:[%s3 + $0x158] sm:$0xff]
        %v666 = vld [vmem:[%s3 + $0x160] sm:$0xff]
        %v667 = vld [vmem:[%s3 + $0x168] sm:$0xff]
        %v668 = vld [vmem:[%s3 + $0x170] sm:$0xff]
        %v669 = vld [vmem:[%s3 + $0x178] sm:$0xff]
        %v670 = vld [vmem:[%s4] sm:$0x1]
        %v671 = vld [vmem:[%s4 + $0x1] sm:$0x1]
        %v672 = vld [vmem:[%s4 + $0x2] sm:$0x1]
        %v673 = vld [vmem:[%s4 + $0x3] sm:$0x1]
        %v674 = vld [vmem:[%s4 + $0x4] sm:$0x1]
        %v675 = vld [vmem:[%s4 + $0x5] sm:$0x1]
        %v676 = vld [vmem:[%s4 + $0x6] sm:$0x1]
        %v677 = vld [vmem:[%s4 + $0x7] sm:$0x1]
        %v678 = vld [vmem:[%s4 + $0x8] sm:$0x1]
        %v679 = vld [vmem:[%s4 + $0x9] sm:$0x1]
        %v680 = vld [vmem:[%s4 + $0xa] sm:$0x1]
        %v681 = vld [vmem:[%s4 + $0xb] sm:$0x1]
        %v694 = vlaneseq
        %v695 = vshrl.u32 %v694, 7
        %v696 = vsub.s32 0, %v695
        %v697 = vrot.slane %v670, %v696
        %v698 = vlaneseq
        %v699 = vshrl.u32 %v698, 7
        %v700 = vsub.s32 0, %v699
        %v701 = vrot.slane %v671, %v700
        %v702 = vlaneseq
        %v703 = vshrl.u32 %v702, 7
        %v704 = vsub.s32 0, %v703
        %v705 = vrot.slane %v672, %v704
        %v706 = vlaneseq
        %v707 = vshrl.u32 %v706, 7
        %v708 = vsub.s32 0, %v707
        %v709 = vrot.slane %v673, %v708
        %v710 = vlaneseq
        %v711 = vshrl.u32 %v710, 7
        %v712 = vsub.s32 0, %v711
        %v713 = vrot.slane %v674, %v712
        %v714 = vlaneseq
        %v715 = vshrl.u32 %v714, 7
        %v716 = vsub.s32 0, %v715
        %v717 = vrot.slane %v675, %v716
        %v718 = vlaneseq
        %v719 = vshrl.u32 %v718, 7
        %v720 = vsub.s32 0, %v719
        %v721 = vrot.slane %v676, %v720
        %v722 = vlaneseq
        %v723 = vshrl.u32 %v722, 7
        %v724 = vsub.s32 0, %v723
        %v725 = vrot.slane %v677, %v724
        %v726 = vlaneseq
        %v727 = vshrl.u32 %v726, 7
        %v728 = vsub.s32 0, %v727
        %v729 = vrot.slane %v678, %v728
        %v730 = vlaneseq
        %v731 = vshrl.u32 %v730, 7
        %v732 = vsub.s32 0, %v731
        %v733 = vrot.slane %v679, %v732
        %v734 = vlaneseq
        %v735 = vshrl.u32 %v734, 7
        %v736 = vsub.s32 0, %v735
        %v737 = vrot.slane %v680, %v736
        %v738 = vlaneseq
        %v739 = vshrl.u32 %v738, 7
        %v740 = vsub.s32 0, %v739
        %v741 = vrot.slane %v681, %v740
        %vm754 = vcmask 261120
        %v756 = vsel %vm754, %v619, 0
        %758 = vmatprep.subr.mxu0 0.0
        %759 = vmatpush1.msra.mxu0 %v622
        %760 = vmatprep.subr.mxu0 0.0
        %761 = vmatpush1.msra.mxu0 %v623
        %762 = vmatprep.subr.mxu0 0.0
        %763 = vmatpush1.msra.mxu0 %v624
        %764 = vmatprep.subr.mxu0 0.0
        %765 = vmatpush1.msra.mxu0 %v625
        %766 = vmatprep.subr.mxu0 0.0
        %767 = vmatpush1.msra.mxu0 0.0
        %768 = vmatprep.subr.mxu0 0.0
        %769 = vmatpush1.msra.mxu0 0.0
        %770 = vmatprep.subr.mxu0 0.0
        %771 = vmatpush1.msra.mxu0 0.0
        %772 = vmatprep.subr.mxu0 0.0
        %773 = vmatpush1.msra.mxu0 0.0
        %774 = vmatprep.subr.mxu0 0.0
        %775 = vmatpush1.msra.mxu0 0.0
        %776 = vmatprep.subr.mxu0 0.0
        %777 = vmatpush1.msra.mxu0 0.0
        %778 = vmatprep.subr.mxu0 0.0
        %779 = vmatpush1.msra.mxu0 0.0
        %780 = vmatprep.subr.mxu0 0.0
        %781 = vmatpush1.msra.mxu0 0.0
        %782 = vmatprep.subr.mxu0 0.0
        %783 = vmatpush1.msra.mxu0 0.0
        %784 = vmatprep.subr.mxu0 0.0
        %785 = vmatpush1.msra.mxu0 0.0
        %786 = vmatprep.subr.mxu0 0.0
        %787 = vmatpush1.msra.mxu0 0.0
        %788 = vmatprep.subr.mxu0 0.0
        %789 = vmatpush1.msra.mxu0 0.0
        %790 = vmatprep.subr.mxu0 0.0
        %791 = vmatpush1.msra.mxu0 0.0
        %792 = vmatprep.subr.mxu0 0.0
        %793 = vmatpush1.msra.mxu0 0.0
        %794 = vmatprep.subr.mxu0 0.0
        %795 = vmatpush1.msra.mxu0 0.0
        %796 = vmatprep.subr.mxu0 0.0
        %797 = vmatpush1.msra.mxu0 0.0
        %798 = vmatprep.subr.mxu0 0.0
        %799 = vmatpush1.msra.mxu0 0.0
        %800 = vmatprep.subr.mxu0 0.0
        %801 = vmatpush1.msra.mxu0 0.0
        %802 = vmatprep.subr.mxu0 0.0
        %803 = vmatpush1.msra.mxu0 0.0
        %804 = vmatprep.subr.mxu0 0.0
        %805 = vmatpush1.msra.mxu0 0.0
        %806 = vmatprep.subr.mxu0 0.0
        %807 = vmatpush1.msra.mxu0 0.0
        %808 = vmatprep.subr.mxu0 0.0
        %809 = vmatpush1.msra.mxu0 0.0
        %810 = vmatprep.subr.mxu0 0.0
        %811 = vmatpush1.msra.mxu0 0.0
        %812 = vmatprep.subr.mxu0 0.0
        %813 = vmatpush1.msra.mxu0 0.0
        %814 = vmatprep.subr.mxu0 0.0
        %815 = vmatpush1.msra.mxu0 0.0
        %816 = vmatprep.subr.mxu0 0.0
        %817 = vmatpush1.msra.mxu0 0.0
        %818 = vmatprep.subr.mxu0 0.0
        %819 = vmatpush1.msra.mxu0 0.0
        %820 = vmatprep.subr.mxu0 0.0
        %821 = vmatpush1.msra.mxu0 0.0
        %822 = vmatprep.mubr.f32.mxu0 0.0
        %823 = vmatmul.mubr.f32.gmra.mrb[0].mxu0 %v756
        %v824 = vpop.f32.mrb[0].mxu0
        %v825 = vadd.f32 %v697, %v824
        %v826 = vpop.f32.mrb[0].mxu0
        %827 = vdwg.mxu0
        %828 = vmatprep.subr.mxu0 0.0
        %829 = vmatpush1.msra.mxu0 %v626
        %830 = vmatprep.subr.mxu0 0.0
        %831 = vmatpush1.msra.mxu0 %v627
        %832 = vmatprep.subr.mxu0 0.0
        %833 = vmatpush1.msra.mxu0 %v628
        %834 = vmatprep.subr.mxu0 0.0
        %835 = vmatpush1.msra.mxu0 %v629
        %836 = vmatprep.subr.mxu0 0.0
        %837 = vmatpush1.msra.mxu0 0.0
        %838 = vmatprep.subr.mxu0 0.0
        %839 = vmatpush1.msra.mxu0 0.0
        %840 = vmatprep.subr.mxu0 0.0
        %841 = vmatpush1.msra.mxu0 0.0
        %842 = vmatprep.subr.mxu0 0.0
        %843 = vmatpush1.msra.mxu0 0.0
        %844 = vmatprep.subr.mxu0 0.0
        %845 = vmatpush1.msra.mxu0 0.0
        %846 = vmatprep.subr.mxu0 0.0
        %847 = vmatpush1.msra.mxu0 0.0
        %848 = vmatprep.subr.mxu0 0.0
        %849 = vmatpush1.msra.mxu0 0.0
        %850 = vmatprep.subr.mxu0 0.0
        %851 = vmatpush1.msra.mxu0 0.0
        %852 = vmatprep.subr.mxu0 0.0
        %853 = vmatpush1.msra.mxu0 0.0
        %854 = vmatprep.subr.mxu0 0.0
        %855 = vmatpush1.msra.mxu0 0.0
        %856 = vmatprep.subr.mxu0 0.0
        %857 = vmatpush1.msra.mxu0 0.0
        %858 = vmatprep.subr.mxu0 0.0
        %859 = vmatpush1.msra.mxu0 0.0
        %860 = vmatprep.subr.mxu0 0.0
        %861 = vmatpush1.msra.mxu0 0.0
        %862 = vmatprep.subr.mxu0 0.0
        %863 = vmatpush1.msra.mxu0 0.0
        %864 = vmatprep.subr.mxu0 0.0
        %865 = vmatpush1.msra.mxu0 0.0
        %866 = vmatprep.subr.mxu0 0.0
        %867 = vmatpush1.msra.mxu0 0.0
        %868 = vmatprep.subr.mxu0 0.0
        %869 = vmatpush1.msra.mxu0 0.0
        %870 = vmatprep.subr.mxu0 0.0
        %871 = vmatpush1.msra.mxu0 0.0
        %872 = vmatprep.subr.mxu0 0.0
        %873 = vmatpush1.msra.mxu0 0.0
        %874 = vmatprep.subr.mxu0 0.0
        %875 = vmatpush1.msra.mxu0 0.0
        %876 = vmatprep.subr.mxu0 0.0
        %877 = vmatpush1.msra.mxu0 0.0
        %878 = vmatprep.subr.mxu0 0.0
        %879 = vmatpush1.msra.mxu0 0.0
        %880 = vmatprep.subr.mxu0 0.0
        %881 = vmatpush1.msra.mxu0 0.0
        %882 = vmatprep.subr.mxu0 0.0
        %883 = vmatpush1.msra.mxu0 0.0
        %884 = vmatprep.subr.mxu0 0.0
        %885 = vmatpush1.msra.mxu0 0.0
        %886 = vmatprep.subr.mxu0 0.0
        %887 = vmatpush1.msra.mxu0 0.0
        %888 = vmatprep.subr.mxu0 0.0
        %889 = vmatpush1.msra.mxu0 0.0
        %890 = vmatprep.subr.mxu0 0.0
        %891 = vmatpush1.msra.mxu0 0.0
        %892 = vmatprep.mubr.f32.mxu0 0.0
        %893 = vmatmul.mubr.f32.gmra.mrb[0].mxu0 %v756
        %v894 = vpop.f32.mrb[0].mxu0
        %v895 = vadd.f32 %v701, %v894
        %v896 = vpop.f32.mrb[0].mxu0
        %897 = vdwg.mxu0
        %898 = vmatprep.subr.mxu0 0.0
        %899 = vmatpush1.msra.mxu0 %v630
        %900 = vmatprep.subr.mxu0 0.0
        %901 = vmatpush1.msra.mxu0 %v631
        %902 = vmatprep.subr.mxu0 0.0
        %903 = vmatpush1.msra.mxu0 %v632
        %904 = vmatprep.subr.mxu0 0.0
        %905 = vmatpush1.msra.mxu0 %v633
        %906 = vmatprep.subr.mxu0 0.0
        %907 = vmatpush1.msra.mxu0 0.0
        %908 = vmatprep.subr.mxu0 0.0
        %909 = vmatpush1.msra.mxu0 0.0
        %910 = vmatprep.subr.mxu0 0.0
        %911 = vmatpush1.msra.mxu0 0.0
        %912 = vmatprep.subr.mxu0 0.0
        %913 = vmatpush1.msra.mxu0 0.0
        %914 = vmatprep.subr.mxu0 0.0
        %915 = vmatpush1.msra.mxu0 0.0
        %916 = vmatprep.subr.mxu0 0.0
        %917 = vmatpush1.msra.mxu0 0.0
        %918 = vmatprep.subr.mxu0 0.0
        %919 = vmatpush1.msra.mxu0 0.0
        %920 = vmatprep.subr.mxu0 0.0
        %921 = vmatpush1.msra.mxu0 0.0
        %922 = vmatprep.subr.mxu0 0.0
        %923 = vmatpush1.msra.mxu0 0.0
        %924 = vmatprep.subr.mxu0 0.0
        %925 = vmatpush1.msra.mxu0 0.0
        %926 = vmatprep.subr.mxu0 0.0
        %927 = vmatpush1.msra.mxu0 0.0
        %928 = vmatprep.subr.mxu0 0.0
        %929 = vmatpush1.msra.mxu0 0.0
        %930 = vmatprep.subr.mxu0 0.0
        %931 = vmatpush1.msra.mxu0 0.0
        %932 = vmatprep.subr.mxu0 0.0
        %933 = vmatpush1.msra.mxu0 0.0
        %934 = vmatprep.subr.mxu0 0.0
        %935 = vmatpush1.msra.mxu0 0.0
        %936 = vmatprep.subr.mxu0 0.0
        %937 = vmatpush1.msra.mxu0 0.0
        %938 = vmatprep.subr.mxu0 0.0
        %939 = vmatpush1.msra.mxu0 0.0
        %940 = vmatprep.subr.mxu0 0.0
        %941 = vmatpush1.msra.mxu0 0.0
        %942 = vmatprep.subr.mxu0 0.0
        %943 = vmatpush1.msra.mxu0 0.0
        %944 = vmatprep.subr.mxu0 0.0
        %945 = vmatpush1.msra.mxu0 0.0
        %946 = vmatprep.subr.mxu0 0.0
        %947 = vmatpush1.msra.mxu0 0.0
        %948 = vmatprep.subr.mxu0 0.0
        %949 = vmatpush1.msra.mxu0 0.0
        %950 = vmatprep.subr.mxu0 0.0
        %951 = vmatpush1.msra.mxu0 0.0
        %952 = vmatprep.subr.mxu0 0.0
        %953 = vmatpush1.msra.mxu0 0.0
        %954 = vmatprep.subr.mxu0 0.0
        %955 = vmatpush1.msra.mxu0 0.0
        %956 = vmatprep.subr.mxu0 0.0
        %957 = vmatpush1.msra.mxu0 0.0
        %958 = vmatprep.subr.mxu0 0.0
        %959 = vmatpush1.msra.mxu0 0.0
        %960 = vmatprep.subr.mxu0 0.0
        %961 = vmatpush1.msra.mxu0 0.0
        %962 = vmatprep.mubr.f32.mxu0 0.0
        %963 = vmatmul.mubr.f32.gmra.mrb[0].mxu0 %v756
        %v964 = vpop.f32.mrb[0].mxu0
        %v965 = vadd.f32 %v705, %v964
        %v966 = vpop.f32.mrb[0].mxu0
        %967 = vdwg.mxu0
        %968 = vmatprep.subr.mxu0 0.0
        %969 = vmatpush1.msra.mxu0 %v634
        %970 = vmatprep.subr.mxu0 0.0
        %971 = vmatpush1.msra.mxu0 %v635
        %972 = vmatprep.subr.mxu0 0.0
        %973 = vmatpush1.msra.mxu0 %v636
        %974 = vmatprep.subr.mxu0 0.0
        %975 = vmatpush1.msra.mxu0 %v637
        %976 = vmatprep.subr.mxu0 0.0
        %977 = vmatpush1.msra.mxu0 0.0
        %978 = vmatprep.subr.mxu0 0.0
        %979 = vmatpush1.msra.mxu0 0.0
        %980 = vmatprep.subr.mxu0 0.0
        %981 = vmatpush1.msra.mxu0 0.0
        %982 = vmatprep.subr.mxu0 0.0
        %983 = vmatpush1.msra.mxu0 0.0
        %984 = vmatprep.subr.mxu0 0.0
        %985 = vmatpush1.msra.mxu0 0.0
        %986 = vmatprep.subr.mxu0 0.0
        %987 = vmatpush1.msra.mxu0 0.0
        %988 = vmatprep.subr.mxu0 0.0
        %989 = vmatpush1.msra.mxu0 0.0
        %990 = vmatprep.subr.mxu0 0.0
        %991 = vmatpush1.msra.mxu0 0.0
        %992 = vmatprep.subr.mxu0 0.0
        %993 = vmatpush1.msra.mxu0 0.0
        %994 = vmatprep.subr.mxu0 0.0
        %995 = vmatpush1.msra.mxu0 0.0
        %996 = vmatprep.subr.mxu0 0.0
        %997 = vmatpush1.msra.mxu0 0.0
        %998 = vmatprep.subr.mxu0 0.0
        %999 = vmatpush1.msra.mxu0 0.0
        %1000 = vmatprep.subr.mxu0 0.0
        %1001 = vmatpush1.msra.mxu0 0.0
        %1002 = vmatprep.subr.mxu0 0.0
        %1003 = vmatpush1.msra.mxu0 0.0
        %1004 = vmatprep.subr.mxu0 0.0
        %1005 = vmatpush1.msra.mxu0 0.0
        %1006 = vmatprep.subr.mxu0 0.0
        %1007 = vmatpush1.msra.mxu0 0.0
        %1008 = vmatprep.subr.mxu0 0.0
        %1009 = vmatpush1.msra.mxu0 0.0
        %1010 = vmatprep.subr.mxu0 0.0
        %1011 = vmatpush1.msra.mxu0 0.0
        %1012 = vmatprep.subr.mxu0 0.0
        %1013 = vmatpush1.msra.mxu0 0.0
        %1014 = vmatprep.subr.mxu0 0.0
        %1015 = vmatpush1.msra.mxu0 0.0
        %1016 = vmatprep.subr.mxu0 0.0
        %1017 = vmatpush1.msra.mxu0 0.0
        %1018 = vmatprep.subr.mxu0 0.0
        %1019 = vmatpush1.msra.mxu0 0.0
        %1020 = vmatprep.subr.mxu0 0.0
        %1021 = vmatpush1.msra.mxu0 0.0
        %1022 = vmatprep.subr.mxu0 0.0
        %1023 = vmatpush1.msra.mxu0 0.0
        %1024 = vmatprep.subr.mxu0 0.0
        %1025 = vmatpush1.msra.mxu0 0.0
        %1026 = vmatprep.subr.mxu0 0.0
        %1027 = vmatpush1.msra.mxu0 0.0
        %1028 = vmatprep.subr.mxu0 0.0
        %1029 = vmatpush1.msra.mxu0 0.0
        %1030 = vmatprep.subr.mxu0 0.0
        %1031 = vmatpush1.msra.mxu0 0.0
        %1032 = vmatprep.mubr.f32.mxu0 0.0
        %1033 = vmatmul.mubr.f32.gmra.mrb[0].mxu0 %v756
        %v1034 = vpop.f32.mrb[0].mxu0
        %v1035 = vadd.f32 %v709, %v1034
        %v1036 = vpop.f32.mrb[0].mxu0
        %1037 = vdwg.mxu0
        %1038 = vmatprep.subr.mxu0 0.0
        %1039 = vmatpush1.msra.mxu0 %v638
        %1040 = vmatprep.subr.mxu0 0.0
        %1041 = vmatpush1.msra.mxu0 %v639
        %1042 = vmatprep.subr.mxu0 0.0
        %1043 = vmatpush1.msra.mxu0 %v640
        %1044 = vmatprep.subr.mxu0 0.0
        %1045 = vmatpush1.msra.mxu0 %v641
        %1046 = vmatprep.subr.mxu0 0.0
        %1047 = vmatpush1.msra.mxu0 0.0
        %1048 = vmatprep.subr.mxu0 0.0
        %1049 = vmatpush1.msra.mxu0 0.0
        %1050 = vmatprep.subr.mxu0 0.0
        %1051 = vmatpush1.msra.mxu0 0.0
        %1052 = vmatprep.subr.mxu0 0.0
        %1053 = vmatpush1.msra.mxu0 0.0
        %1054 = vmatprep.subr.mxu0 0.0
        %1055 = vmatpush1.msra.mxu0 0.0
        %1056 = vmatprep.subr.mxu0 0.0
        %1057 = vmatpush1.msra.mxu0 0.0
        %1058 = vmatprep.subr.mxu0 0.0
        %1059 = vmatpush1.msra.mxu0 0.0
        %1060 = vmatprep.subr.mxu0 0.0
        %1061 = vmatpush1.msra.mxu0 0.0
        %1062 = vmatprep.subr.mxu0 0.0
        %1063 = vmatpush1.msra.mxu0 0.0
        %1064 = vmatprep.subr.mxu0 0.0
        %1065 = vmatpush1.msra.mxu0 0.0
        %1066 = vmatprep.subr.mxu0 0.0
        %1067 = vmatpush1.msra.mxu0 0.0
        %1068 = vmatprep.subr.mxu0 0.0
        %1069 = vmatpush1.msra.mxu0 0.0
        %1070 = vmatprep.subr.mxu0 0.0
        %1071 = vmatpush1.msra.mxu0 0.0
        %1072 = vmatprep.subr.mxu0 0.0
        %1073 = vmatpush1.msra.mxu0 0.0
        %1074 = vmatprep.subr.mxu0 0.0
        %1075 = vmatpush1.msra.mxu0 0.0
        %1076 = vmatprep.subr.mxu0 0.0
        %1077 = vmatpush1.msra.mxu0 0.0
        %1078 = vmatprep.subr.mxu0 0.0
        %1079 = vmatpush1.msra.mxu0 0.0
        %1080 = vmatprep.subr.mxu0 0.0
        %1081 = vmatpush1.msra.mxu0 0.0
        %1082 = vmatprep.subr.mxu0 0.0
        %1083 = vmatpush1.msra.mxu0 0.0
        %1084 = vmatprep.subr.mxu0 0.0
        %1085 = vmatpush1.msra.mxu0 0.0
        %1086 = vmatprep.subr.mxu0 0.0
        %1087 = vmatpush1.msra.mxu0 0.0
        %1088 = vmatprep.subr.mxu0 0.0
        %1089 = vmatpush1.msra.mxu0 0.0
        %1090 = vmatprep.subr.mxu0 0.0
        %1091 = vmatpush1.msra.mxu0 0.0
        %1092 = vmatprep.subr.mxu0 0.0
        %1093 = vmatpush1.msra.mxu0 0.0
        %1094 = vmatprep.subr.mxu0 0.0
        %1095 = vmatpush1.msra.mxu0 0.0
        %1096 = vmatprep.subr.mxu0 0.0
        %1097 = vmatpush1.msra.mxu0 0.0
        %1098 = vmatprep.subr.mxu0 0.0
        %1099 = vmatpush1.msra.mxu0 0.0
        %1100 = vmatprep.subr.mxu0 0.0
        %1101 = vmatpush1.msra.mxu0 0.0
        %1102 = vmatprep.mubr.f32.mxu0 0.0
        %1103 = vmatmul.mubr.f32.gmra.mrb[0].mxu0 %v756
        %v1104 = vpop.f32.mrb[0].mxu0
        %v1105 = vadd.f32 %v713, %v1104
        %v1106 = vpop.f32.mrb[0].mxu0
        %1107 = vdwg.mxu0
        %1108 = vmatprep.subr.mxu0 0.0
        %1109 = vmatpush1.msra.mxu0 %v642
        %1110 = vmatprep.subr.mxu0 0.0
        %1111 = vmatpush1.msra.mxu0 %v643
        %1112 = vmatprep.subr.mxu0 0.0
        %1113 = vmatpush1.msra.mxu0 %v644
        %1114 = vmatprep.subr.mxu0 0.0
        %1115 = vmatpush1.msra.mxu0 %v645
        %1116 = vmatprep.subr.mxu0 0.0
        %1117 = vmatpush1.msra.mxu0 0.0
        %1118 = vmatprep.subr.mxu0 0.0
        %1119 = vmatpush1.msra.mxu0 0.0
        %1120 = vmatprep.subr.mxu0 0.0
        %1121 = vmatpush1.msra.mxu0 0.0
        %1122 = vmatprep.subr.mxu0 0.0
        %1123 = vmatpush1.msra.mxu0 0.0
        %1124 = vmatprep.subr.mxu0 0.0
        %1125 = vmatpush1.msra.mxu0 0.0
        %1126 = vmatprep.subr.mxu0 0.0
        %1127 = vmatpush1.msra.mxu0 0.0
        %1128 = vmatprep.subr.mxu0 0.0
        %1129 = vmatpush1.msra.mxu0 0.0
        %1130 = vmatprep.subr.mxu0 0.0
        %1131 = vmatpush1.msra.mxu0 0.0
        %1132 = vmatprep.subr.mxu0 0.0
        %1133 = vmatpush1.msra.mxu0 0.0
        %1134 = vmatprep.subr.mxu0 0.0
        %1135 = vmatpush1.msra.mxu0 0.0
        %1136 = vmatprep.subr.mxu0 0.0
        %1137 = vmatpush1.msra.mxu0 0.0
        %1138 = vmatprep.subr.mxu0 0.0
        %1139 = vmatpush1.msra.mxu0 0.0
        %1140 = vmatprep.subr.mxu0 0.0
        %1141 = vmatpush1.msra.mxu0 0.0
        %1142 = vmatprep.subr.mxu0 0.0
        %1143 = vmatpush1.msra.mxu0 0.0
        %1144 = vmatprep.subr.mxu0 0.0
        %1145 = vmatpush1.msra.mxu0 0.0
        %1146 = vmatprep.subr.mxu0 0.0
        %1147 = vmatpush1.msra.mxu0 0.0
        %1148 = vmatprep.subr.mxu0 0.0
        %1149 = vmatpush1.msra.mxu0 0.0
        %1150 = vmatprep.subr.mxu0 0.0
        %1151 = vmatpush1.msra.mxu0 0.0
        %1152 = vmatprep.subr.mxu0 0.0
        %1153 = vmatpush1.msra.mxu0 0.0
        %1154 = vmatprep.subr.mxu0 0.0
        %1155 = vmatpush1.msra.mxu0 0.0
        %1156 = vmatprep.subr.mxu0 0.0
        %1157 = vmatpush1.msra.mxu0 0.0
        %1158 = vmatprep.subr.mxu0 0.0
        %1159 = vmatpush1.msra.mxu0 0.0
        %1160 = vmatprep.subr.mxu0 0.0
        %1161 = vmatpush1.msra.mxu0 0.0
        %1162 = vmatprep.subr.mxu0 0.0
        %1163 = vmatpush1.msra.mxu0 0.0
        %1164 = vmatprep.subr.mxu0 0.0
        %1165 = vmatpush1.msra.mxu0 0.0
        %1166 = vmatprep.subr.mxu0 0.0
        %1167 = vmatpush1.msra.mxu0 0.0
        %1168 = vmatprep.subr.mxu0 0.0
        %1169 = vmatpush1.msra.mxu0 0.0
        %1170 = vmatprep.subr.mxu0 0.0
        %1171 = vmatpush1.msra.mxu0 0.0
        %1172 = vmatprep.mubr.f32.mxu0 0.0
        %1173 = vmatmul.mubr.f32.gmra.mrb[0].mxu0 %v756
        %v1174 = vpop.f32.mrb[0].mxu0
        %v1175 = vadd.f32 %v717, %v1174
        %v1176 = vpop.f32.mrb[0].mxu0
        %1177 = vdwg.mxu0
        %1178 = vmatprep.subr.mxu0 0.0
        %1179 = vmatpush1.msra.mxu0 %v646
        %1180 = vmatprep.subr.mxu0 0.0
        %1181 = vmatpush1.msra.mxu0 %v647
        %1182 = vmatprep.subr.mxu0 0.0
        %1183 = vmatpush1.msra.mxu0 %v648
        %1184 = vmatprep.subr.mxu0 0.0
        %1185 = vmatpush1.msra.mxu0 %v649
        %1186 = vmatprep.subr.mxu0 0.0
        %1187 = vmatpush1.msra.mxu0 0.0
        %1188 = vmatprep.subr.mxu0 0.0
        %1189 = vmatpush1.msra.mxu0 0.0
        %1190 = vmatprep.subr.mxu0 0.0
        %1191 = vmatpush1.msra.mxu0 0.0
        %1192 = vmatprep.subr.mxu0 0.0
        %1193 = vmatpush1.msra.mxu0 0.0
        %1194 = vmatprep.subr.mxu0 0.0
        %1195 = vmatpush1.msra.mxu0 0.0
        %1196 = vmatprep.subr.mxu0 0.0
        %1197 = vmatpush1.msra.mxu0 0.0
        %1198 = vmatprep.subr.mxu0 0.0
        %1199 = vmatpush1.msra.mxu0 0.0
        %1200 = vmatprep.subr.mxu0 0.0
        %1201 = vmatpush1.msra.mxu0 0.0
        %1202 = vmatprep.subr.mxu0 0.0
        %1203 = vmatpush1.msra.mxu0 0.0
        %1204 = vmatprep.subr.mxu0 0.0
        %1205 = vmatpush1.msra.mxu0 0.0
        %1206 = vmatprep.subr.mxu0 0.0
        %1207 = vmatpush1.msra.mxu0 0.0
        %1208 = vmatprep.subr.mxu0 0.0
        %1209 = vmatpush1.msra.mxu0 0.0
        %1210 = vmatprep.subr.mxu0 0.0
        %1211 = vmatpush1.msra.mxu0 0.0
        %1212 = vmatprep.subr.mxu0 0.0
        %1213 = vmatpush1.msra.mxu0 0.0
        %1214 = vmatprep.subr.mxu0 0.0
        %1215 = vmatpush1.msra.mxu0 0.0
        %1216 = vmatprep.subr.mxu0 0.0
        %1217 = vmatpush1.msra.mxu0 0.0
        %1218 = vmatprep.subr.mxu0 0.0
        %1219 = vmatpush1.msra.mxu0 0.0
        %1220 = vmatprep.subr.mxu0 0.0
        %1221 = vmatpush1.msra.mxu0 0.0
        %1222 = vmatprep.subr.mxu0 0.0
        %1223 = vmatpush1.msra.mxu0 0.0
        %1224 = vmatprep.subr.mxu0 0.0
        %1225 = vmatpush1.msra.mxu0 0.0
        %1226 = vmatprep.subr.mxu0 0.0
        %1227 = vmatpush1.msra.mxu0 0.0
        %1228 = vmatprep.subr.mxu0 0.0
        %1229 = vmatpush1.msra.mxu0 0.0
        %1230 = vmatprep.subr.mxu0 0.0
        %1231 = vmatpush1.msra.mxu0 0.0
        %1232 = vmatprep.subr.mxu0 0.0
        %1233 = vmatpush1.msra.mxu0 0.0
        %1234 = vmatprep.subr.mxu0 0.0
        %1235 = vmatpush1.msra.mxu0 0.0
        %1236 = vmatprep.subr.mxu0 0.0
        %1237 = vmatpush1.msra.mxu0 0.0
        %1238 = vmatprep.subr.mxu0 0.0
        %1239 = vmatpush1.msra.mxu0 0.0
        %1240 = vmatprep.subr.mxu0 0.0
        %1241 = vmatpush1.msra.mxu0 0.0
        %1242 = vmatprep.mubr.f32.mxu0 0.0
        %1243 = vmatmul.mubr.f32.gmra.mrb[0].mxu0 %v756
        %v1244 = vpop.f32.mrb[0].mxu0
        %v1245 = vadd.f32 %v721, %v1244
        %v1246 = vpop.f32.mrb[0].mxu0
        %1247 = vdwg.mxu0
        %1248 = vmatprep.subr.mxu0 0.0
        %1249 = vmatpush1.msra.mxu0 %v650
        %1250 = vmatprep.subr.mxu0 0.0
        %1251 = vmatpush1.msra.mxu0 %v651
        %1252 = vmatprep.subr.mxu0 0.0
        %1253 = vmatpush1.msra.mxu0 %v652
        %1254 = vmatprep.subr.mxu0 0.0
        %1255 = vmatpush1.msra.mxu0 %v653
        %1256 = vmatprep.subr.mxu0 0.0
        %1257 = vmatpush1.msra.mxu0 0.0
        %1258 = vmatprep.subr.mxu0 0.0
        %1259 = vmatpush1.msra.mxu0 0.0
        %1260 = vmatprep.subr.mxu0 0.0
        %1261 = vmatpush1.msra.mxu0 0.0
        %1262 = vmatprep.subr.mxu0 0.0
        %1263 = vmatpush1.msra.mxu0 0.0
        %1264 = vmatprep.subr.mxu0 0.0
        %1265 = vmatpush1.msra.mxu0 0.0
        %1266 = vmatprep.subr.mxu0 0.0
        %1267 = vmatpush1.msra.mxu0 0.0
        %1268 = vmatprep.subr.mxu0 0.0
        %1269 = vmatpush1.msra.mxu0 0.0
        %1270 = vmatprep.subr.mxu0 0.0
        %1271 = vmatpush1.msra.mxu0 0.0
        %1272 = vmatprep.subr.mxu0 0.0
        %1273 = vmatpush1.msra.mxu0 0.0
        %1274 = vmatprep.subr.mxu0 0.0
        %1275 = vmatpush1.msra.mxu0 0.0
        %1276 = vmatprep.subr.mxu0 0.0
        %1277 = vmatpush1.msra.mxu0 0.0
        %1278 = vmatprep.subr.mxu0 0.0
        %1279 = vmatpush1.msra.mxu0 0.0
        %1280 = vmatprep.subr.mxu0 0.0
        %1281 = vmatpush1.msra.mxu0 0.0
        %1282 = vmatprep.subr.mxu0 0.0
        %1283 = vmatpush1.msra.mxu0 0.0
        %1284 = vmatprep.subr.mxu0 0.0
        %1285 = vmatpush1.msra.mxu0 0.0
        %1286 = vmatprep.subr.mxu0 0.0
        %1287 = vmatpush1.msra.mxu0 0.0
        %1288 = vmatprep.subr.mxu0 0.0
        %1289 = vmatpush1.msra.mxu0 0.0
        %1290 = vmatprep.subr.mxu0 0.0
        %1291 = vmatpush1.msra.mxu0 0.0
        %1292 = vmatprep.subr.mxu0 0.0
        %1293 = vmatpush1.msra.mxu0 0.0
        %1294 = vmatprep.subr.mxu0 0.0
        %1295 = vmatpush1.msra.mxu0 0.0
        %1296 = vmatprep.subr.mxu0 0.0
        %1297 = vmatpush1.msra.mxu0 0.0
        %1298 = vmatprep.subr.mxu0 0.0
        %1299 = vmatpush1.msra.mxu0 0.0
        %1300 = vmatprep.subr.mxu0 0.0
        %1301 = vmatpush1.msra.mxu0 0.0
        %1302 = vmatprep.subr.mxu0 0.0
        %1303 = vmatpush1.msra.mxu0 0.0
        %1304 = vmatprep.subr.mxu0 0.0
        %1305 = vmatpush1.msra.mxu0 0.0
        %1306 = vmatprep.subr.mxu0 0.0
        %1307 = vmatpush1.msra.mxu0 0.0
        %1308 = vmatprep.subr.mxu0 0.0
        %1309 = vmatpush1.msra.mxu0 0.0
        %1310 = vmatprep.subr.mxu0 0.0
        %1311 = vmatpush1.msra.mxu0 0.0
        %1312 = vmatprep.mubr.f32.mxu0 0.0
        %1313 = vmatmul.mubr.f32.gmra.mrb[0].mxu0 %v756
        %v1314 = vpop.f32.mrb[0].mxu0
        %v1315 = vadd.f32 %v725, %v1314
        %v1316 = vpop.f32.mrb[0].mxu0
        %1317 = vdwg.mxu0
        %1318 = vmatprep.subr.mxu0 0.0
        %1319 = vmatpush1.msra.mxu0 %v654
        %1320 = vmatprep.subr.mxu0 0.0
        %1321 = vmatpush1.msra.mxu0 %v655
        %1322 = vmatprep.subr.mxu0 0.0
        %1323 = vmatpush1.msra.mxu0 %v656
        %1324 = vmatprep.subr.mxu0 0.0
        %1325 = vmatpush1.msra.mxu0 %v657
        %1326 = vmatprep.subr.mxu0 0.0
        %1327 = vmatpush1.msra.mxu0 0.0
        %1328 = vmatprep.subr.mxu0 0.0
        %1329 = vmatpush1.msra.mxu0 0.0
        %1330 = vmatprep.subr.mxu0 0.0
        %1331 = vmatpush1.msra.mxu0 0.0
        %1332 = vmatprep.subr.mxu0 0.0
        %1333 = vmatpush1.msra.mxu0 0.0
        %1334 = vmatprep.subr.mxu0 0.0
        %1335 = vmatpush1.msra.mxu0 0.0
        %1336 = vmatprep.subr.mxu0 0.0
        %1337 = vmatpush1.msra.mxu0 0.0
        %1338 = vmatprep.subr.mxu0 0.0
        %1339 = vmatpush1.msra.mxu0 0.0
        %1340 = vmatprep.subr.mxu0 0.0
        %1341 = vmatpush1.msra.mxu0 0.0
        %1342 = vmatprep.subr.mxu0 0.0
        %1343 = vmatpush1.msra.mxu0 0.0
        %1344 = vmatprep.subr.mxu0 0.0
        %1345 = vmatpush1.msra.mxu0 0.0
        %1346 = vmatprep.subr.mxu0 0.0
        %1347 = vmatpush1.msra.mxu0 0.0
        %1348 = vmatprep.subr.mxu0 0.0
        %1349 = vmatpush1.msra.mxu0 0.0
        %1350 = vmatprep.subr.mxu0 0.0
        %1351 = vmatpush1.msra.mxu0 0.0
        %1352 = vmatprep.subr.mxu0 0.0
        %1353 = vmatpush1.msra.mxu0 0.0
        %1354 = vmatprep.subr.mxu0 0.0
        %1355 = vmatpush1.msra.mxu0 0.0
        %1356 = vmatprep.subr.mxu0 0.0
        %1357 = vmatpush1.msra.mxu0 0.0
        %1358 = vmatprep.subr.mxu0 0.0
        %1359 = vmatpush1.msra.mxu0 0.0
        %1360 = vmatprep.subr.mxu0 0.0
        %1361 = vmatpush1.msra.mxu0 0.0
        %1362 = vmatprep.subr.mxu0 0.0
        %1363 = vmatpush1.msra.mxu0 0.0
        %1364 = vmatprep.subr.mxu0 0.0
        %1365 = vmatpush1.msra.mxu0 0.0
        %1366 = vmatprep.subr.mxu0 0.0
        %1367 = vmatpush1.msra.mxu0 0.0
        %1368 = vmatprep.subr.mxu0 0.0
        %1369 = vmatpush1.msra.mxu0 0.0
        %1370 = vmatprep.subr.mxu0 0.0
        %1371 = vmatpush1.msra.mxu0 0.0
        %1372 = vmatprep.subr.mxu0 0.0
        %1373 = vmatpush1.msra.mxu0 0.0
        %1374 = vmatprep.subr.mxu0 0.0
        %1375 = vmatpush1.msra.mxu0 0.0
        %1376 = vmatprep.subr.mxu0 0.0
        %1377 = vmatpush1.msra.mxu0 0.0
        %1378 = vmatprep.subr.mxu0 0.0
        %1379 = vmatpush1.msra.mxu0 0.0
        %1380 = vmatprep.subr.mxu0 0.0
        %1381 = vmatpush1.msra.mxu0 0.0
        %1382 = vmatprep.mubr.f32.mxu0 0.0
        %1383 = vmatmul.mubr.f32.gmra.mrb[0].mxu0 %v756
        %v1384 = vpop.f32.mrb[0].mxu0
        %v1385 = vadd.f32 %v729, %v1384
        %v1386 = vpop.f32.mrb[0].mxu0
        %1387 = vdwg.mxu0
        %1388 = vmatprep.subr.mxu0 0.0
        %1389 = vmatpush1.msra.mxu0 %v658
        %1390 = vmatprep.subr.mxu0 0.0
        %1391 = vmatpush1.msra.mxu0 %v659
        %1392 = vmatprep.subr.mxu0 0.0
        %1393 = vmatpush1.msra.mxu0 %v660
        %1394 = vmatprep.subr.mxu0 0.0
        %1395 = vmatpush1.msra.mxu0 %v661
        %1396 = vmatprep.subr.mxu0 0.0
        %1397 = vmatpush1.msra.mxu0 0.0
        %1398 = vmatprep.subr.mxu0 0.0
        %1399 = vmatpush1.msra.mxu0 0.0
        %1400 = vmatprep.subr.mxu0 0.0
        %1401 = vmatpush1.msra.mxu0 0.0
        %1402 = vmatprep.subr.mxu0 0.0
        %1403 = vmatpush1.msra.mxu0 0.0
        %1404 = vmatprep.subr.mxu0 0.0
        %1405 = vmatpush1.msra.mxu0 0.0
        %1406 = vmatprep.subr.mxu0 0.0
        %1407 = vmatpush1.msra.mxu0 0.0
        %1408 = vmatprep.subr.mxu0 0.0
        %1409 = vmatpush1.msra.mxu0 0.0
        %1410 = vmatprep.subr.mxu0 0.0
        %1411 = vmatpush1.msra.mxu0 0.0
        %1412 = vmatprep.subr.mxu0 0.0
        %1413 = vmatpush1.msra.mxu0 0.0
        %1414 = vmatprep.subr.mxu0 0.0
        %1415 = vmatpush1.msra.mxu0 0.0
        %1416 = vmatprep.subr.mxu0 0.0
        %1417 = vmatpush1.msra.mxu0 0.0
        %1418 = vmatprep.subr.mxu0 0.0
        %1419 = vmatpush1.msra.mxu0 0.0
        %1420 = vmatprep.subr.mxu0 0.0
        %1421 = vmatpush1.msra.mxu0 0.0
        %1422 = vmatprep.subr.mxu0 0.0
        %1423 = vmatpush1.msra.mxu0 0.0
        %1424 = vmatprep.subr.mxu0 0.0
        %1425 = vmatpush1.msra.mxu0 0.0
        %1426 = vmatprep.subr.mxu0 0.0
        %1427 = vmatpush1.msra.mxu0 0.0
        %1428 = vmatprep.subr.mxu0 0.0
        %1429 = vmatpush1.msra.mxu0 0.0
        %1430 = vmatprep.subr.mxu0 0.0
        %1431 = vmatpush1.msra.mxu0 0.0
        %1432 = vmatprep.subr.mxu0 0.0
        %1433 = vmatpush1.msra.mxu0 0.0
        %1434 = vmatprep.subr.mxu0 0.0
        %1435 = vmatpush1.msra.mxu0 0.0
        %1436 = vmatprep.subr.mxu0 0.0
        %1437 = vmatpush1.msra.mxu0 0.0
        %1438 = vmatprep.subr.mxu0 0.0
        %1439 = vmatpush1.msra.mxu0 0.0
        %1440 = vmatprep.subr.mxu0 0.0
        %1441 = vmatpush1.msra.mxu0 0.0
        %1442 = vmatprep.subr.mxu0 0.0
        %1443 = vmatpush1.msra.mxu0 0.0
        %1444 = vmatprep.subr.mxu0 0.0
        %1445 = vmatpush1.msra.mxu0 0.0
        %1446 = vmatprep.subr.mxu0 0.0
        %1447 = vmatpush1.msra.mxu0 0.0
        %1448 = vmatprep.subr.mxu0 0.0
        %1449 = vmatpush1.msra.mxu0 0.0
        %1450 = vmatprep.subr.mxu0 0.0
        %1451 = vmatpush1.msra.mxu0 0.0
        %1452 = vmatprep.mubr.f32.mxu0 0.0
        %1453 = vmatmul.mubr.f32.gmra.mrb[0].mxu0 %v756
        %v1454 = vpop.f32.mrb[0].mxu0
        %v1455 = vadd.f32 %v733, %v1454
        %v1456 = vpop.f32.mrb[0].mxu0
        %1457 = vdwg.mxu0
        %1458 = vmatprep.subr.mxu0 0.0
        %1459 = vmatpush1.msra.mxu0 %v662
        %1460 = vmatprep.subr.mxu0 0.0
        %1461 = vmatpush1.msra.mxu0 %v663
        %1462 = vmatprep.subr.mxu0 0.0
        %1463 = vmatpush1.msra.mxu0 %v664
        %1464 = vmatprep.subr.mxu0 0.0
        %1465 = vmatpush1.msra.mxu0 %v665
        %1466 = vmatprep.subr.mxu0 0.0
        %1467 = vmatpush1.msra.mxu0 0.0
        %1468 = vmatprep.subr.mxu0 0.0
        %1469 = vmatpush1.msra.mxu0 0.0
        %1470 = vmatprep.subr.mxu0 0.0
        %1471 = vmatpush1.msra.mxu0 0.0
        %1472 = vmatprep.subr.mxu0 0.0
        %1473 = vmatpush1.msra.mxu0 0.0
        %1474 = vmatprep.subr.mxu0 0.0
        %1475 = vmatpush1.msra.mxu0 0.0
        %1476 = vmatprep.subr.mxu0 0.0
        %1477 = vmatpush1.msra.mxu0 0.0
        %1478 = vmatprep.subr.mxu0 0.0
        %1479 = vmatpush1.msra.mxu0 0.0
        %1480 = vmatprep.subr.mxu0 0.0
        %1481 = vmatpush1.msra.mxu0 0.0
        %1482 = vmatprep.subr.mxu0 0.0
        %1483 = vmatpush1.msra.mxu0 0.0
        %1484 = vmatprep.subr.mxu0 0.0
        %1485 = vmatpush1.msra.mxu0 0.0
        %1486 = vmatprep.subr.mxu0 0.0
        %1487 = vmatpush1.msra.mxu0 0.0
        %1488 = vmatprep.subr.mxu0 0.0
        %1489 = vmatpush1.msra.mxu0 0.0
        %1490 = vmatprep.subr.mxu0 0.0
        %1491 = vmatpush1.msra.mxu0 0.0
        %1492 = vmatprep.subr.mxu0 0.0
        %1493 = vmatpush1.msra.mxu0 0.0
        %1494 = vmatprep.subr.mxu0 0.0
        %1495 = vmatpush1.msra.mxu0 0.0
        %1496 = vmatprep.subr.mxu0 0.0
        %1497 = vmatpush1.msra.mxu0 0.0
        %1498 = vmatprep.subr.mxu0 0.0
        %1499 = vmatpush1.msra.mxu0 0.0
        %1500 = vmatprep.subr.mxu0 0.0
        %1501 = vmatpush1.msra.mxu0 0.0
        %1502 = vmatprep.subr.mxu0 0.0
        %1503 = vmatpush1.msra.mxu0 0.0
        %1504 = vmatprep.subr.mxu0 0.0
        %1505 = vmatpush1.msra.mxu0 0.0
        %1506 = vmatprep.subr.mxu0 0.0
        %1507 = vmatpush1.msra.mxu0 0.0
        %1508 = vmatprep.subr.mxu0 0.0
        %1509 = vmatpush1.msra.mxu0 0.0
        %1510 = vmatprep.subr.mxu0 0.0
        %1511 = vmatpush1.msra.mxu0 0.0
        %1512 = vmatprep.subr.mxu0 0.0
        %1513 = vmatpush1.msra.mxu0 0.0
        %1514 = vmatprep.subr.mxu0 0.0
        %1515 = vmatpush1.msra.mxu0 0.0
        %1516 = vmatprep.subr.mxu0 0.0
        %1517 = vmatpush1.msra.mxu0 0.0
        %1518 = vmatprep.subr.mxu0 0.0
        %1519 = vmatpush1.msra.mxu0 0.0
        %1520 = vmatprep.subr.mxu0 0.0
        %1521 = vmatpush1.msra.mxu0 0.0
        %1522 = vmatprep.mubr.f32.mxu0 0.0
        %1523 = vmatmul.mubr.f32.gmra.mrb[0].mxu0 %v756
        %v1524 = vpop.f32.mrb[0].mxu0
        %v1525 = vadd.f32 %v737, %v1524
        %v1526 = vpop.f32.mrb[0].mxu0
        %1527 = vdwg.mxu0
        %1528 = vmatprep.subr.mxu0 0.0
        %1529 = vmatpush1.msra.mxu0 %v666
        %1530 = vmatprep.subr.mxu0 0.0
        %1531 = vmatpush1.msra.mxu0 %v667
        %1532 = vmatprep.subr.mxu0 0.0
        %1533 = vmatpush1.msra.mxu0 %v668
        %1534 = vmatprep.subr.mxu0 0.0
        %1535 = vmatpush1.msra.mxu0 %v669
        %1536 = vmatprep.subr.mxu0 0.0
        %1537 = vmatpush1.msra.mxu0 0.0
        %1538 = vmatprep.subr.mxu0 0.0
        %1539 = vmatpush1.msra.mxu0 0.0
        %1540 = vmatprep.subr.mxu0 0.0
        %1541 = vmatpush1.msra.mxu0 0.0
        %1542 = vmatprep.subr.mxu0 0.0
        %1543 = vmatpush1.msra.mxu0 0.0
        %1544 = vmatprep.subr.mxu0 0.0
        %1545 = vmatpush1.msra.mxu0 0.0
        %1546 = vmatprep.subr.mxu0 0.0
        %1547 = vmatpush1.msra.mxu0 0.0
        %1548 = vmatprep.subr.mxu0 0.0
        %1549 = vmatpush1.msra.mxu0 0.0
        %1550 = vmatprep.subr.mxu0 0.0
        %1551 = vmatpush1.msra.mxu0 0.0
        %1552 = vmatprep.subr.mxu0 0.0
        %1553 = vmatpush1.msra.mxu0 0.0
        %1554 = vmatprep.subr.mxu0 0.0
        %1555 = vmatpush1.msra.mxu0 0.0
        %1556 = vmatprep.subr.mxu0 0.0
        %1557 = vmatpush1.msra.mxu0 0.0
        %1558 = vmatprep.subr.mxu0 0.0
        %1559 = vmatpush1.msra.mxu0 0.0
        %1560 = vmatprep.subr.mxu0 0.0
        %1561 = vmatpush1.msra.mxu0 0.0
        %1562 = vmatprep.subr.mxu0 0.0
        %1563 = vmatpush1.msra.mxu0 0.0
        %1564 = vmatprep.subr.mxu0 0.0
        %1565 = vmatpush1.msra.mxu0 0.0
        %1566 = vmatprep.subr.mxu0 0.0
        %1567 = vmatpush1.msra.mxu0 0.0
        %1568 = vmatprep.subr.mxu0 0.0
        %1569 = vmatpush1.msra.mxu0 0.0
        %1570 = vmatprep.subr.mxu0 0.0
        %1571 = vmatpush1.msra.mxu0 0.0
        %1572 = vmatprep.subr.mxu0 0.0
        %1573 = vmatpush1.msra.mxu0 0.0
        %1574 = vmatprep.subr.mxu0 0.0
        %1575 = vmatpush1.msra.mxu0 0.0
        %1576 = vmatprep.subr.mxu0 0.0
        %1577 = vmatpush1.msra.mxu0 0.0
        %1578 = vmatprep.subr.mxu0 0.0
        %1579 = vmatpush1.msra.mxu0 0.0
        %1580 = vmatprep.subr.mxu0 0.0
        %1581 = vmatpush1.msra.mxu0 0.0
        %1582 = vmatprep.subr.mxu0 0.0
        %1583 = vmatpush1.msra.mxu0 0.0
        %1584 = vmatprep.subr.mxu0 0.0
        %1585 = vmatpush1.msra.mxu0 0.0
        %1586 = vmatprep.subr.mxu0 0.0
        %1587 = vmatpush1.msra.mxu0 0.0
        %1588 = vmatprep.subr.mxu0 0.0
        %1589 = vmatpush1.msra.mxu0 0.0
        %1590 = vmatprep.subr.mxu0 0.0
        %1591 = vmatpush1.msra.mxu0 0.0
        %1592 = vmatprep.mubr.f32.mxu0 0.0
        %1593 = vmatmul.mubr.f32.gmra.mrb[0].mxu0 %v756
        %v1594 = vpop.f32.mrb[0].mxu0
        %v1595 = vadd.f32 %v741, %v1594
        %v1596 = vpop.f32.mrb[0].mxu0
        %1597 = vdwg.mxu0
        %vm1598 = vcmask 64512
        %v1600 = vsel %vm1598, %v825, 0
        %v1603 = vsel %vm1598, %v1105, 0
        %1605 = vmatprep.subr.mxu0 0.0
        %1606 = vmatpush1.xpose.msra.mxu0 %v1603
        %1607 = vmatprep.subr.mxu0 0.0
        %1608 = vmatpush1.xpose.msra.mxu0 0.0
        %1609 = vmatprep.subr.mxu0 0.0
        %1610 = vmatpush1.xpose.msra.mxu0 0.0
        %1611 = vmatprep.subr.mxu0 0.0
        %1612 = vmatpush1.xpose.msra.mxu0 0.0
        %1613 = vmatprep.subr.mxu0 0.0
        %1614 = vmatpush1.xpose.msra.mxu0 0.0
        %1615 = vmatprep.subr.mxu0 0.0
        %1616 = vmatpush1.xpose.msra.mxu0 0.0
        %1617 = vmatprep.subr.mxu0 0.0
        %1618 = vmatpush1.xpose.msra.mxu0 0.0
        %1619 = vmatprep.subr.mxu0 0.0
        %1620 = vmatpush1.xpose.msra.mxu0 0.0
        %1621 = vmatprep.subr.mxu0 0.0
        %1622 = vmatpush1.xpose.msra.mxu0 0.0
        %1623 = vmatprep.subr.mxu0 0.0
        %1624 = vmatpush1.xpose.msra.mxu0 0.0
        %1625 = vmatprep.subr.mxu0 0.0
        %1626 = vmatpush1.xpose.msra.mxu0 0.0
        %1627 = vmatprep.subr.mxu0 0.0
        %1628 = vmatpush1.xpose.msra.mxu0 0.0
        %1629 = vmatprep.subr.mxu0 0.0
        %1630 = vmatpush1.xpose.msra.mxu0 0.0
        %1631 = vmatprep.subr.mxu0 0.0
        %1632 = vmatpush1.xpose.msra.mxu0 0.0
        %1633 = vmatprep.subr.mxu0 0.0
        %1634 = vmatpush1.xpose.msra.mxu0 0.0
        %1635 = vmatprep.subr.mxu0 0.0
        %1636 = vmatpush1.xpose.msra.mxu0 0.0
        %1637 = vmatprep.subr.mxu0 0.0
        %1638 = vmatpush1.xpose.msra.mxu0 0.0
        %1639 = vmatprep.subr.mxu0 0.0
        %1640 = vmatpush1.xpose.msra.mxu0 0.0
        %1641 = vmatprep.subr.mxu0 0.0
        %1642 = vmatpush1.xpose.msra.mxu0 0.0
        %1643 = vmatprep.subr.mxu0 0.0
        %1644 = vmatpush1.xpose.msra.mxu0 0.0
        %1645 = vmatprep.subr.mxu0 0.0
        %1646 = vmatpush1.xpose.msra.mxu0 0.0
        %1647 = vmatprep.subr.mxu0 0.0
        %1648 = vmatpush1.xpose.msra.mxu0 0.0
        %1649 = vmatprep.subr.mxu0 0.0
        %1650 = vmatpush1.xpose.msra.mxu0 0.0
        %1651 = vmatprep.subr.mxu0 0.0
        %1652 = vmatpush1.xpose.msra.mxu0 0.0
        %1653 = vmatprep.subr.mxu0 0.0
        %1654 = vmatpush1.xpose.msra.mxu0 0.0
        %1655 = vmatprep.subr.mxu0 0.0
        %1656 = vmatpush1.xpose.msra.mxu0 0.0
        %1657 = vmatprep.subr.mxu0 0.0
        %1658 = vmatpush1.xpose.msra.mxu0 0.0
        %1659 = vmatprep.subr.mxu0 0.0
        %1660 = vmatpush1.xpose.msra.mxu0 0.0
        %1661 = vmatprep.subr.mxu0 0.0
        %1662 = vmatpush1.xpose.msra.mxu0 0.0
        %1663 = vmatprep.subr.mxu0 0.0
        %1664 = vmatpush1.xpose.msra.mxu0 0.0
        %1665 = vmatprep.subr.mxu0 0.0
        %1666 = vmatpush1.xpose.msra.mxu0 0.0
        %1667 = vmatprep.subr.mxu0 0.0
        %1668 = vmatpush1.xpose.msra.mxu0 0.0
        %1669 = vmatprep.mubr.f32.mxu0 0.0
        %1670 = vmatmul.mubr.f32.gmra.mrb[0].mxu0 %v1600
        %v1671 = vpop.f32.mrb[0].mxu0
        %v1672 = vadd.f32 0.0, %v1671
        %v1673 = vpop.f32.mrb[0].mxu0
        %1674 = vdwg.mxu0
        %v1676 = vsel %vm1598, %v895, 0
        %v1679 = vsel %vm1598, %v1175, 0
        %1681 = vmatprep.subr.mxu0 0.0
        %1682 = vmatpush1.xpose.msra.mxu0 %v1679
        %1683 = vmatprep.subr.mxu0 0.0
        %1684 = vmatpush1.xpose.msra.mxu0 0.0
        %1685 = vmatprep.subr.mxu0 0.0
        %1686 = vmatpush1.xpose.msra.mxu0 0.0
        %1687 = vmatprep.subr.mxu0 0.0
        %1688 = vmatpush1.xpose.msra.mxu0 0.0
        %1689 = vmatprep.subr.mxu0 0.0
        %1690 = vmatpush1.xpose.msra.mxu0 0.0
        %1691 = vmatprep.subr.mxu0 0.0
        %1692 = vmatpush1.xpose.msra.mxu0 0.0
        %1693 = vmatprep.subr.mxu0 0.0
        %1694 = vmatpush1.xpose.msra.mxu0 0.0
        %1695 = vmatprep.subr.mxu0 0.0
        %1696 = vmatpush1.xpose.msra.mxu0 0.0
        %1697 = vmatprep.subr.mxu0 0.0
        %1698 = vmatpush1.xpose.msra.mxu0 0.0
        %1699 = vmatprep.subr.mxu0 0.0
        %1700 = vmatpush1.xpose.msra.mxu0 0.0
        %1701 = vmatprep.subr.mxu0 0.0
        %1702 = vmatpush1.xpose.msra.mxu0 0.0
        %1703 = vmatprep.subr.mxu0 0.0
        %1704 = vmatpush1.xpose.msra.mxu0 0.0
        %1705 = vmatprep.subr.mxu0 0.0
        %1706 = vmatpush1.xpose.msra.mxu0 0.0
        %1707 = vmatprep.subr.mxu0 0.0
        %1708 = vmatpush1.xpose.msra.mxu0 0.0
        %1709 = vmatprep.subr.mxu0 0.0
        %1710 = vmatpush1.xpose.msra.mxu0 0.0
        %1711 = vmatprep.subr.mxu0 0.0
        %1712 = vmatpush1.xpose.msra.mxu0 0.0
        %1713 = vmatprep.subr.mxu0 0.0
        %1714 = vmatpush1.xpose.msra.mxu0 0.0
        %1715 = vmatprep.subr.mxu0 0.0
        %1716 = vmatpush1.xpose.msra.mxu0 0.0
        %1717 = vmatprep.subr.mxu0 0.0
        %1718 = vmatpush1.xpose.msra.mxu0 0.0
        %1719 = vmatprep.subr.mxu0 0.0
        %1720 = vmatpush1.xpose.msra.mxu0 0.0
        %1721 = vmatprep.subr.mxu0 0.0
        %1722 = vmatpush1.xpose.msra.mxu0 0.0
        %1723 = vmatprep.subr.mxu0 0.0
        %1724 = vmatpush1.xpose.msra.mxu0 0.0
        %1725 = vmatprep.subr.mxu0 0.0
        %1726 = vmatpush1.xpose.msra.mxu0 0.0
        %1727 = vmatprep.subr.mxu0 0.0
        %1728 = vmatpush1.xpose.msra.mxu0 0.0
        %1729 = vmatprep.subr.mxu0 0.0
        %1730 = vmatpush1.xpose.msra.mxu0 0.0
        %1731 = vmatprep.subr.mxu0 0.0
        %1732 = vmatpush1.xpose.msra.mxu0 0.0
        %1733 = vmatprep.subr.mxu0 0.0
        %1734 = vmatpush1.xpose.msra.mxu0 0.0
        %1735 = vmatprep.subr.mxu0 0.0
        %1736 = vmatpush1.xpose.msra.mxu0 0.0
        %1737 = vmatprep.subr.mxu0 0.0
        %1738 = vmatpush1.xpose.msra.mxu0 0.0
        %1739 = vmatprep.subr.mxu0 0.0
        %1740 = vmatpush1.xpose.msra.mxu0 0.0
        %1741 = vmatprep.subr.mxu0 0.0
        %1742 = vmatpush1.xpose.msra.mxu0 0.0
        %1743 = vmatprep.subr.mxu0 0.0
        %1744 = vmatpush1.xpose.msra.mxu0 0.0
        %1745 = vmatprep.mubr.f32.mxu0 0.0
        %1746 = vmatmul.mubr.f32.gmra.mrb[0].mxu0 %v1676
        %v1747 = vpop.f32.mrb[0].mxu0
        %v1748 = vadd.f32 0.0, %v1747
        %v1749 = vpop.f32.mrb[0].mxu0
        %1750 = vdwg.mxu0
        %v1752 = vsel %vm1598, %v965, 0
        %v1755 = vsel %vm1598, %v1245, 0
        %1757 = vmatprep.subr.mxu0 0.0
        %1758 = vmatpush1.xpose.msra.mxu0 %v1755
        %1759 = vmatprep.subr.mxu0 0.0
        %1760 = vmatpush1.xpose.msra.mxu0 0.0
        %1761 = vmatprep.subr.mxu0 0.0
        %1762 = vmatpush1.xpose.msra.mxu0 0.0
        %1763 = vmatprep.subr.mxu0 0.0
        %1764 = vmatpush1.xpose.msra.mxu0 0.0
        %1765 = vmatprep.subr.mxu0 0.0
        %1766 = vmatpush1.xpose.msra.mxu0 0.0
        %1767 = vmatprep.subr.mxu0 0.0
        %1768 = vmatpush1.xpose.msra.mxu0 0.0
        %1769 = vmatprep.subr.mxu0 0.0
        %1770 = vmatpush1.xpose.msra.mxu0 0.0
        %1771 = vmatprep.subr.mxu0 0.0
        %1772 = vmatpush1.xpose.msra.mxu0 0.0
        %1773 = vmatprep.subr.mxu0 0.0
        %1774 = vmatpush1.xpose.msra.mxu0 0.0
        %1775 = vmatprep.subr.mxu0 0.0
        %1776 = vmatpush1.xpose.msra.mxu0 0.0
        %1777 = vmatprep.subr.mxu0 0.0
        %1778 = vmatpush1.xpose.msra.mxu0 0.0
        %1779 = vmatprep.subr.mxu0 0.0
        %1780 = vmatpush1.xpose.msra.mxu0 0.0
        %1781 = vmatprep.subr.mxu0 0.0
        %1782 = vmatpush1.xpose.msra.mxu0 0.0
        %1783 = vmatprep.subr.mxu0 0.0
        %1784 = vmatpush1.xpose.msra.mxu0 0.0
        %1785 = vmatprep.subr.mxu0 0.0
        %1786 = vmatpush1.xpose.msra.mxu0 0.0
        %1787 = vmatprep.subr.mxu0 0.0
        %1788 = vmatpush1.xpose.msra.mxu0 0.0
        %1789 = vmatprep.subr.mxu0 0.0
        %1790 = vmatpush1.xpose.msra.mxu0 0.0
        %1791 = vmatprep.subr.mxu0 0.0
        %1792 = vmatpush1.xpose.msra.mxu0 0.0
        %1793 = vmatprep.subr.mxu0 0.0
        %1794 = vmatpush1.xpose.msra.mxu0 0.0
        %1795 = vmatprep.subr.mxu0 0.0
        %1796 = vmatpush1.xpose.msra.mxu0 0.0
        %1797 = vmatprep.subr.mxu0 0.0
        %1798 = vmatpush1.xpose.msra.mxu0 0.0
        %1799 = vmatprep.subr.mxu0 0.0
        %1800 = vmatpush1.xpose.msra.mxu0 0.0
        %1801 = vmatprep.subr.mxu0 0.0
        %1802 = vmatpush1.xpose.msra.mxu0 0.0
        %1803 = vmatprep.subr.mxu0 0.0
        %1804 = vmatpush1.xpose.msra.mxu0 0.0
        %1805 = vmatprep.subr.mxu0 0.0
        %1806 = vmatpush1.xpose.msra.mxu0 0.0
        %1807 = vmatprep.subr.mxu0 0.0
        %1808 = vmatpush1.xpose.msra.mxu0 0.0
        %1809 = vmatprep.subr.mxu0 0.0
        %1810 = vmatpush1.xpose.msra.mxu0 0.0
        %1811 = vmatprep.subr.mxu0 0.0
        %1812 = vmatpush1.xpose.msra.mxu0 0.0
        %1813 = vmatprep.subr.mxu0 0.0
        %1814 = vmatpush1.xpose.msra.mxu0 0.0
        %1815 = vmatprep.subr.mxu0 0.0
        %1816 = vmatpush1.xpose.msra.mxu0 0.0
        %1817 = vmatprep.subr.mxu0 0.0
        %1818 = vmatpush1.xpose.msra.mxu0 0.0
        %1819 = vmatprep.subr.mxu0 0.0
        %1820 = vmatpush1.xpose.msra.mxu0 0.0
        %1821 = vmatprep.mubr.f32.mxu0 0.0
        %1822 = vmatmul.mubr.f32.gmra.mrb[0].mxu0 %v1752
        %v1823 = vpop.f32.mrb[0].mxu0
        %v1824 = vadd.f32 0.0, %v1823
        %v1825 = vpop.f32.mrb[0].mxu0
        %1826 = vdwg.mxu0
        %v1828 = vsel %vm1598, %v1035, 0
        %v1831 = vsel %vm1598, %v1315, 0
        %1833 = vmatprep.subr.mxu0 0.0
        %1834 = vmatpush1.xpose.msra.mxu0 %v1831
        %1835 = vmatprep.subr.mxu0 0.0
        %1836 = vmatpush1.xpose.msra.mxu0 0.0
        %1837 = vmatprep.subr.mxu0 0.0
        %1838 = vmatpush1.xpose.msra.mxu0 0.0
        %1839 = vmatprep.subr.mxu0 0.0
        %1840 = vmatpush1.xpose.msra.mxu0 0.0
        %1841 = vmatprep.subr.mxu0 0.0
        %1842 = vmatpush1.xpose.msra.mxu0 0.0
        %1843 = vmatprep.subr.mxu0 0.0
        %1844 = vmatpush1.xpose.msra.mxu0 0.0
        %1845 = vmatprep.subr.mxu0 0.0
        %1846 = vmatpush1.xpose.msra.mxu0 0.0
        %1847 = vmatprep.subr.mxu0 0.0
        %1848 = vmatpush1.xpose.msra.mxu0 0.0
        %1849 = vmatprep.subr.mxu0 0.0
        %1850 = vmatpush1.xpose.msra.mxu0 0.0
        %1851 = vmatprep.subr.mxu0 0.0
        %1852 = vmatpush1.xpose.msra.mxu0 0.0
        %1853 = vmatprep.subr.mxu0 0.0
        %1854 = vmatpush1.xpose.msra.mxu0 0.0
        %1855 = vmatprep.subr.mxu0 0.0
        %1856 = vmatpush1.xpose.msra.mxu0 0.0
        %1857 = vmatprep.subr.mxu0 0.0
        %1858 = vmatpush1.xpose.msra.mxu0 0.0
        %1859 = vmatprep.subr.mxu0 0.0
        %1860 = vmatpush1.xpose.msra.mxu0 0.0
        %1861 = vmatprep.subr.mxu0 0.0
        %1862 = vmatpush1.xpose.msra.mxu0 0.0
        %1863 = vmatprep.subr.mxu0 0.0
        %1864 = vmatpush1.xpose.msra.mxu0 0.0
        %1865 = vmatprep.subr.mxu0 0.0
        %1866 = vmatpush1.xpose.msra.mxu0 0.0
        %1867 = vmatprep.subr.mxu0 0.0
        %1868 = vmatpush1.xpose.msra.mxu0 0.0
        %1869 = vmatprep.subr.mxu0 0.0
        %1870 = vmatpush1.xpose.msra.mxu0 0.0
        %1871 = vmatprep.subr.mxu0 0.0
        %1872 = vmatpush1.xpose.msra.mxu0 0.0
        %1873 = vmatprep.subr.mxu0 0.0
        %1874 = vmatpush1.xpose.msra.mxu0 0.0
        %1875 = vmatprep.subr.mxu0 0.0
        %1876 = vmatpush1.xpose.msra.mxu0 0.0
        %1877 = vmatprep.subr.mxu0 0.0
        %1878 = vmatpush1.xpose.msra.mxu0 0.0
        %1879 = vmatprep.subr.mxu0 0.0
        %1880 = vmatpush1.xpose.msra.mxu0 0.0
        %1881 = vmatprep.subr.mxu0 0.0
        %1882 = vmatpush1.xpose.msra.mxu0 0.0
        %1883 = vmatprep.subr.mxu0 0.0
        %1884 = vmatpush1.xpose.msra.mxu0 0.0
        %1885 = vmatprep.subr.mxu0 0.0
        %1886 = vmatpush1.xpose.msra.mxu0 0.0
        %1887 = vmatprep.subr.mxu0 0.0
        %1888 = vmatpush1.xpose.msra.mxu0 0.0
        %1889 = vmatprep.subr.mxu0 0.0
        %1890 = vmatpush1.xpose.msra.mxu0 0.0
        %1891 = vmatprep.subr.mxu0 0.0
        %1892 = vmatpush1.xpose.msra.mxu0 0.0
        %1893 = vmatprep.subr.mxu0 0.0
        %1894 = vmatpush1.xpose.msra.mxu0 0.0
        %1895 = vmatprep.subr.mxu0 0.0
        %1896 = vmatpush1.xpose.msra.mxu0 0.0
        %1897 = vmatprep.mubr.f32.mxu0 0.0
        %1898 = vmatmul.mubr.f32.gmra.mrb[0].mxu0 %v1828
        %v1899 = vpop.f32.mrb[0].mxu0
        %v1900 = vadd.f32 0.0, %v1899
        %v1901 = vpop.f32.mrb[0].mxu0
        %1902 = vdwg.mxu0
        %v1903 = vsel %vm1598, %v1672, -inf
        %1904 = vmax.xlane.f32.xlu0 %v1903
        %v1905 = vpop.xlane.xlu0 %1904
        %v1906 = vsel %vm1598, %v1748, -inf
        %1907 = vmax.xlane.f32.xlu0 %v1906
        %v1908 = vpop.xlane.xlu0 %1907
        %v1909 = vsel %vm1598, %v1824, -inf
        %1910 = vmax.xlane.f32.xlu0 %v1909
        %v1911 = vpop.xlane.xlu0 %1910
        %v1912 = vsel %vm1598, %v1900, -inf
        %1913 = vmax.xlane.f32.xlu0 %v1912
        %v1914 = vpop.xlane.xlu0 %1913
        %v1915 = vsub.f32 %v1672, %v1905
        %v1916 = vsub.f32 %v1748, %v1908
        %v1917 = vsub.f32 %v1824, %v1911
        %v1918 = vsub.f32 %v1900, %v1914
        %v1919 = vmul.f32 %v1915, 1.442695
        %v1920 = vpow.pop %v1919
        %v1921 = vmul.f32 %v1916, 1.442695
        %v1922 = vpow.pop %v1921
        %v1923 = vmul.f32 %v1917, 1.442695
        %v1924 = vpow.pop %v1923
        %v1925 = vmul.f32 %v1918, 1.442695
        %v1926 = vpow.pop %v1925
        %v1927 = vsel %vm1598, %v1920, 0.0
        %1928 = vadd.xlane.f32.xlu0 %v1927
        %v1929 = vpop.xlane.xlu0 %1928
        %v1930 = vsel %vm1598, %v1922, 0.0
        %1931 = vadd.xlane.f32.xlu0 %v1930
        %v1932 = vpop.xlane.xlu0 %1931
        %v1933 = vsel %vm1598, %v1924, 0.0
        %1934 = vadd.xlane.f32.xlu0 %v1933
        %v1935 = vpop.xlane.xlu0 %1934
        %v1936 = vsel %vm1598, %v1926, 0.0
        %1937 = vadd.xlane.f32.xlu0 %v1936
        %v1938 = vpop.xlane.xlu0 %1937
        %v1939 = vrcp.pop %v1929
        %v1940 = vmul.f32 %v1920, %v1939
        %v1941 = vrcp.pop %v1932
        %v1942 = vmul.f32 %v1922, %v1941
        %v1943 = vrcp.pop %v1935
        %v1944 = vmul.f32 %v1924, %v1943
        %v1945 = vrcp.pop %v1938
        %v1946 = vmul.f32 %v1926, %v1945
        %v1948 = vsel %vm1598, %v1940, 0
        %1950 = vmatprep.subr.mxu0 0.0
        %1951 = vmatpush1.msra.mxu0 %v1385
        %1952 = vmatprep.subr.mxu0 0.0
        %1953 = vmatpush1.msra.mxu0 0.0
        %1954 = vmatprep.subr.mxu0 0.0
        %1955 = vmatpush1.msra.mxu0 0.0
        %1956 = vmatprep.subr.mxu0 0.0
        %1957 = vmatpush1.msra.mxu0 0.0
        %1958 = vmatprep.subr.mxu0 0.0
        %1959 = vmatpush1.msra.mxu0 0.0
        %1960 = vmatprep.subr.mxu0 0.0
        %1961 = vmatpush1.msra.mxu0 0.0
        %1962 = vmatprep.subr.mxu0 0.0
        %1963 = vmatpush1.msra.mxu0 0.0
        %1964 = vmatprep.subr.mxu0 0.0
        %1965 = vmatpush1.msra.mxu0 0.0
        %1966 = vmatprep.subr.mxu0 0.0
        %1967 = vmatpush1.msra.mxu0 0.0
        %1968 = vmatprep.subr.mxu0 0.0
        %1969 = vmatpush1.msra.mxu0 0.0
        %1970 = vmatprep.subr.mxu0 0.0
        %1971 = vmatpush1.msra.mxu0 0.0
        %1972 = vmatprep.subr.mxu0 0.0
        %1973 = vmatpush1.msra.mxu0 0.0
        %1974 = vmatprep.subr.mxu0 0.0
        %1975 = vmatpush1.msra.mxu0 0.0
        %1976 = vmatprep.subr.mxu0 0.0
        %1977 = vmatpush1.msra.mxu0 0.0
        %1978 = vmatprep.subr.mxu0 0.0
        %1979 = vmatpush1.msra.mxu0 0.0
        %1980 = vmatprep.subr.mxu0 0.0
        %1981 = vmatpush1.msra.mxu0 0.0
        %1982 = vmatprep.subr.mxu0 0.0
        %1983 = vmatpush1.msra.mxu0 0.0
        %1984 = vmatprep.subr.mxu0 0.0
        %1985 = vmatpush1.msra.mxu0 0.0
        %1986 = vmatprep.subr.mxu0 0.0
        %1987 = vmatpush1.msra.mxu0 0.0
        %1988 = vmatprep.subr.mxu0 0.0
        %1989 = vmatpush1.msra.mxu0 0.0
        %1990 = vmatprep.subr.mxu0 0.0
        %1991 = vmatpush1.msra.mxu0 0.0
        %1992 = vmatprep.subr.mxu0 0.0
        %1993 = vmatpush1.msra.mxu0 0.0
        %1994 = vmatprep.subr.mxu0 0.0
        %1995 = vmatpush1.msra.mxu0 0.0
        %1996 = vmatprep.subr.mxu0 0.0
        %1997 = vmatpush1.msra.mxu0 0.0
        %1998 = vmatprep.subr.mxu0 0.0
        %1999 = vmatpush1.msra.mxu0 0.0
        %2000 = vmatprep.subr.mxu0 0.0
        %2001 = vmatpush1.msra.mxu0 0.0
        %2002 = vmatprep.subr.mxu0 0.0
        %2003 = vmatpush1.msra.mxu0 0.0
        %2004 = vmatprep.subr.mxu0 0.0
        %2005 = vmatpush1.msra.mxu0 0.0
        %2006 = vmatprep.subr.mxu0 0.0
        %2007 = vmatpush1.msra.mxu0 0.0
        %2008 = vmatprep.subr.mxu0 0.0
        %2009 = vmatpush1.msra.mxu0 0.0
        %2010 = vmatprep.subr.mxu0 0.0
        %2011 = vmatpush1.msra.mxu0 0.0
        %2012 = vmatprep.subr.mxu0 0.0
        %2013 = vmatpush1.msra.mxu0 0.0
        %2014 = vmatprep.mubr.f32.mxu0 0.0
        %2015 = vmatmul.mubr.f32.gmra.mrb[0].mxu0 %v1948
        %v2016 = vpop.f32.mrb[0].mxu0
        %v2017 = vadd.f32 0.0, %v2016
        %v2018 = vpop.f32.mrb[0].mxu0
        %2019 = vdwg.mxu0
        %v2021 = vsel %vm1598, %v1942, 0
        %2023 = vmatprep.subr.mxu0 0.0
        %2024 = vmatpush1.msra.mxu0 %v1455
        %2025 = vmatprep.subr.mxu0 0.0
        %2026 = vmatpush1.msra.mxu0 0.0
        %2027 = vmatprep.subr.mxu0 0.0
        %2028 = vmatpush1.msra.mxu0 0.0
        %2029 = vmatprep.subr.mxu0 0.0
        %2030 = vmatpush1.msra.mxu0 0.0
        %2031 = vmatprep.subr.mxu0 0.0
        %2032 = vmatpush1.msra.mxu0 0.0
        %2033 = vmatprep.subr.mxu0 0.0
        %2034 = vmatpush1.msra.mxu0 0.0
        %2035 = vmatprep.subr.mxu0 0.0
        %2036 = vmatpush1.msra.mxu0 0.0
        %2037 = vmatprep.subr.mxu0 0.0
        %2038 = vmatpush1.msra.mxu0 0.0
        %2039 = vmatprep.subr.mxu0 0.0
        %2040 = vmatpush1.msra.mxu0 0.0
        %2041 = vmatprep.subr.mxu0 0.0
        %2042 = vmatpush1.msra.mxu0 0.0
        %2043 = vmatprep.subr.mxu0 0.0
        %2044 = vmatpush1.msra.mxu0 0.0
        %2045 = vmatprep.subr.mxu0 0.0
        %2046 = vmatpush1.msra.mxu0 0.0
        %2047 = vmatprep.subr.mxu0 0.0
        %2048 = vmatpush1.msra.mxu0 0.0
        %2049 = vmatprep.subr.mxu0 0.0
        %2050 = vmatpush1.msra.mxu0 0.0
        %2051 = vmatprep.subr.mxu0 0.0
        %2052 = vmatpush1.msra.mxu0 0.0
        %2053 = vmatprep.subr.mxu0 0.0
        %2054 = vmatpush1.msra.mxu0 0.0
        %2055 = vmatprep.subr.mxu0 0.0
        %2056 = vmatpush1.msra.mxu0 0.0
        %2057 = vmatprep.subr.mxu0 0.0
        %2058 = vmatpush1.msra.mxu0 0.0
        %2059 = vmatprep.subr.mxu0 0.0
        %2060 = vmatpush1.msra.mxu0 0.0
        %2061 = vmatprep.subr.mxu0 0.0
        %2062 = vmatpush1.msra.mxu0 0.0
        %2063 = vmatprep.subr.mxu0 0.0
        %2064 = vmatpush1.msra.mxu0 0.0
        %2065 = vmatprep.subr.mxu0 0.0
        %2066 = vmatpush1.msra.mxu0 0.0
        %2067 = vmatprep.subr.mxu0 0.0
        %2068 = vmatpush1.msra.mxu0 0.0
        %2069 = vmatprep.subr.mxu0 0.0
        %2070 = vmatpush1.msra.mxu0 0.0
        %2071 = vmatprep.subr.mxu0 0.0
        %2072 = vmatpush1.msra.mxu0 0.0
        %2073 = vmatprep.subr.mxu0 0.0
        %2074 = vmatpush1.msra.mxu0 0.0
        %2075 = vmatprep.subr.mxu0 0.0
        %2076 = vmatpush1.msra.mxu0 0.0
        %2077 = vmatprep.subr.mxu0 0.0
        %2078 = vmatpush1.msra.mxu0 0.0
        %2079 = vmatprep.subr.mxu0 0.0
        %2080 = vmatpush1.msra.mxu0 0.0
        %2081 = vmatprep.subr.mxu0 0.0
        %2082 = vmatpush1.msra.mxu0 0.0
        %2083 = vmatprep.subr.mxu0 0.0
        %2084 = vmatpush1.msra.mxu0 0.0
        %2085 = vmatprep.subr.mxu0 0.0
        %2086 = vmatpush1.msra.mxu0 0.0
        %2087 = vmatprep.mubr.f32.mxu0 0.0
        %2088 = vmatmul.mubr.f32.gmra.mrb[0].mxu0 %v2021
        %v2089 = vpop.f32.mrb[0].mxu0
        %v2090 = vadd.f32 0.0, %v2089
        %v2091 = vpop.f32.mrb[0].mxu0
        %2092 = vdwg.mxu0
        %v2094 = vsel %vm1598, %v1944, 0
        %2096 = vmatprep.subr.mxu0 0.0
        %2097 = vmatpush1.msra.mxu0 %v1525
        %2098 = vmatprep.subr.mxu0 0.0
        %2099 = vmatpush1.msra.mxu0 0.0
        %2100 = vmatprep.subr.mxu0 0.0
        %2101 = vmatpush1.msra.mxu0 0.0
        %2102 = vmatprep.subr.mxu0 0.0
        %2103 = vmatpush1.msra.mxu0 0.0
        %2104 = vmatprep.subr.mxu0 0.0
        %2105 = vmatpush1.msra.mxu0 0.0
        %2106 = vmatprep.subr.mxu0 0.0
        %2107 = vmatpush1.msra.mxu0 0.0
        %2108 = vmatprep.subr.mxu0 0.0
        %2109 = vmatpush1.msra.mxu0 0.0
        %2110 = vmatprep.subr.mxu0 0.0
        %2111 = vmatpush1.msra.mxu0 0.0
        %2112 = vmatprep.subr.mxu0 0.0
        %2113 = vmatpush1.msra.mxu0 0.0
        %2114 = vmatprep.subr.mxu0 0.0
        %2115 = vmatpush1.msra.mxu0 0.0
        %2116 = vmatprep.subr.mxu0 0.0
        %2117 = vmatpush1.msra.mxu0 0.0
        %2118 = vmatprep.subr.mxu0 0.0
        %2119 = vmatpush1.msra.mxu0 0.0
        %2120 = vmatprep.subr.mxu0 0.0
        %2121 = vmatpush1.msra.mxu0 0.0
        %2122 = vmatprep.subr.mxu0 0.0
        %2123 = vmatpush1.msra.mxu0 0.0
        %2124 = vmatprep.subr.mxu0 0.0
        %2125 = vmatpush1.msra.mxu0 0.0
        %2126 = vmatprep.subr.mxu0 0.0
        %2127 = vmatpush1.msra.mxu0 0.0
        %2128 = vmatprep.subr.mxu0 0.0
        %2129 = vmatpush1.msra.mxu0 0.0
        %2130 = vmatprep.subr.mxu0 0.0
        %2131 = vmatpush1.msra.mxu0 0.0
        %2132 = vmatprep.subr.mxu0 0.0
        %2133 = vmatpush1.msra.mxu0 0.0
        %2134 = vmatprep.subr.mxu0 0.0
        %2135 = vmatpush1.msra.mxu0 0.0
        %2136 = vmatprep.subr.mxu0 0.0
        %2137 = vmatpush1.msra.mxu0 0.0
        %2138 = vmatprep.subr.mxu0 0.0
        %2139 = vmatpush1.msra.mxu0 0.0
        %2140 = vmatprep.subr.mxu0 0.0
        %2141 = vmatpush1.msra.mxu0 0.0
        %2142 = vmatprep.subr.mxu0 0.0
        %2143 = vmatpush1.msra.mxu0 0.0
        %2144 = vmatprep.subr.mxu0 0.0
        %2145 = vmatpush1.msra.mxu0 0.0
        %2146 = vmatprep.subr.mxu0 0.0
        %2147 = vmatpush1.msra.mxu0 0.0
        %2148 = vmatprep.subr.mxu0 0.0
        %2149 = vmatpush1.msra.mxu0 0.0
        %2150 = vmatprep.subr.mxu0 0.0
        %2151 = vmatpush1.msra.mxu0 0.0
        %2152 = vmatprep.subr.mxu0 0.0
        %2153 = vmatpush1.msra.mxu0 0.0
        %2154 = vmatprep.subr.mxu0 0.0
        %2155 = vmatpush1.msra.mxu0 0.0
        %2156 = vmatprep.subr.mxu0 0.0
        %2157 = vmatpush1.msra.mxu0 0.0
        %2158 = vmatprep.subr.mxu0 0.0
        %2159 = vmatpush1.msra.mxu0 0.0
        %2160 = vmatprep.mubr.f32.mxu0 0.0
        %2161 = vmatmul.mubr.f32.gmra.mrb[0].mxu0 %v2094
        %v2162 = vpop.f32.mrb[0].mxu0
        %v2163 = vadd.f32 0.0, %v2162
        %v2164 = vpop.f32.mrb[0].mxu0
        %2165 = vdwg.mxu0
        %v2167 = vsel %vm1598, %v1946, 0
        %2169 = vmatprep.subr.mxu0 0.0
        %2170 = vmatpush1.msra.mxu0 %v1595
        %2171 = vmatprep.subr.mxu0 0.0
        %2172 = vmatpush1.msra.mxu0 0.0
        %2173 = vmatprep.subr.mxu0 0.0
        %2174 = vmatpush1.msra.mxu0 0.0
        %2175 = vmatprep.subr.mxu0 0.0
        %2176 = vmatpush1.msra.mxu0 0.0
        %2177 = vmatprep.subr.mxu0 0.0
        %2178 = vmatpush1.msra.mxu0 0.0
        %2179 = vmatprep.subr.mxu0 0.0
        %2180 = vmatpush1.msra.mxu0 0.0
        %2181 = vmatprep.subr.mxu0 0.0
        %2182 = vmatpush1.msra.mxu0 0.0
        %2183 = vmatprep.subr.mxu0 0.0
        %2184 = vmatpush1.msra.mxu0 0.0
        %2185 = vmatprep.subr.mxu0 0.0
        %2186 = vmatpush1.msra.mxu0 0.0
        %2187 = vmatprep.subr.mxu0 0.0
        %2188 = vmatpush1.msra.mxu0 0.0
        %2189 = vmatprep.subr.mxu0 0.0
        %2190 = vmatpush1.msra.mxu0 0.0
        %2191 = vmatprep.subr.mxu0 0.0
        %2192 = vmatpush1.msra.mxu0 0.0
        %2193 = vmatprep.subr.mxu0 0.0
        %2194 = vmatpush1.msra.mxu0 0.0
        %2195 = vmatprep.subr.mxu0 0.0
        %2196 = vmatpush1.msra.mxu0 0.0
        %2197 = vmatprep.subr.mxu0 0.0
        %2198 = vmatpush1.msra.mxu0 0.0
        %2199 = vmatprep.subr.mxu0 0.0
        %2200 = vmatpush1.msra.mxu0 0.0
        %2201 = vmatprep.subr.mxu0 0.0
        %2202 = vmatpush1.msra.mxu0 0.0
        %2203 = vmatprep.subr.mxu0 0.0
        %2204 = vmatpush1.msra.mxu0 0.0
        %2205 = vmatprep.subr.mxu0 0.0
        %2206 = vmatpush1.msra.mxu0 0.0
        %2207 = vmatprep.subr.mxu0 0.0
        %2208 = vmatpush1.msra.mxu0 0.0
        %2209 = vmatprep.subr.mxu0 0.0
        %2210 = vmatpush1.msra.mxu0 0.0
        %2211 = vmatprep.subr.mxu0 0.0
        %2212 = vmatpush1.msra.mxu0 0.0
        %2213 = vmatprep.subr.mxu0 0.0
        %2214 = vmatpush1.msra.mxu0 0.0
        %2215 = vmatprep.subr.mxu0 0.0
        %2216 = vmatpush1.msra.mxu0 0.0
        %2217 = vmatprep.subr.mxu0 0.0
        %2218 = vmatpush1.msra.mxu0 0.0
        %2219 = vmatprep.subr.mxu0 0.0
        %2220 = vmatpush1.msra.mxu0 0.0
        %2221 = vmatprep.subr.mxu0 0.0
        %2222 = vmatpush1.msra.mxu0 0.0
        %2223 = vmatprep.subr.mxu0 0.0
        %2224 = vmatpush1.msra.mxu0 0.0
        %2225 = vmatprep.subr.mxu0 0.0
        %2226 = vmatpush1.msra.mxu0 0.0
        %2227 = vmatprep.subr.mxu0 0.0
        %2228 = vmatpush1.msra.mxu0 0.0
        %2229 = vmatprep.subr.mxu0 0.0
        %2230 = vmatpush1.msra.mxu0 0.0
        %2231 = vmatprep.subr.mxu0 0.0
        %2232 = vmatpush1.msra.mxu0 0.0
        %2233 = vmatprep.mubr.f32.mxu0 0.0
        %2234 = vmatmul.mubr.f32.gmra.mrb[0].mxu0 %v2167
        %v2235 = vpop.f32.mrb[0].mxu0
        %v2236 = vadd.f32 0.0, %v2235
        %v2237 = vpop.f32.mrb[0].mxu0
        %2238 = vdwg.mxu0
        %v2239 = vld [vmem:[%s5] sm:$0xff]
        %v2240 = vld [vmem:[%s5 + $0x8] sm:$0xff]
        %v2241 = vld [vmem:[%s5 + $0x10] sm:$0xff]
        %v2242 = vld [vmem:[%s5 + $0x18] sm:$0xff]
        %v2244 = vsel %vm1598, %v2017, 0
        %2246 = vmatprep.subr.mxu0 0.0
        %2247 = vmatpush1.msra.mxu0 %v2239
        %2248 = vmatprep.subr.mxu0 0.0
        %2249 = vmatpush1.msra.mxu0 0.0
        %2250 = vmatprep.subr.mxu0 0.0
        %2251 = vmatpush1.msra.mxu0 0.0
        %2252 = vmatprep.subr.mxu0 0.0
        %2253 = vmatpush1.msra.mxu0 0.0
        %2254 = vmatprep.subr.mxu0 0.0
        %2255 = vmatpush1.msra.mxu0 0.0
        %2256 = vmatprep.subr.mxu0 0.0
        %2257 = vmatpush1.msra.mxu0 0.0
        %2258 = vmatprep.subr.mxu0 0.0
        %2259 = vmatpush1.msra.mxu0 0.0
        %2260 = vmatprep.subr.mxu0 0.0
        %2261 = vmatpush1.msra.mxu0 0.0
        %2262 = vmatprep.subr.mxu0 0.0
        %2263 = vmatpush1.msra.mxu0 0.0
        %2264 = vmatprep.subr.mxu0 0.0
        %2265 = vmatpush1.msra.mxu0 0.0
        %2266 = vmatprep.subr.mxu0 0.0
        %2267 = vmatpush1.msra.mxu0 0.0
        %2268 = vmatprep.subr.mxu0 0.0
        %2269 = vmatpush1.msra.mxu0 0.0
        %2270 = vmatprep.subr.mxu0 0.0
        %2271 = vmatpush1.msra.mxu0 0.0
        %2272 = vmatprep.subr.mxu0 0.0
        %2273 = vmatpush1.msra.mxu0 0.0
        %2274 = vmatprep.subr.mxu0 0.0
        %2275 = vmatpush1.msra.mxu0 0.0
        %2276 = vmatprep.subr.mxu0 0.0
        %2277 = vmatpush1.msra.mxu0 0.0
        %2278 = vmatprep.subr.mxu0 0.0
        %2279 = vmatpush1.msra.mxu0 0.0
        %2280 = vmatprep.subr.mxu0 0.0
        %2281 = vmatpush1.msra.mxu0 0.0
        %2282 = vmatprep.subr.mxu0 0.0
        %2283 = vmatpush1.msra.mxu0 0.0
        %2284 = vmatprep.subr.mxu0 0.0
        %2285 = vmatpush1.msra.mxu0 0.0
        %2286 = vmatprep.subr.mxu0 0.0
        %2287 = vmatpush1.msra.mxu0 0.0
        %2288 = vmatprep.subr.mxu0 0.0
        %2289 = vmatpush1.msra.mxu0 0.0
        %2290 = vmatprep.subr.mxu0 0.0
        %2291 = vmatpush1.msra.mxu0 0.0
        %2292 = vmatprep.subr.mxu0 0.0
        %2293 = vmatpush1.msra.mxu0 0.0
        %2294 = vmatprep.subr.mxu0 0.0
        %2295 = vmatpush1.msra.mxu0 0.0
        %2296 = vmatprep.subr.mxu0 0.0
        %2297 = vmatpush1.msra.mxu0 0.0
        %2298 = vmatprep.subr.mxu0 0.0
        %2299 = vmatpush1.msra.mxu0 0.0
        %2300 = vmatprep.subr.mxu0 0.0
        %2301 = vmatpush1.msra.mxu0 0.0
        %2302 = vmatprep.subr.mxu0 0.0
        %2303 = vmatpush1.msra.mxu0 0.0
        %2304 = vmatprep.subr.mxu0 0.0
        %2305 = vmatpush1.msra.mxu0 0.0
        %2306 = vmatprep.subr.mxu0 0.0
        %2307 = vmatpush1.msra.mxu0 0.0
        %2308 = vmatprep.subr.mxu0 0.0
        %2309 = vmatpush1.msra.mxu0 0.0
        %2310 = vmatprep.mubr.f32.mxu0 0.0
        %2311 = vmatmul.mubr.f32.gmra.mrb[0].mxu0 %v2244
        %v2312 = vpop.f32.mrb[0].mxu0
        %v2313 = vadd.f32 0.0, %v2312
        %v2314 = vpop.f32.mrb[0].mxu0
        %2315 = vdwg.mxu0
        %v2317 = vsel %vm1598, %v2090, 0
        %2319 = vmatprep.subr.mxu0 0.0
        %2320 = vmatpush1.msra.mxu0 %v2240
        %2321 = vmatprep.subr.mxu0 0.0
        %2322 = vmatpush1.msra.mxu0 0.0
        %2323 = vmatprep.subr.mxu0 0.0
        %2324 = vmatpush1.msra.mxu0 0.0
        %2325 = vmatprep.subr.mxu0 0.0
        %2326 = vmatpush1.msra.mxu0 0.0
        %2327 = vmatprep.subr.mxu0 0.0
        %2328 = vmatpush1.msra.mxu0 0.0
        %2329 = vmatprep.subr.mxu0 0.0
        %2330 = vmatpush1.msra.mxu0 0.0
        %2331 = vmatprep.subr.mxu0 0.0
        %2332 = vmatpush1.msra.mxu0 0.0
        %2333 = vmatprep.subr.mxu0 0.0
        %2334 = vmatpush1.msra.mxu0 0.0
        %2335 = vmatprep.subr.mxu0 0.0
        %2336 = vmatpush1.msra.mxu0 0.0
        %2337 = vmatprep.subr.mxu0 0.0
        %2338 = vmatpush1.msra.mxu0 0.0
        %2339 = vmatprep.subr.mxu0 0.0
        %2340 = vmatpush1.msra.mxu0 0.0
        %2341 = vmatprep.subr.mxu0 0.0
        %2342 = vmatpush1.msra.mxu0 0.0
        %2343 = vmatprep.subr.mxu0 0.0
        %2344 = vmatpush1.msra.mxu0 0.0
        %2345 = vmatprep.subr.mxu0 0.0
        %2346 = vmatpush1.msra.mxu0 0.0
        %2347 = vmatprep.subr.mxu0 0.0
        %2348 = vmatpush1.msra.mxu0 0.0
        %2349 = vmatprep.subr.mxu0 0.0
        %2350 = vmatpush1.msra.mxu0 0.0
        %2351 = vmatprep.subr.mxu0 0.0
        %2352 = vmatpush1.msra.mxu0 0.0
        %2353 = vmatprep.subr.mxu0 0.0
        %2354 = vmatpush1.msra.mxu0 0.0
        %2355 = vmatprep.subr.mxu0 0.0
        %2356 = vmatpush1.msra.mxu0 0.0
        %2357 = vmatprep.subr.mxu0 0.0
        %2358 = vmatpush1.msra.mxu0 0.0
        %2359 = vmatprep.subr.mxu0 0.0
        %2360 = vmatpush1.msra.mxu0 0.0
        %2361 = vmatprep.subr.mxu0 0.0
        %2362 = vmatpush1.msra.mxu0 0.0
        %2363 = vmatprep.subr.mxu0 0.0
        %2364 = vmatpush1.msra.mxu0 0.0
        %2365 = vmatprep.subr.mxu0 0.0
        %2366 = vmatpush1.msra.mxu0 0.0
        %2367 = vmatprep.subr.mxu0 0.0
        %2368 = vmatpush1.msra.mxu0 0.0
        %2369 = vmatprep.subr.mxu0 0.0
        %2370 = vmatpush1.msra.mxu0 0.0
        %2371 = vmatprep.subr.mxu0 0.0
        %2372 = vmatpush1.msra.mxu0 0.0
        %2373 = vmatprep.subr.mxu0 0.0
        %2374 = vmatpush1.msra.mxu0 0.0
        %2375 = vmatprep.subr.mxu0 0.0
        %2376 = vmatpush1.msra.mxu0 0.0
        %2377 = vmatprep.subr.mxu0 0.0
        %2378 = vmatpush1.msra.mxu0 0.0
        %2379 = vmatprep.subr.mxu0 0.0
        %2380 = vmatpush1.msra.mxu0 0.0
        %2381 = vmatprep.subr.mxu0 0.0
        %2382 = vmatpush1.msra.mxu0 0.0
        %2383 = vmatprep.mubr.f32.mxu0 0.0
        %2384 = vmatmul.mubr.f32.gmra.mrb[0].mxu0 %v2317
        %v2385 = vpop.f32.mrb[0].mxu0
        %v2386 = vadd.f32 0.0, %v2385
        %v2387 = vpop.f32.mrb[0].mxu0
        %2388 = vdwg.mxu0
        %v2390 = vsel %vm1598, %v2163, 0
        %2392 = vmatprep.subr.mxu0 0.0
        %2393 = vmatpush1.msra.mxu0 %v2241
        %2394 = vmatprep.subr.mxu0 0.0
        %2395 = vmatpush1.msra.mxu0 0.0
        %2396 = vmatprep.subr.mxu0 0.0
        %2397 = vmatpush1.msra.mxu0 0.0
        %2398 = vmatprep.subr.mxu0 0.0
        %2399 = vmatpush1.msra.mxu0 0.0
        %2400 = vmatprep.subr.mxu0 0.0
        %2401 = vmatpush1.msra.mxu0 0.0
        %2402 = vmatprep.subr.mxu0 0.0
        %2403 = vmatpush1.msra.mxu0 0.0
        %2404 = vmatprep.subr.mxu0 0.0
        %2405 = vmatpush1.msra.mxu0 0.0
        %2406 = vmatprep.subr.mxu0 0.0
        %2407 = vmatpush1.msra.mxu0 0.0
        %2408 = vmatprep.subr.mxu0 0.0
        %2409 = vmatpush1.msra.mxu0 0.0
        %2410 = vmatprep.subr.mxu0 0.0
        %2411 = vmatpush1.msra.mxu0 0.0
        %2412 = vmatprep.subr.mxu0 0.0
        %2413 = vmatpush1.msra.mxu0 0.0
        %2414 = vmatprep.subr.mxu0 0.0
        %2415 = vmatpush1.msra.mxu0 0.0
        %2416 = vmatprep.subr.mxu0 0.0
        %2417 = vmatpush1.msra.mxu0 0.0
        %2418 = vmatprep.subr.mxu0 0.0
        %2419 = vmatpush1.msra.mxu0 0.0
        %2420 = vmatprep.subr.mxu0 0.0
        %2421 = vmatpush1.msra.mxu0 0.0
        %2422 = vmatprep.subr.mxu0 0.0
        %2423 = vmatpush1.msra.mxu0 0.0
        %2424 = vmatprep.subr.mxu0 0.0
        %2425 = vmatpush1.msra.mxu0 0.0
        %2426 = vmatprep.subr.mxu0 0.0
        %2427 = vmatpush1.msra.mxu0 0.0
        %2428 = vmatprep.subr.mxu0 0.0
        %2429 = vmatpush1.msra.mxu0 0.0
        %2430 = vmatprep.subr.mxu0 0.0
        %2431 = vmatpush1.msra.mxu0 0.0
        %2432 = vmatprep.subr.mxu0 0.0
        %2433 = vmatpush1.msra.mxu0 0.0
        %2434 = vmatprep.subr.mxu0 0.0
        %2435 = vmatpush1.msra.mxu0 0.0
        %2436 = vmatprep.subr.mxu0 0.0
        %2437 = vmatpush1.msra.mxu0 0.0
        %2438 = vmatprep.subr.mxu0 0.0
        %2439 = vmatpush1.msra.mxu0 0.0
        %2440 = vmatprep.subr.mxu0 0.0
        %2441 = vmatpush1.msra.mxu0 0.0
        %2442 = vmatprep.subr.mxu0 0.0
        %2443 = vmatpush1.msra.mxu0 0.0
        %2444 = vmatprep.subr.mxu0 0.0
        %2445 = vmatpush1.msra.mxu0 0.0
        %2446 = vmatprep.subr.mxu0 0.0
        %2447 = vmatpush1.msra.mxu0 0.0
        %2448 = vmatprep.subr.mxu0 0.0
        %2449 = vmatpush1.msra.mxu0 0.0
        %2450 = vmatprep.subr.mxu0 0.0
        %2451 = vmatpush1.msra.mxu0 0.0
        %2452 = vmatprep.subr.mxu0 0.0
        %2453 = vmatpush1.msra.mxu0 0.0
        %2454 = vmatprep.subr.mxu0 0.0
        %2455 = vmatpush1.msra.mxu0 0.0
        %2456 = vmatprep.mubr.f32.mxu0 0.0
        %2457 = vmatmul.mubr.f32.gmra.mrb[0].mxu0 %v2390
        %v2458 = vpop.f32.mrb[0].mxu0
        %v2459 = vadd.f32 0.0, %v2458
        %v2460 = vpop.f32.mrb[0].mxu0
        %2461 = vdwg.mxu0
        %v2463 = vsel %vm1598, %v2236, 0
        %2465 = vmatprep.subr.mxu0 0.0
        %2466 = vmatpush1.msra.mxu0 %v2242
        %2467 = vmatprep.subr.mxu0 0.0
        %2468 = vmatpush1.msra.mxu0 0.0
        %2469 = vmatprep.subr.mxu0 0.0
        %2470 = vmatpush1.msra.mxu0 0.0
        %2471 = vmatprep.subr.mxu0 0.0
        %2472 = vmatpush1.msra.mxu0 0.0
        %2473 = vmatprep.subr.mxu0 0.0
        %2474 = vmatpush1.msra.mxu0 0.0
        %2475 = vmatprep.subr.mxu0 0.0
        %2476 = vmatpush1.msra.mxu0 0.0
        %2477 = vmatprep.subr.mxu0 0.0
        %2478 = vmatpush1.msra.mxu0 0.0
        %2479 = vmatprep.subr.mxu0 0.0
        %2480 = vmatpush1.msra.mxu0 0.0
        %2481 = vmatprep.subr.mxu0 0.0
        %2482 = vmatpush1.msra.mxu0 0.0
        %2483 = vmatprep.subr.mxu0 0.0
        %2484 = vmatpush1.msra.mxu0 0.0
        %2485 = vmatprep.subr.mxu0 0.0
        %2486 = vmatpush1.msra.mxu0 0.0
        %2487 = vmatprep.subr.mxu0 0.0
        %2488 = vmatpush1.msra.mxu0 0.0
        %2489 = vmatprep.subr.mxu0 0.0
        %2490 = vmatpush1.msra.mxu0 0.0
        %2491 = vmatprep.subr.mxu0 0.0
        %2492 = vmatpush1.msra.mxu0 0.0
        %2493 = vmatprep.subr.mxu0 0.0
        %2494 = vmatpush1.msra.mxu0 0.0
        %2495 = vmatprep.subr.mxu0 0.0
        %2496 = vmatpush1.msra.mxu0 0.0
        %2497 = vmatprep.subr.mxu0 0.0
        %2498 = vmatpush1.msra.mxu0 0.0
        %2499 = vmatprep.subr.mxu0 0.0
        %2500 = vmatpush1.msra.mxu0 0.0
        %2501 = vmatprep.subr.mxu0 0.0
        %2502 = vmatpush1.msra.mxu0 0.0
        %2503 = vmatprep.subr.mxu0 0.0
        %2504 = vmatpush1.msra.mxu0 0.0
        %2505 = vmatprep.subr.mxu0 0.0
        %2506 = vmatpush1.msra.mxu0 0.0
        %2507 = vmatprep.subr.mxu0 0.0
        %2508 = vmatpush1.msra.mxu0 0.0
        %2509 = vmatprep.subr.mxu0 0.0
        %2510 = vmatpush1.msra.mxu0 0.0
        %2511 = vmatprep.subr.mxu0 0.0
        %2512 = vmatpush1.msra.mxu0 0.0
        %2513 = vmatprep.subr.mxu0 0.0
        %2514 = vmatpush1.msra.mxu0 0.0
        %2515 = vmatprep.subr.mxu0 0.0
        %2516 = vmatpush1.msra.mxu0 0.0
        %2517 = vmatprep.subr.mxu0 0.0
        %2518 = vmatpush1.msra.mxu0 0.0
        %2519 = vmatprep.subr.mxu0 0.0
        %2520 = vmatpush1.msra.mxu0 0.0
        %2521 = vmatprep.subr.mxu0 0.0
        %2522 = vmatpush1.msra.mxu0 0.0
        %2523 = vmatprep.subr.mxu0 0.0
        %2524 = vmatpush1.msra.mxu0 0.0
        %2525 = vmatprep.subr.mxu0 0.0
        %2526 = vmatpush1.msra.mxu0 0.0
        %2527 = vmatprep.subr.mxu0 0.0
        %2528 = vmatpush1.msra.mxu0 0.0
        %2529 = vmatprep.mubr.f32.mxu0 0.0
        %2530 = vmatmul.mubr.f32.gmra.mrb[0].mxu0 %v2463
        %v2531 = vpop.f32.mrb[0].mxu0
        %v2532 = vadd.f32 0.0, %v2531
        %v2533 = vpop.f32.mrb[0].mxu0
        %2534 = vdwg.mxu0
        %v2535 = vadd.f32 %v2313, %v2386
        %v2536 = vadd.f32 %v2535, %v2459
        %v2537 = vadd.f32 %v2536, %v2532
        %v2538 = vld [vmem:[%s6] sm:$0x1]
        %v2540 = vlaneseq
        %v2541 = vshrl.u32 %v2540, 7
        %v2542 = vsub.s32 0, %v2541
        %v2543 = vrot.slane %v2538, %v2542
        %v2545 = vadd.f32 %v2537, %v2543
        %v2546 = vld [vmem:[%s11] sm:$0x1]
        %v2547 = vld [vmem:[%s12] sm:$0x1]
        %v2548 = vadd.f32 %v619, %v2545
        %v2549 = vsel %vm754, %v2548, 0.0
        %2550 = vadd.xlane.f32.xlu0 %v2549
        %v2551 = vpop.xlane.xlu0 %2550
        %v2552 = vrcp.pop 32.0
        %v2553 = vmul.f32 %v2551, %v2552
        %v2554 = vsub.f32 %v2548, %v2553
        %v2555 = vmul.f32 %v2554, %v2554
        %v2556 = vsel %vm754, %v2555, 0.0
        %2557 = vadd.xlane.f32.xlu0 %v2556
        %v2558 = vpop.xlane.xlu0 %2557
        %v2559 = vmul.f32 %v2558, %v2552
        %v2560 = vadd.f32 %v2559, 1e-05
        %v2561 = vrsqrt.pop %v2560
        %v2562 = vmul.f32 %v2554, %v2561
        %v2564 = vlaneseq
        %v2565 = vshrl.u32 %v2564, 7
        %v2566 = vsub.s32 0, %v2565
        %v2567 = vrot.slane %v2546, %v2566
        %v2569 = vmul.f32 %v2562, %v2567
        %v2571 = vlaneseq
        %v2572 = vshrl.u32 %v2571, 7
        %v2573 = vsub.s32 0, %v2572
        %v2574 = vrot.slane %v2547, %v2573
        %v2576 = vadd.f32 %v2569, %v2574
        %v2577 = vld [vmem:[%s7] sm:$0xff]
        %v2578 = vld [vmem:[%s7 + $0x8] sm:$0xff]
        %v2579 = vld [vmem:[%s7 + $0x10] sm:$0xff]
        %v2580 = vld [vmem:[%s7 + $0x18] sm:$0xff]
        %v2581 = vld [vmem:[%s8] sm:$0x1]
        %v2583 = vlaneseq
        %v2584 = vshrl.u32 %v2583, 7
        %v2585 = vsub.s32 0, %v2584
        %v2586 = vrot.slane %v2581, %v2585
        %v2589 = vsel %vm754, %v2576, 0
        %2591 = vmatprep.subr.mxu0 0.0
        %2592 = vmatpush1.msra.mxu0 %v2577
        %2593 = vmatprep.subr.mxu0 0.0
        %2594 = vmatpush1.msra.mxu0 %v2578
        %2595 = vmatprep.subr.mxu0 0.0
        %2596 = vmatpush1.msra.mxu0 %v2579
        %2597 = vmatprep.subr.mxu0 0.0
        %2598 = vmatpush1.msra.mxu0 %v2580
        %2599 = vmatprep.subr.mxu0 0.0
        %2600 = vmatpush1.msra.mxu0 0.0
        %2601 = vmatprep.subr.mxu0 0.0
        %2602 = vmatpush1.msra.mxu0 0.0
        %2603 = vmatprep.subr.mxu0 0.0
        %2604 = vmatpush1.msra.mxu0 0.0
        %2605 = vmatprep.subr.mxu0 0.0
        %2606 = vmatpush1.msra.mxu0 0.0
        %2607 = vmatprep.subr.mxu0 0.0
        %2608 = vmatpush1.msra.mxu0 0.0
        %2609 = vmatprep.subr.mxu0 0.0
        %2610 = vmatpush1.msra.mxu0 0.0
        %2611 = vmatprep.subr.mxu0 0.0
        %2612 = vmatpush1.msra.mxu0 0.0
        %2613 = vmatprep.subr.mxu0 0.0
        %2614 = vmatpush1.msra.mxu0 0.0
        %2615 = vmatprep.subr.mxu0 0.0
        %2616 = vmatpush1.msra.mxu0 0.0
        %2617 = vmatprep.subr.mxu0 0.0
        %2618 = vmatpush1.msra.mxu0 0.0
        %2619 = vmatprep.subr.mxu0 0.0
        %2620 = vmatpush1.msra.mxu0 0.0
        %2621 = vmatprep.subr.mxu0 0.0
        %2622 = vmatpush1.msra.mxu0 0.0
        %2623 = vmatprep.subr.mxu0 0.0
        %2624 = vmatpush1.msra.mxu0 0.0
        %2625 = vmatprep.subr.mxu0 0.0
        %2626 = vmatpush1.msra.mxu0 0.0
        %2627 = vmatprep.subr.mxu0 0.0
        %2628 = vmatpush1.msra.mxu0 0.0
        %2629 = vmatprep.subr.mxu0 0.0
        %2630 = vmatpush1.msra.mxu0 0.0
        %2631 = vmatprep.subr.mxu0 0.0
        %2632 = vmatpush1.msra.mxu0 0.0
        %2633 = vmatprep.subr.mxu0 0.0
        %2634 = vmatpush1.msra.mxu0 0.0
        %2635 = vmatprep.subr.mxu0 0.0
        %2636 = vmatpush1.msra.mxu0 0.0
        %2637 = vmatprep.subr.mxu0 0.0
        %2638 = vmatpush1.msra.mxu0 0.0
        %2639 = vmatprep.subr.mxu0 0.0
        %2640 = vmatpush1.msra.mxu0 0.0
        %2641 = vmatprep.subr.mxu0 0.0
        %2642 = vmatpush1.msra.mxu0 0.0
        %2643 = vmatprep.subr.mxu0 0.0
        %2644 = vmatpush1.msra.mxu0 0.0
        %2645 = vmatprep.subr.mxu0 0.0
        %2646 = vmatpush1.msra.mxu0 0.0
        %2647 = vmatprep.subr.mxu0 0.0
        %2648 = vmatpush1.msra.mxu0 0.0
        %2649 = vmatprep.subr.mxu0 0.0
        %2650 = vmatpush1.msra.mxu0 0.0
        %2651 = vmatprep.subr.mxu0 0.0
        %2652 = vmatpush1.msra.mxu0 0.0
        %2653 = vmatprep.subr.mxu0 0.0
        %2654 = vmatpush1.msra.mxu0 0.0
        %2655 = vmatprep.mubr.f32.mxu0 0.0
        %2656 = vmatmul.mubr.f32.gmra.mrb[0].mxu0 %v2589
        %v2657 = vpop.f32.mrb[0].mxu0
        %v2658 = vadd.f32 %v2586, %v2657
        %v2659 = vpop.f32.mrb[0].mxu0
        %2660 = vdwg.mxu0
        %v2661 = vmax.f32 %v2658, 0.0
        %v2662 = vld [vmem:[%s9] sm:$0xff]
        %v2663 = vld [vmem:[%s9 + $0x8] sm:$0xff]
        %v2664 = vld [vmem:[%s9 + $0x10] sm:$0xff]
        %v2665 = vld [vmem:[%s9 + $0x18] sm:$0xff]
        %v2666 = vld [vmem:[%s9 + $0x20] sm:$0xff]
        %v2667 = vld [vmem:[%s9 + $0x28] sm:$0xff]
        %v2668 = vld [vmem:[%s9 + $0x30] sm:$0xff]
        %v2669 = vld [vmem:[%s9 + $0x38] sm:$0xff]
        %v2670 = vld [vmem:[%s10] sm:$0x1]
        %v2672 = vlaneseq
        %v2673 = vshrl.u32 %v2672, 7
        %v2674 = vsub.s32 0, %v2673
        %v2675 = vrot.slane %v2670, %v2674
        %vm2677 = vcmask 523264
        %v2679 = vsel %vm2677, %v2661, 0
        %2681 = vmatprep.subr.mxu0 0.0
        %2682 = vmatpush1.msra.mxu0 %v2662
        %2683 = vmatprep.subr.mxu0 0.0
        %2684 = vmatpush1.msra.mxu0 %v2663
        %2685 = vmatprep.subr.mxu0 0.0
        %2686 = vmatpush1.msra.mxu0 %v2664
        %2687 = vmatprep.subr.mxu0 0.0
        %2688 = vmatpush1.msra.mxu0 %v2665
        %2689 = vmatprep.subr.mxu0 0.0
        %2690 = vmatpush1.msra.mxu0 %v2666
        %2691 = vmatprep.subr.mxu0 0.0
        %2692 = vmatpush1.msra.mxu0 %v2667
        %2693 = vmatprep.subr.mxu0 0.0
        %2694 = vmatpush1.msra.mxu0 %v2668
        %2695 = vmatprep.subr.mxu0 0.0
        %2696 = vmatpush1.msra.mxu0 %v2669
        %2697 = vmatprep.subr.mxu0 0.0
        %2698 = vmatpush1.msra.mxu0 0.0
        %2699 = vmatprep.subr.mxu0 0.0
        %2700 = vmatpush1.msra.mxu0 0.0
        %2701 = vmatprep.subr.mxu0 0.0
        %2702 = vmatpush1.msra.mxu0 0.0
        %2703 = vmatprep.subr.mxu0 0.0
        %2704 = vmatpush1.msra.mxu0 0.0
        %2705 = vmatprep.subr.mxu0 0.0
        %2706 = vmatpush1.msra.mxu0 0.0
        %2707 = vmatprep.subr.mxu0 0.0
        %2708 = vmatpush1.msra.mxu0 0.0
        %2709 = vmatprep.subr.mxu0 0.0
        %2710 = vmatpush1.msra.mxu0 0.0
        %2711 = vmatprep.subr.mxu0 0.0
        %2712 = vmatpush1.msra.mxu0 0.0
        %2713 = vmatprep.subr.mxu0 0.0
        %2714 = vmatpush1.msra.mxu0 0.0
        %2715 = vmatprep.subr.mxu0 0.0
        %2716 = vmatpush1.msra.mxu0 0.0
        %2717 = vmatprep.subr.mxu0 0.0
        %2718 = vmatpush1.msra.mxu0 0.0
        %2719 = vmatprep.subr.mxu0 0.0
        %2720 = vmatpush1.msra.mxu0 0.0
        %2721 = vmatprep.subr.mxu0 0.0
        %2722 = vmatpush1.msra.mxu0 0.0
        %2723 = vmatprep.subr.mxu0 0.0
        %2724 = vmatpush1.msra.mxu0 0.0
        %2725 = vmatprep.subr.mxu0 0.0
        %2726 = vmatpush1.msra.mxu0 0.0
        %2727 = vmatprep.subr.mxu0 0.0
        %2728 = vmatpush1.msra.mxu0 0.0
        %2729 = vmatprep.subr.mxu0 0.0
        %2730 = vmatpush1.msra.mxu0 0.0
        %2731 = vmatprep.subr.mxu0 0.0
        %2732 = vmatpush1.msra.mxu0 0.0
        %2733 = vmatprep.subr.mxu0 0.0
        %2734 = vmatpush1.msra.mxu0 0.0
        %2735 = vmatprep.subr.mxu0 0.0
        %2736 = vmatpush1.msra.mxu0 0.0
        %2737 = vmatprep.subr.mxu0 0.0
        %2738 = vmatpush1.msra.mxu0 0.0
        %2739 = vmatprep.subr.mxu0 0.0
        %2740 = vmatpush1.msra.mxu0 0.0
        %2741 = vmatprep.subr.mxu0 0.0
        %2742 = vmatpush1.msra.mxu0 0.0
        %2743 = vmatprep.subr.mxu0 0.0
        %2744 = vmatpush1.msra.mxu0 0.0
        %2745 = vmatprep.mubr.f32.mxu0 0.0
        %2746 = vmatmul.mubr.f32.gmra.mrb[0].mxu0 %v2679
        %v2747 = vpop.f32.mrb[0].mxu0
        %v2748 = vadd.f32 %v2675, %v2747
        %v2749 = vpop.f32.mrb[0].mxu0
        %2750 = vdwg.mxu0
        %v2751 = vld [vmem:[%s13] sm:$0x1]
        %v2752 = vld [vmem:[%s14] sm:$0x1]
        %v2753 = vadd.f32 %v2576, %v2748
        %v2754 = vsel %vm754, %v2753, 0.0
        %2755 = vadd.xlane.f32.xlu0 %v2754
        %v2756 = vpop.xlane.xlu0 %2755
        %v2757 = vmul.f32 %v2756, %v2552
        %v2758 = vsub.f32 %v2753, %v2757
        %v2759 = vmul.f32 %v2758, %v2758
        %v2760 = vsel %vm754, %v2759, 0.0
        %2761 = vadd.xlane.f32.xlu0 %v2760
        %v2762 = vpop.xlane.xlu0 %2761
        %v2763 = vmul.f32 %v2762, %v2552
        %v2764 = vadd.f32 %v2763, 1e-05
        %v2765 = vrsqrt.pop %v2764
        %v2766 = vmul.f32 %v2758, %v2765
        %v2768 = vlaneseq
        %v2769 = vshrl.u32 %v2768, 7
        %v2770 = vsub.s32 0, %v2769
        %v2771 = vrot.slane %v2751, %v2770
        %v2773 = vmul.f32 %v2766, %v2771
        %v2775 = vlaneseq
        %v2776 = vshrl.u32 %v2775, 7
        %v2777 = vsub.s32 0, %v2776
        %v2778 = vrot.slane %v2752, %v2777
        %v2780 = vadd.f32 %v2773, %v2778
        %s2781 = scalar_lea.vmem %s3, 384
        %v2782 = vld [vmem:[%s2781] sm:$0xff]
        %v2783 = vld [vmem:[%s2781 + $0x8] sm:$0xff]
        %v2784 = vld [vmem:[%s2781 + $0x10] sm:$0xff]
        %v2785 = vld [vmem:[%s2781 + $0x18] sm:$0xff]
        %v2786 = vld [vmem:[%s2781 + $0x20] sm:$0xff]
        %v2787 = vld [vmem:[%s2781 + $0x28] sm:$0xff]
        %v2788 = vld [vmem:[%s2781 + $0x30] sm:$0xff]
        %v2789 = vld [vmem:[%s2781 + $0x38] sm:$0xff]
        %v2790 = vld [vmem:[%s2781 + $0x40] sm:$0xff]
        %v2791 = vld [vmem:[%s2781 + $0x48] sm:$0xff]
        %v2792 = vld [vmem:[%s2781 + $0x50] sm:$0xff]
        %v2793 = vld [vmem:[%s2781 + $0x58] sm:$0xff]
        %v2794 = vld [vmem:[%s2781 + $0x60] sm:$0xff]
        %v2795 = vld [vmem:[%s2781 + $0x68] sm:$0xff]
        %v2796 = vld [vmem:[%s2781 + $0x70] sm:$0xff]
        %v2797 = vld [vmem:[%s2781 + $0x78] sm:$0xff]
        %v2798 = vld [vmem:[%s2781 + $0x80] sm:$0xff]
        %v2799 = vld [vmem:[%s2781 + $0x88] sm:$0xff]
        %v2800 = vld [vmem:[%s2781 + $0x90] sm:$0xff]
        %v2801 = vld [vmem:[%s2781 + $0x98] sm:$0xff]
        %v2802 = vld [vmem:[%s2781 + $0xa0] sm:$0xff]
        %v2803 = vld [vmem:[%s2781 + $0xa8] sm:$0xff]
        %v2804 = vld [vmem:[%s2781 + $0xb0] sm:$0xff]
        %v2805 = vld [vmem:[%s2781 + $0xb8] sm:$0xff]
        %v2806 = vld [vmem:[%s2781 + $0xc0] sm:$0xff]
        %v2807 = vld [vmem:[%s2781 + $0xc8] sm:$0xff]
        %v2808 = vld [vmem:[%s2781 + $0xd0] sm:$0xff]
        %v2809 = vld [vmem:[%s2781 + $0xd8] sm:$0xff]
        %v2810 = vld [vmem:[%s2781 + $0xe0] sm:$0xff]
        %v2811 = vld [vmem:[%s2781 + $0xe8] sm:$0xff]
        %v2812 = vld [vmem:[%s2781 + $0xf0] sm:$0xff]
        %v2813 = vld [vmem:[%s2781 + $0xf8] sm:$0xff]
        %v2814 = vld [vmem:[%s2781 + $0x100] sm:$0xff]
        %v2815 = vld [vmem:[%s2781 + $0x108] sm:$0xff]
        %v2816 = vld [vmem:[%s2781 + $0x110] sm:$0xff]
        %v2817 = vld [vmem:[%s2781 + $0x118] sm:$0xff]
        %v2818 = vld [vmem:[%s2781 + $0x120] sm:$0xff]
        %v2819 = vld [vmem:[%s2781 + $0x128] sm:$0xff]
        %v2820 = vld [vmem:[%s2781 + $0x130] sm:$0xff]
        %v2821 = vld [vmem:[%s2781 + $0x138] sm:$0xff]
        %v2822 = vld [vmem:[%s2781 + $0x140] sm:$0xff]
        %v2823 = vld [vmem:[%s2781 + $0x148] sm:$0xff]
        %v2824 = vld [vmem:[%s2781 + $0x150] sm:$0xff]
        %v2825 = vld [vmem:[%s2781 + $0x158] sm:$0xff]
        %v2826 = vld [vmem:[%s2781 + $0x160] sm:$0xff]
        %v2827 = vld [vmem:[%s2781 + $0x168] sm:$0xff]
        %v2828 = vld [vmem:[%s2781 + $0x170] sm:$0xff]
        %v2829 = vld [vmem:[%s2781 + $0x178] sm:$0xff]
        %s2830 = scalar_lea.vmem %s4, 12
        %v2831 = vld [vmem:[%s2830] sm:$0x1]
        %v2832 = vld [vmem:[%s2830 + $0x1] sm:$0x1]
        %v2833 = vld [vmem:[%s2830 + $0x2] sm:$0x1]
        %v2834 = vld [vmem:[%s2830 + $0x3] sm:$0x1]
        %v2835 = vld [vmem:[%s2830 + $0x4] sm:$0x1]
        %v2836 = vld [vmem:[%s2830 + $0x5] sm:$0x1]
        %v2837 = vld [vmem:[%s2830 + $0x6] sm:$0x1]
        %v2838 = vld [vmem:[%s2830 + $0x7] sm:$0x1]
        %v2839 = vld [vmem:[%s2830 + $0x8] sm:$0x1]
        %v2840 = vld [vmem:[%s2830 + $0x9] sm:$0x1]
        %v2841 = vld [vmem:[%s2830 + $0xa] sm:$0x1]
        %v2842 = vld [vmem:[%s2830 + $0xb] sm:$0x1]
        %v2855 = vlaneseq
        %v2856 = vshrl.u32 %v2855, 7
        %v2857 = vsub.s32 0, %v2856
        %v2858 = vrot.slane %v2831, %v2857
        %v2859 = vlaneseq
        %v2860 = vshrl.u32 %v2859, 7
        %v2861 = vsub.s32 0, %v2860
        %v2862 = vrot.slane %v2832, %v2861
        %v2863 = vlaneseq
        %v2864 = vshrl.u32 %v2863, 7
        %v2865 = vsub.s32 0, %v2864
        %v2866 = vrot.slane %v2833, %v2865
        %v2867 = vlaneseq
        %v2868 = vshrl.u32 %v2867, 7
        %v2869 = vsub.s32 0, %v2868
        %v2870 = vrot.slane %v2834, %v2869
        %v2871 = vlaneseq
        %v2872 = vshrl.u32 %v2871, 7
        %v2873 = vsub.s32 0, %v2872
        %v2874 = vrot.slane %v2835, %v2873
        %v2875 = vlaneseq
        %v2876 = vshrl.u32 %v2875, 7
        %v2877 = vsub.s32 0, %v2876
        %v2878 = vrot.slane %v2836, %v2877
        %v2879 = vlaneseq
        %v2880 = vshrl.u32 %v2879, 7
        %v2881 = vsub.s32 0, %v2880
        %v2882 = vrot.slane %v2837, %v2881
        %v2883 = vlaneseq
        %v2884 = vshrl.u32 %v2883, 7
        %v2885 = vsub.s32 0, %v2884
        %v2886 = vrot.slane %v2838, %v2885
        %v2887 = vlaneseq
        %v2888 = vshrl.u32 %v2887, 7
        %v2889 = vsub.s32 0, %v2888
        %v2890 = vrot.slane %v2839, %v2889
        %v2891 = vlaneseq
        %v2892 = vshrl.u32 %v2891, 7
        %v2893 = vsub.s32 0, %v2892
        %v2894 = vrot.slane %v2840, %v2893
        %v2895 = vlaneseq
        %v2896 = vshrl.u32 %v2895, 7
        %v2897 = vsub.s32 0, %v2896
        %v2898 = vrot.slane %v2841, %v2897
        %v2899 = vlaneseq
        %v2900 = vshrl.u32 %v2899, 7
        %v2901 = vsub.s32 0, %v2900
        %v2902 = vrot.slane %v2842, %v2901
        %v2916 = vsel %vm754, %v2780, 0
        %2918 = vmatprep.subr.mxu0 0.0
        %2919 = vmatpush1.msra.mxu0 %v2782
        %2920 = vmatprep.subr.mxu0 0.0
        %2921 = vmatpush1.msra.mxu0 %v2783
        %2922 = vmatprep.subr.mxu0 0.0
        %2923 = vmatpush1.msra.mxu0 %v2784
        %2924 = vmatprep.subr.mxu0 0.0
        %2925 = vmatpush1.msra.mxu0 %v2785
        %2926 = vmatprep.subr.mxu0 0.0
        %2927 = vmatpush1.msra.mxu0 0.0
        %2928 = vmatprep.subr.mxu0 0.0
        %2929 = vmatpush1.msra.mxu0 0.0
        %2930 = vmatprep.subr.mxu0 0.0
        %2931 = vmatpush1.msra.mxu0 0.0
        %2932 = vmatprep.subr.mxu0 0.0
        %2933 = vmatpush1.msra.mxu0 0.0
        %2934 = vmatprep.subr.mxu0 0.0
        %2935 = vmatpush1.msra.mxu0 0.0
        %2936 = vmatprep.subr.mxu0 0.0
        %2937 = vmatpush1.msra.mxu0 0.0
        %2938 = vmatprep.subr.mxu0 0.0
        %2939 = vmatpush1.msra.mxu0 0.0
        %2940 = vmatprep.subr.mxu0 0.0
        %2941 = vmatpush1.msra.mxu0 0.0
        %2942 = vmatprep.subr.mxu0 0.0
        %2943 = vmatpush1.msra.mxu0 0.0
        %2944 = vmatprep.subr.mxu0 0.0
        %2945 = vmatpush1.msra.mxu0 0.0
        %2946 = vmatprep.subr.mxu0 0.0
        %2947 = vmatpush1.msra.mxu0 0.0
        %2948 = vmatprep.subr.mxu0 0.0
        %2949 = vmatpush1.msra.mxu0 0.0
        %2950 = vmatprep.subr.mxu0 0.0
        %2951 = vmatpush1.msra.mxu0 0.0
        %2952 = vmatprep.subr.mxu0 0.0
        %2953 = vmatpush1.msra.mxu0 0.0
        %2954 = vmatprep.subr.mxu0 0.0
        %2955 = vmatpush1.msra.mxu0 0.0
        %2956 = vmatprep.subr.mxu0 0.0
        %2957 = vmatpush1.msra.mxu0 0.0
        %2958 = vmatprep.subr.mxu0 0.0
        %2959 = vmatpush1.msra.mxu0 0.0
        %2960 = vmatprep.subr.mxu0 0.0
        %2961 = vmatpush1.msra.mxu0 0.0
        %2962 = vmatprep.subr.mxu0 0.0
        %2963 = vmatpush1.msra.mxu0 0.0
        %2964 = vmatprep.subr.mxu0 0.0
        %2965 = vmatpush1.msra.mxu0 0.0
        %2966 = vmatprep.subr.mxu0 0.0
        %2967 = vmatpush1.msra.mxu0 0.0
        %2968 = vmatprep.subr.mxu0 0.0
        %2969 = vmatpush1.msra.mxu0 0.0
        %2970 = vmatprep.subr.mxu0 0.0
        %2971 = vmatpush1.msra.mxu0 0.0
        %2972 = vmatprep.subr.mxu0 0.0
        %2973 = vmatpush1.msra.mxu0 0.0
        %2974 = vmatprep.subr.mxu0 0.0
        %2975 = vmatpush1.msra.mxu0 0.0
        %2976 = vmatprep.subr.mxu0 0.0
        %2977 = vmatpush1.msra.mxu0 0.0
        %2978 = vmatprep.subr.mxu0 0.0
        %2979 = vmatpush1.msra.mxu0 0.0
        %2980 = vmatprep.subr.mxu0 0.0
        %2981 = vmatpush1.msra.mxu0 0.0
        %2982 = vmatprep.mubr.f32.mxu0 0.0
        %2983 = vmatmul.mubr.f32.gmra.mrb[0].mxu0 %v2916
        %v2984 = vpop.f32.mrb[0].mxu0
        %v2985 = vadd.f32 %v2858, %v2984
        %v2986 = vpop.f32.mrb[0].mxu0
        %2987 = vdwg.mxu0
        %2988 = vmatprep.subr.mxu0 0.0
        %2989 = vmatpush1.msra.mxu0 %v2786
        %2990 = vmatprep.subr.mxu0 0.0
        %2991 = vmatpush1.msra.mxu0 %v2787
        %2992 = vmatprep.subr.mxu0 0.0
        %2993 = vmatpush1.msra.mxu0 %v2788
        %2994 = vmatprep.subr.mxu0 0.0
        %2995 = vmatpush1.msra.mxu0 %v2789
        %2996 = vmatprep.subr.mxu0 0.0
        %2997 = vmatpush1.msra.mxu0 0.0
        %2998 = vmatprep.subr.mxu0 0.0
        %2999 = vmatpush1.msra.mxu0 0.0
        %3000 = vmatprep.subr.mxu0 0.0
        %3001 = vmatpush1.msra.mxu0 0.0
        %3002 = vmatprep.subr.mxu0 0.0
        %3003 = vmatpush1.msra.mxu0 0.0
        %3004 = vmatprep.subr.mxu0 0.0
        %3005 = vmatpush1.msra.mxu0 0.0
        %3006 = vmatprep.subr.mxu0 0.0
        %3007 = vmatpush1.msra.mxu0 0.0
        %3008 = vmatprep.subr.mxu0 0.0
        %3009 = vmatpush1.msra.mxu0 0.0
        %3010 = vmatprep.subr.mxu0 0.0
        %3011 = vmatpush1.msra.mxu0 0.0
        %3012 = vmatprep.subr.mxu0 0.0
        %3013 = vmatpush1.msra.mxu0 0.0
        %3014 = vmatprep.subr.mxu0 0.0
        %3015 = vmatpush1.msra.mxu0 0.0
        %3016 = vmatprep.subr.mxu0 0.0
        %3017 = vmatpush1.msra.mxu0 0.0
        %3018 = vmatprep.subr.mxu0 0.0
        %3019 = vmatpush1.msra.mxu0 0.0
        %3020 = vmatprep.subr.mxu0 0.0
        %3021 = vmatpush1.msra.mxu0 0.0
        %3022 = vmatprep.subr.mxu0 0.0
        %3023 = vmatpush1.msra.mxu0 0.0
        %3024 = vmatprep.subr.mxu0 0.0
        %3025 = vmatpush1.msra.mxu0 0.0
        %3026 = vmatprep.subr.mxu0 0.0
        %3027 = vmatpush1.msra.mxu0 0.0
        %3028 = vmatprep.subr.mxu0 0.0
        %3029 = vmatpush1.msra.mxu0 0.0
        %3030 = vmatprep.subr.mxu0 0.0
        %3031 = vmatpush1.msra.mxu0 0.0
        %3032 = vmatprep.subr.mxu0 0.0
        %3033 = vmatpush1.msra.mxu0 0.0
        %3034 = vmatprep.subr.mxu0 0.0
        %3035 = vmatpush1.msra.mxu0 0.0
        %3036 = vmatprep.subr.mxu0 0.0
        %3037 = vmatpush1.msra.mxu0 0.0
        %3038 = vmatprep.subr.mxu0 0.0
        %3039 = vmatpush1.msra.mxu0 0.0
        %3040 = vmatprep.subr.mxu0 0.0
        %3041 = vmatpush1.msra.mxu0 0.0
        %3042 = vmatprep.subr.mxu0 0.0
        %3043 = vmatpush1.msra.mxu0 0.0
        %3044 = vmatprep.subr.mxu0 0.0
        %3045 = vmatpush1.msra.mxu0 0.0
        %3046 = vmatprep.subr.mxu0 0.0
        %3047 = vmatpush1.msra.mxu0 0.0
        %3048 = vmatprep.subr.mxu0 0.0
        %3049 = vmatpush1.msra.mxu0 0.0
        %3050 = vmatprep.subr.mxu0 0.0
        %3051 = vmatpush1.msra.mxu0 0.0
        %3052 = vmatprep.mubr.f32.mxu0 0.0
        %3053 = vmatmul.mubr.f32.gmra.mrb[0].mxu0 %v2916
        %v3054 = vpop.f32.mrb[0].mxu0
        %v3055 = vadd.f32 %v2862, %v3054
        %v3056 = vpop.f32.mrb[0].mxu0
        %3057 = vdwg.mxu0
        %3058 = vmatprep.subr.mxu0 0.0
        %3059 = vmatpush1.msra.mxu0 %v2790
        %3060 = vmatprep.subr.mxu0 0.0
        %3061 = vmatpush1.msra.mxu0 %v2791
        %3062 = vmatprep.subr.mxu0 0.0
        %3063 = vmatpush1.msra.mxu0 %v2792
        %3064 = vmatprep.subr.mxu0 0.0
        %3065 = vmatpush1.msra.mxu0 %v2793
        %3066 = vmatprep.subr.mxu0 0.0
        %3067 = vmatpush1.msra.mxu0 0.0
        %3068 = vmatprep.subr.mxu0 0.0
        %3069 = vmatpush1.msra.mxu0 0.0
        %3070 = vmatprep.subr.mxu0 0.0
        %3071 = vmatpush1.msra.mxu0 0.0
        %3072 = vmatprep.subr.mxu0 0.0
        %3073 = vmatpush1.msra.mxu0 0.0
        %3074 = vmatprep.subr.mxu0 0.0
        %3075 = vmatpush1.msra.mxu0 0.0
        %3076 = vmatprep.subr.mxu0 0.0
        %3077 = vmatpush1.msra.mxu0 0.0
        %3078 = vmatprep.subr.mxu0 0.0
        %3079 = vmatpush1.msra.mxu0 0.0
        %3080 = vmatprep.subr.mxu0 0.0
        %3081 = vmatpush1.msra.mxu0 0.0
        %3082 = vmatprep.subr.mxu0 0.0
        %3083 = vmatpush1.msra.mxu0 0.0
        %3084 = vmatprep.subr.mxu0 0.0
        %3085 = vmatpush1.msra.mxu0 0.0
        %3086 = vmatprep.subr.mxu0 0.0
        %3087 = vmatpush1.msra.mxu0 0.0
        %3088 = vmatprep.subr.mxu0 0.0
        %3089 = vmatpush1.msra.mxu0 0.0
        %3090 = vmatprep.subr.mxu0 0.0
        %3091 = vmatpush1.msra.mxu0 0.0
        %3092 = vmatprep.subr.mxu0 0.0
        %3093 = vmatpush1.msra.mxu0 0.0
        %3094 = vmatprep.subr.mxu0 0.0
        %3095 = vmatpush1.msra.mxu0 0.0
        %3096 = vmatprep.subr.mxu0 0.0
        %3097 = vmatpush1.msra.mxu0 0.0
        %3098 = vmatprep.subr.mxu0 0.0
        %3099 = vmatpush1.msra.mxu0 0.0
        %3100 = vmatprep.subr.mxu0 0.0
        %3101 = vmatpush1.msra.mxu0 0.0
        %3102 = vmatprep.subr.mxu0 0.0
        %3103 = vmatpush1.msra.mxu0 0.0
        %3104 = vmatprep.subr.mxu0 0.0
        %3105 = vmatpush1.msra.mxu0 0.0
        %3106 = vmatprep.subr.mxu0 0.0
        %3107 = vmatpush1.msra.mxu0 0.0
        %3108 = vmatprep.subr.mxu0 0.0
        %3109 = vmatpush1.msra.mxu0 0.0
        %3110 = vmatprep.subr.mxu0 0.0
        %3111 = vmatpush1.msra.mxu0 0.0
        %3112 = vmatprep.subr.mxu0 0.0
        %3113 = vmatpush1.msra.mxu0 0.0
        %3114 = vmatprep.subr.mxu0 0.0
        %3115 = vmatpush1.msra.mxu0 0.0
        %3116 = vmatprep.subr.mxu0 0.0
        %3117 = vmatpush1.msra.mxu0 0.0
        %3118 = vmatprep.subr.mxu0 0.0
        %3119 = vmatpush1.msra.mxu0 0.0
        %3120 = vmatprep.subr.mxu0 0.0
        %3121 = vmatpush1.msra.mxu0 0.0
        %3122 = vmatprep.mubr.f32.mxu0 0.0
        %3123 = vmatmul.mubr.f32.gmra.mrb[0].mxu0 %v2916
        %v3124 = vpop.f32.mrb[0].mxu0
        %v3125 = vadd.f32 %v2866, %v3124
        %v3126 = vpop.f32.mrb[0].mxu0
        %3127 = vdwg.mxu0
        %3128 = vmatprep.subr.mxu0 0.0
        %3129 = vmatpush1.msra.mxu0 %v2794
        %3130 = vmatprep.subr.mxu0 0.0
        %3131 = vmatpush1.msra.mxu0 %v2795
        %3132 = vmatprep.subr.mxu0 0.0
        %3133 = vmatpush1.msra.mxu0 %v2796
        %3134 = vmatprep.subr.mxu0 0.0
        %3135 = vmatpush1.msra.mxu0 %v2797
        %3136 = vmatprep.subr.mxu0 0.0
        %3137 = vmatpush1.msra.mxu0 0.0
        %3138 = vmatprep.subr.mxu0 0.0
        %3139 = vmatpush1.msra.mxu0 0.0
        %3140 = vmatprep.subr.mxu0 0.0
        %3141 = vmatpush1.msra.mxu0 0.0
        %3142 = vmatprep.subr.mxu0 0.0
        %3143 = vmatpush1.msra.mxu0 0.0
        %3144 = vmatprep.subr.mxu0 0.0
        %3145 = vmatpush1.msra.mxu0 0.0
        %3146 = vmatprep.subr.mxu0 0.0
        %3147 = vmatpush1.msra.mxu0 0.0
        %3148 = vmatprep.subr.mxu0 0.0
        %3149 = vmatpush1.msra.mxu0 0.0
        %3150 = vmatprep.subr.mxu0 0.0
        %3151 = vmatpush1.msra.mxu0 0.0
        %3152 = vmatprep.subr.mxu0 0.0
        %3153 = vmatpush1.msra.mxu0 0.0
        %3154 = vmatprep.subr.mxu0 0.0
        %3155 = vmatpush1.msra.mxu0 0.0
        %3156 = vmatprep.subr.mxu0 0.0
        %3157 = vmatpush1.msra.mxu0 0.0
        %3158 = vmatprep.subr.mxu0 0.0
        %3159 = vmatpush1.msra.mxu0 0.0
        %3160 = vmatprep.subr.mxu0 0.0
        %3161 = vmatpush1.msra.mxu0 0.0
        %3162 = vmatprep.subr.mxu0 0.0
        %3163 = vmatpush1.msra.mxu0 0.0
        %3164 = vmatprep.subr.mxu0 0.0
        %3165 = vmatpush1.msra.mxu0 0.0
        %3166 = vmatprep.subr.mxu0 0.0
        %3167 = vmatpush1.msra.mxu0 0.0
        %3168 = vmatprep.subr.mxu0 0.0
        %3169 = vmatpush1.msra.mxu0 0.0
        %3170 = vmatprep.subr.mxu0 0.0
        %3171 = vmatpush1.msra.mxu0 0.0
        %3172 = vmatprep.subr.mxu0 0.0
        %3173 = vmatpush1.msra.mxu0 0.0
        %3174 = vmatprep.subr.mxu0 0.0
        %3175 = vmatpush1.msra.mxu0 0.0
        %3176 = vmatprep.subr.mxu0 0.0
        %3177 = vmatpush1.msra.mxu0 0.0
        %3178 = vmatprep.subr.mxu0 0.0
        %3179 = vmatpush1.msra.mxu0 0.0
        %3180 = vmatprep.subr.mxu0 0.0
        %3181 = vmatpush1.msra.mxu0 0.0
        %3182 = vmatprep.subr.mxu0 0.0
        %3183 = vmatpush1.msra.mxu0 0.0
        %3184 = vmatprep.subr.mxu0 0.0
        %3185 = vmatpush1.msra.mxu0 0.0
        %3186 = vmatprep.subr.mxu0 0.0
        %3187 = vmatpush1.msra.mxu0 0.0
        %3188 = vmatprep.subr.mxu0 0.0
        %3189 = vmatpush1.msra.mxu0 0.0
        %3190 = vmatprep.subr.mxu0 0.0
        %3191 = vmatpush1.msra.mxu0 0.0
        %3192 = vmatprep.mubr.f32.mxu0 0.0
        %3193 = vmatmul.mubr.f32.gmra.mrb[0].mxu0 %v2916
        %v3194 = vpop.f32.mrb[0].mxu0
        %v3195 = vadd.f32 %v2870, %v3194
        %v3196 = vpop.f32.mrb[0].mxu0
        %3197 = vdwg.mxu0
        %3198 = vmatprep.subr.mxu0 0.0
        %3199 = vmatpush1.msra.mxu0 %v2798
        %3200 = vmatprep.subr.mxu0 0.0
        %3201 = vmatpush1.msra.mxu0 %v2799
        %3202 = vmatprep.subr.mxu0 0.0
        %3203 = vmatpush1.msra.mxu0 %v2800
        %3204 = vmatprep.subr.mxu0 0.0
        %3205 = vmatpush1.msra.mxu0 %v2801
        %3206 = vmatprep.subr.mxu0 0.0
        %3207 = vmatpush1.msra.mxu0 0.0
        %3208 = vmatprep.subr.mxu0 0.0
        %3209 = vmatpush1.msra.mxu0 0.0
        %3210 = vmatprep.subr.mxu0 0.0
        %3211 = vmatpush1.msra.mxu0 0.0
        %3212 = vmatprep.subr.mxu0 0.0
        %3213 = vmatpush1.msra.mxu0 0.0
        %3214 = vmatprep.subr.mxu0 0.0
        %3215 = vmatpush1.msra.mxu0 0.0
        %3216 = vmatprep.subr.mxu0 0.0
        %3217 = vmatpush1.msra.mxu0 0.0
        %3218 = vmatprep.subr.mxu0 0.0
        %3219 = vmatpush1.msra.mxu0 0.0
        %3220 = vmatprep.subr.mxu0 0.0
        %3221 = vmatpush1.msra.mxu0 0.0
        %3222 = vmatprep.subr.mxu0 0.0
        %3223 = vmatpush1.msra.mxu0 0.0
        %3224 = vmatprep.subr.mxu0 0.0
        %3225 = vmatpush1.msra.mxu0 0.0
        %3226 = vmatprep.subr.mxu0 0.0
        %3227 = vmatpush1.msra.mxu0 0.0
        %3228 = vmatprep.subr.mxu0 0.0
        %3229 = vmatpush1.msra.mxu0 0.0
        %3230 = vmatprep.subr.mxu0 0.0
        %3231 = vmatpush1.msra.mxu0 0.0
        %3232 = vmatprep.subr.mxu0 0.0
        %3233 = vmatpush1.msra.mxu0 0.0
        %3234 = vmatprep.subr.mxu0 0.0
        %3235 = vmatpush1.msra.mxu0 0.0
        %3236 = vmatprep.subr.mxu0 0.0
        %3237 = vmatpush1.msra.mxu0 0.0
        %3238 = vmatprep.subr.mxu0 0.0
        %3239 = vmatpush1.msra.mxu0 0.0
        %3240 = vmatprep.subr.mxu0 0.0
        %3241 = vmatpush1.msra.mxu0 0.0
        %3242 = vmatprep.subr.mxu0 0.0
        %3243 = vmatpush1.msra.mxu0 0.0
        %3244 = vmatprep.subr.mxu0 0.0
        %3245 = vmatpush1.msra.mxu0 0.0
        %3246 = vmatprep.subr.mxu0 0.0
        %3247 = vmatpush1.msra.mxu0 0.0
        %3248 = vmatprep.subr.mxu0 0.0
        %3249 = vmatpush1.msra.mxu0 0.0
        %3250 = vmatprep.subr.mxu0 0.0
        %3251 = vmatpush1.msra.mxu0 0.0
        %3252 = vmatprep.subr.mxu0 0.0
        %3253 = vmatpush1.msra.mxu0 0.0
        %3254 = vmatprep.subr.mxu0 0.0
        %3255 = vmatpush1.msra.mxu0 0.0
        %3256 = vmatprep.subr.mxu0 0.0
        %3257 = vmatpush1.msra.mxu0 0.0
        %3258 = vmatprep.subr.mxu0 0.0
        %3259 = vmatpush1.msra.mxu0 0.0
        %3260 = vmatprep.subr.mxu0 0.0
        %3261 = vmatpush1.msra.mxu0 0.0
        %3262 = vmatprep.mubr.f32.mxu0 0.0
        %3263 = vmatmul.mubr.f32.gmra.mrb[0].mxu0 %v2916
        %v3264 = vpop.f32.mrb[0].mxu0
        %v3265 = vadd.f32 %v2874, %v3264
        %v3266 = vpop.f32.mrb[0].mxu0
        %3267 = vdwg.mxu0
        %3268 = vmatprep.subr.mxu0 0.0
        %3269 = vmatpush1.msra.mxu0 %v2802
        %3270 = vmatprep.subr.mxu0 0.0
        %3271 = vmatpush1.msra.mxu0 %v2803
        %3272 = vmatprep.subr.mxu0 0.0
        %3273 = vmatpush1.msra.mxu0 %v2804
        %3274 = vmatprep.subr.mxu0 0.0
        %3275 = vmatpush1.msra.mxu0 %v2805
        %3276 = vmatprep.subr.mxu0 0.0
        %3277 = vmatpush1.msra.mxu0 0.0
        %3278 = vmatprep.subr.mxu0 0.0
        %3279 = vmatpush1.msra.mxu0 0.0
        %3280 = vmatprep.subr.mxu0 0.0
        %3281 = vmatpush1.msra.mxu0 0.0
        %3282 = vmatprep.subr.mxu0 0.0
        %3283 = vmatpush1.msra.mxu0 0.0
        %3284 = vmatprep.subr.mxu0 0.0
        %3285 = vmatpush1.msra.mxu0 0.0
        %3286 = vmatprep.subr.mxu0 0.0
        %3287 = vmatpush1.msra.mxu0 0.0
        %3288 = vmatprep.subr.mxu0 0.0
        %3289 = vmatpush1.msra.mxu0 0.0
        %3290 = vmatprep.subr.mxu0 0.0
        %3291 = vmatpush1.msra.mxu0 0.0
        %3292 = vmatprep.subr.mxu0 0.0
        %3293 = vmatpush1.msra.mxu0 0.0
        %3294 = vmatprep.subr.mxu0 0.0
        %3295 = vmatpush1.msra.mxu0 0.0
        %3296 = vmatprep.subr.mxu0 0.0
        %3297 = vmatpush1.msra.mxu0 0.0
        %3298 = vmatprep.subr.mxu0 0.0
        %3299 = vmatpush1.msra.mxu0 0.0
        %3300 = vmatprep.subr.mxu0 0.0
        %3301 = vmatpush1.msra.mxu0 0.0
        %3302 = vmatprep.subr.mxu0 0.0
        %3303 = vmatpush1.msra.mxu0 0.0
        %3304 = vmatprep.subr.mxu0 0.0
        %3305 = vmatpush1.msra.mxu0 0.0
        %3306 = vmatprep.subr.mxu0 0.0
        %3307 = vmatpush1.msra.mxu0 0.0
        %3308 = vmatprep.subr.mxu0 0.0
        %3309 = vmatpush1.msra.mxu0 0.0
        %3310 = vmatprep.subr.mxu0 0.0
        %3311 = vmatpush1.msra.mxu0 0.0
        %3312 = vmatprep.subr.mxu0 0.0
        %3313 = vmatpush1.msra.mxu0 0.0
        %3314 = vmatprep.subr.mxu0 0.0
        %3315 = vmatpush1.msra.mxu0 0.0
        %3316 = vmatprep.subr.mxu0 0.0
        %3317 = vmatpush1.msra.mxu0 0.0
        %3318 = vmatprep.subr.mxu0 0.0
        %3319 = vmatpush1.msra.mxu0 0.0
        %3320 = vmatprep.subr.mxu0 0.0
        %3321 = vmatpush1.msra.mxu0 0.0
        %3322 = vmatprep.subr.mxu0 0.0
        %3323 = vmatpush1.msra.mxu0 0.0
        %3324 = vmatprep.subr.mxu0 0.0
        %3325 = vmatpush1.msra.mxu0 0.0
        %3326 = vmatprep.subr.mxu0 0.0
        %3327 = vmatpush1.msra.mxu0 0.0
        %3328 = vmatprep.subr.mxu0 0.0
        %3329 = vmatpush1.msra.mxu0 0.0
        %3330 = vmatprep.subr.mxu0 0.0
        %3331 = vmatpush1.msra.mxu0 0.0
        %3332 = vmatprep.mubr.f32.mxu0 0.0
        %3333 = vmatmul.mubr.f32.gmra.mrb[0].mxu0 %v2916
        %v3334 = vpop.f32.mrb[0].mxu0
        %v3335 = vadd.f32 %v2878, %v3334
        %v3336 = vpop.f32.mrb[0].mxu0
        %3337 = vdwg.mxu0
        %3338 = vmatprep.subr.mxu0 0.0
        %3339 = vmatpush1.msra.mxu0 %v2806
        %3340 = vmatprep.subr.mxu0 0.0
        %3341 = vmatpush1.msra.mxu0 %v2807
        %3342 = vmatprep.subr.mxu0 0.0
        %3343 = vmatpush1.msra.mxu0 %v2808
        %3344 = vmatprep.subr.mxu0 0.0
        %3345 = vmatpush1.msra.mxu0 %v2809
        %3346 = vmatprep.subr.mxu0 0.0
        %3347 = vmatpush1.msra.mxu0 0.0
        %3348 = vmatprep.subr.mxu0 0.0
        %3349 = vmatpush1.msra.mxu0 0.0
        %3350 = vmatprep.subr.mxu0 0.0
        %3351 = vmatpush1.msra.mxu0 0.0
        %3352 = vmatprep.subr.mxu0 0.0
        %3353 = vmatpush1.msra.mxu0 0.0
        %3354 = vmatprep.subr.mxu0 0.0
        %3355 = vmatpush1.msra.mxu0 0.0
        %3356 = vmatprep.subr.mxu0 0.0
        %3357 = vmatpush1.msra.mxu0 0.0
        %3358 = vmatprep.subr.mxu0 0.0
        %3359 = vmatpush1.msra.mxu0 0.0
        %3360 = vmatprep.subr.mxu0 0.0
        %3361 = vmatpush1.msra.mxu0 0.0
        %3362 = vmatprep.subr.mxu0 0.0
        %3363 = vmatpush1.msra.mxu0 0.0
        %3364 = vmatprep.subr.mxu0 0.0
        %3365 = vmatpush1.msra.mxu0 0.0
        %3366 = vmatprep.subr.mxu0 0.0
        %3367 = vmatpush1.msra.mxu0 0.0
        %3368 = vmatprep.subr.mxu0 0.0
        %3369 = vmatpush1.msra.mxu0 0.0
        %3370 = vmatprep.subr.mxu0 0.0
        %3371 = vmatpush1.msra.mxu0 0.0
        %3372 = vmatprep.subr.mxu0 0.0
        %3373 = vmatpush1.msra.mxu0 0.0
        %3374 = vmatprep.subr.mxu0 0.0
        %3375 = vmatpush1.msra.mxu0 0.0
        %3376 = vmatprep.subr.mxu0 0.0
        %3377 = vmatpush1.msra.mxu0 0.0
        %3378 = vmatprep.subr.mxu0 0.0
        %3379 = vmatpush1.msra.mxu0 0.0
        %3380 = vmatprep.subr.mxu0 0.0
        %3381 = vmatpush1.msra.mxu0 0.0
        %3382 = vmatprep.subr.mxu0 0.0
        %3383 = vmatpush1.msra.mxu0 0.0
        %3384 = vmatprep.subr.mxu0 0.0
        %3385 = vmatpush1.msra.mxu0 0.0
        %3386 = vmatprep.subr.mxu0 0.0
        %3387 = vmatpush1.msra.mxu0 0.0
        %3388 = vmatprep.subr.mxu0 0.0
        %3389 = vmatpush1.msra.mxu0 0.0
        %3390 = vmatprep.subr.mxu0 0.0
        %3391 = vmatpush1.msra.mxu0 0.0
        %3392 = vmatprep.subr.mxu0 0.0
        %3393 = vmatpush1.msra.mxu0 0.0
        %3394 = vmatprep.subr.mxu0 0.0
        %3395 = vmatpush1.msra.mxu0 0.0
        %3396 = vmatprep.subr.mxu0 0.0
        %3397 = vmatpush1.msra.mxu0 0.0
        %3398 = vmatprep.subr.mxu0 0.0
        %3399 = vmatpush1.msra.mxu0 0.0
        %3400 = vmatprep.subr.mxu0 0.0
        %3401 = vmatpush1.msra.mxu0 0.0
        %3402 = vmatprep.mubr.f32.mxu0 0.0
        %3403 = vmatmul.mubr.f32.gmra.mrb[0].mxu0 %v2916
        %v3404 = vpop.f32.mrb[0].mxu0
        %v3405 = vadd.f32 %v2882, %v3404
        %v3406 = vpop.f32.mrb[0].mxu0
        %3407 = vdwg.mxu0
        %3408 = vmatprep.subr.mxu0 0.0
        %3409 = vmatpush1.msra.mxu0 %v2810
        %3410 = vmatprep.subr.mxu0 0.0
        %3411 = vmatpush1.msra.mxu0 %v2811
        %3412 = vmatprep.subr.mxu0 0.0
        %3413 = vmatpush1.msra.mxu0 %v2812
        %3414 = vmatprep.subr.mxu0 0.0
        %3415 = vmatpush1.msra.mxu0 %v2813
        %3416 = vmatprep.subr.mxu0 0.0
        %3417 = vmatpush1.msra.mxu0 0.0
        %3418 = vmatprep.subr.mxu0 0.0
        %3419 = vmatpush1.msra.mxu0 0.0
        %3420 = vmatprep.subr.mxu0 0.0
        %3421 = vmatpush1.msra.mxu0 0.0
        %3422 = vmatprep.subr.mxu0 0.0
        %3423 = vmatpush1.msra.mxu0 0.0
        %3424 = vmatprep.subr.mxu0 0.0
        %3425 = vmatpush1.msra.mxu0 0.0
        %3426 = vmatprep.subr.mxu0 0.0
        %3427 = vmatpush1.msra.mxu0 0.0
        %3428 = vmatprep.subr.mxu0 0.0
        %3429 = vmatpush1.msra.mxu0 0.0
        %3430 = vmatprep.subr.mxu0 0.0
        %3431 = vmatpush1.msra.mxu0 0.0
        %3432 = vmatprep.subr.mxu0 0.0
        %3433 = vmatpush1.msra.mxu0 0.0
        %3434 = vmatprep.subr.mxu0 0.0
        %3435 = vmatpush1.msra.mxu0 0.0
        %3436 = vmatprep.subr.mxu0 0.0
        %3437 = vmatpush1.msra.mxu0 0.0
        %3438 = vmatprep.subr.mxu0 0.0
        %3439 = vmatpush1.msra.mxu0 0.0
        %3440 = vmatprep.subr.mxu0 0.0
        %3441 = vmatpush1.msra.mxu0 0.0
        %3442 = vmatprep.subr.mxu0 0.0
        %3443 = vmatpush1.msra.mxu0 0.0
        %3444 = vmatprep.subr.mxu0 0.0
        %3445 = vmatpush1.msra.mxu0 0.0
        %3446 = vmatprep.subr.mxu0 0.0
        %3447 = vmatpush1.msra.mxu0 0.0
        %3448 = vmatprep.subr.mxu0 0.0
        %3449 = vmatpush1.msra.mxu0 0.0
        %3450 = vmatprep.subr.mxu0 0.0
        %3451 = vmatpush1.msra.mxu0 0.0
        %3452 = vmatprep.subr.mxu0 0.0
        %3453 = vmatpush1.msra.mxu0 0.0
        %3454 = vmatprep.subr.mxu0 0.0
        %3455 = vmatpush1.msra.mxu0 0.0
        %3456 = vmatprep.subr.mxu0 0.0
        %3457 = vmatpush1.msra.mxu0 0.0
        %3458 = vmatprep.subr.mxu0 0.0
        %3459 = vmatpush1.msra.mxu0 0.0
        %3460 = vmatprep.subr.mxu0 0.0
        %3461 = vmatpush1.msra.mxu0 0.0
        %3462 = vmatprep.subr.mxu0 0.0
        %3463 = vmatpush1.msra.mxu0 0.0
        %3464 = vmatprep.subr.mxu0 0.0
        %3465 = vmatpush1.msra.mxu0 0.0
        %3466 = vmatprep.subr.mxu0 0.0
        %3467 = vmatpush1.msra.mxu0 0.0
        %3468 = vmatprep.subr.mxu0 0.0
        %3469 = vmatpush1.msra.mxu0 0.0
        %3470 = vmatprep.subr.mxu0 0.0
        %3471 = vmatpush1.msra.mxu0 0.0
        %3472 = vmatprep.mubr.f32.mxu0 0.0
        %3473 = vmatmul.mubr.f32.gmra.mrb[0].mxu0 %v2916
        %v3474 = vpop.f32.mrb[0].mxu0
        %v3475 = vadd.f32 %v2886, %v3474
        %v3476 = vpop.f32.mrb[0].mxu0
        %3477 = vdwg.mxu0
        %3478 = vmatprep.subr.mxu0 0.0
        %3479 = vmatpush1.msra.mxu0 %v2814
        %3480 = vmatprep.subr.mxu0 0.0
        %3481 = vmatpush1.msra.mxu0 %v2815
        %3482 = vmatprep.subr.mxu0 0.0
        %3483 = vmatpush1.msra.mxu0 %v2816
        %3484 = vmatprep.subr.mxu0 0.0
        %3485 = vmatpush1.msra.mxu0 %v2817
        %3486 = vmatprep.subr.mxu0 0.0
        %3487 = vmatpush1.msra.mxu0 0.0
        %3488 = vmatprep.subr.mxu0 0.0
        %3489 = vmatpush1.msra.mxu0 0.0
        %3490 = vmatprep.subr.mxu0 0.0
        %3491 = vmatpush1.msra.mxu0 0.0
        %3492 = vmatprep.subr.mxu0 0.0
        %3493 = vmatpush1.msra.mxu0 0.0
        %3494 = vmatprep.subr.mxu0 0.0
        %3495 = vmatpush1.msra.mxu0 0.0
        %3496 = vmatprep.subr.mxu0 0.0
        %3497 = vmatpush1.msra.mxu0 0.0
        %3498 = vmatprep.subr.mxu0 0.0
        %3499 = vmatpush1.msra.mxu0 0.0
        %3500 = vmatprep.subr.mxu0 0.0
        %3501 = vmatpush1.msra.mxu0 0.0
        %3502 = vmatprep.subr.mxu0 0.0
        %3503 = vmatpush1.msra.mxu0 0.0
        %3504 = vmatprep.subr.mxu0 0.0
        %3505 = vmatpush1.msra.mxu0 0.0
        %3506 = vmatprep.subr.mxu0 0.0
        %3507 = vmatpush1.msra.mxu0 0.0
        %3508 = vmatprep.subr.mxu0 0.0
        %3509 = vmatpush1.msra.mxu0 0.0
        %3510 = vmatprep.subr.mxu0 0.0
        %3511 = vmatpush1.msra.mxu0 0.0
        %3512 = vmatprep.subr.mxu0 0.0
        %3513 = vmatpush1.msra.mxu0 0.0
        %3514 = vmatprep.subr.mxu0 0.0
        %3515 = vmatpush1.msra.mxu0 0.0
        %3516 = vmatprep.subr.mxu0 0.0
        %3517 = vmatpush1.msra.mxu0 0.0
        %3518 = vmatprep.subr.mxu0 0.0
        %3519 = vmatpush1.msra.mxu0 0.0
        %3520 = vmatprep.subr.mxu0 0.0
        %3521 = vmatpush1.msra.mxu0 0.0
        %3522 = vmatprep.subr.mxu0 0.0
        %3523 = vmatpush1.msra.mxu0 0.0
        %3524 = vmatprep.subr.mxu0 0.0
        %3525 = vmatpush1.msra.mxu0 0.0
        %3526 = vmatprep.subr.mxu0 0.0
        %3527 = vmatpush1.msra.mxu0 0.0
        %3528 = vmatprep.subr.mxu0 0.0
        %3529 = vmatpush1.msra.mxu0 0.0
        %3530 = vmatprep.subr.mxu0 0.0
        %3531 = vmatpush1.msra.mxu0 0.0
        %3532 = vmatprep.subr.mxu0 0.0
        %3533 = vmatpush1.msra.mxu0 0.0
        %3534 = vmatprep.subr.mxu0 0.0
        %3535 = vmatpush1.msra.mxu0 0.0
        %3536 = vmatprep.subr.mxu0 0.0
        %3537 = vmatpush1.msra.mxu0 0.0
        %3538 = vmatprep.subr.mxu0 0.0
        %3539 = vmatpush1.msra.mxu0 0.0
        %3540 = vmatprep.subr.mxu0 0.0
        %3541 = vmatpush1.msra.mxu0 0.0
        %3542 = vmatprep.mubr.f32.mxu0 0.0
        %3543 = vmatmul.mubr.f32.gmra.mrb[0].mxu0 %v2916
        %v3544 = vpop.f32.mrb[0].mxu0
        %v3545 = vadd.f32 %v2890, %v3544
        %v3546 = vpop.f32.mrb[0].mxu0
        %3547 = vdwg.mxu0
        %3548 = vmatprep.subr.mxu0 0.0
        %3549 = vmatpush1.msra.mxu0 %v2818
        %3550 = vmatprep.subr.mxu0 0.0
        %3551 = vmatpush1.msra.mxu0 %v2819
        %3552 = vmatprep.subr.mxu0 0.0
        %3553 = vmatpush1.msra.mxu0 %v2820
        %3554 = vmatprep.subr.mxu0 0.0
        %3555 = vmatpush1.msra.mxu0 %v2821
        %3556 = vmatprep.subr.mxu0 0.0
        %3557 = vmatpush1.msra.mxu0 0.0
        %3558 = vmatprep.subr.mxu0 0.0
        %3559 = vmatpush1.msra.mxu0 0.0
        %3560 = vmatprep.subr.mxu0 0.0
        %3561 = vmatpush1.msra.mxu0 0.0
        %3562 = vmatprep.subr.mxu0 0.0
        %3563 = vmatpush1.msra.mxu0 0.0
        %3564 = vmatprep.subr.mxu0 0.0
        %3565 = vmatpush1.msra.mxu0 0.0
        %3566 = vmatprep.subr.mxu0 0.0
        %3567 = vmatpush1.msra.mxu0 0.0
        %3568 = vmatprep.subr.mxu0 0.0
        %3569 = vmatpush1.msra.mxu0 0.0
        %3570 = vmatprep.subr.mxu0 0.0
        %3571 = vmatpush1.msra.mxu0 0.0
        %3572 = vmatprep.subr.mxu0 0.0
        %3573 = vmatpush1.msra.mxu0 0.0
        %3574 = vmatprep.subr.mxu0 0.0
        %3575 = vmatpush1.msra.mxu0 0.0
        %3576 = vmatprep.subr.mxu0 0.0
        %3577 = vmatpush1.msra.mxu0 0.0
        %3578 = vmatprep.subr.mxu0 0.0
        %3579 = vmatpush1.msra.mxu0 0.0
        %3580 = vmatprep.subr.mxu0 0.0
        %3581 = vmatpush1.msra.mxu0 0.0
        %3582 = vmatprep.subr.mxu0 0.0
        %3583 = vmatpush1.msra.mxu0 0.0
        %3584 = vmatprep.subr.mxu0 0.0
        %3585 = vmatpush1.msra.mxu0 0.0
        %3586 = vmatprep.subr.mxu0 0.0
        %3587 = vmatpush1.msra.mxu0 0.0
        %3588 = vmatprep.subr.mxu0 0.0
        %3589 = vmatpush1.msra.mxu0 0.0
        %3590 = vmatprep.subr.mxu0 0.0
        %3591 = vmatpush1.msra.mxu0 0.0
        %3592 = vmatprep.subr.mxu0 0.0
        %3593 = vmatpush1.msra.mxu0 0.0
        %3594 = vmatprep.subr.mxu0 0.0
        %3595 = vmatpush1.msra.mxu0 0.0
        %3596 = vmatprep.subr.mxu0 0.0
        %3597 = vmatpush1.msra.mxu0 0.0
        %3598 = vmatprep.subr.mxu0 0.0
        %3599 = vmatpush1.msra.mxu0 0.0
        %3600 = vmatprep.subr.mxu0 0.0
        %3601 = vmatpush1.msra.mxu0 0.0
        %3602 = vmatprep.subr.mxu0 0.0
        %3603 = vmatpush1.msra.mxu0 0.0
        %3604 = vmatprep.subr.mxu0 0.0
        %3605 = vmatpush1.msra.mxu0 0.0
        %3606 = vmatprep.subr.mxu0 0.0
        %3607 = vmatpush1.msra.mxu0 0.0
        %3608 = vmatprep.subr.mxu0 0.0
        %3609 = vmatpush1.msra.mxu0 0.0
        %3610 = vmatprep.subr.mxu0 0.0
        %3611 = vmatpush1.msra.mxu0 0.0
        %3612 = vmatprep.mubr.f32.mxu0 0.0
        %3613 = vmatmul.mubr.f32.gmra.mrb[0].mxu0 %v2916
        %v3614 = vpop.f32.mrb[0].mxu0
        %v3615 = vadd.f32 %v2894, %v3614
        %v3616 = vpop.f32.mrb[0].mxu0
        %3617 = vdwg.mxu0
        %3618 = vmatprep.subr.mxu0 0.0
        %3619 = vmatpush1.msra.mxu0 %v2822
        %3620 = vmatprep.subr.mxu0 0.0
        %3621 = vmatpush1.msra.mxu0 %v2823
        %3622 = vmatprep.subr.mxu0 0.0
        %3623 = vmatpush1.msra.mxu0 %v2824
        %3624 = vmatprep.subr.mxu0 0.0
        %3625 = vmatpush1.msra.mxu0 %v2825
        %3626 = vmatprep.subr.mxu0 0.0
        %3627 = vmatpush1.msra.mxu0 0.0
        %3628 = vmatprep.subr.mxu0 0.0
        %3629 = vmatpush1.msra.mxu0 0.0
        %3630 = vmatprep.subr.mxu0 0.0
        %3631 = vmatpush1.msra.mxu0 0.0
        %3632 = vmatprep.subr.mxu0 0.0
        %3633 = vmatpush1.msra.mxu0 0.0
        %3634 = vmatprep.subr.mxu0 0.0
        %3635 = vmatpush1.msra.mxu0 0.0
        %3636 = vmatprep.subr.mxu0 0.0
        %3637 = vmatpush1.msra.mxu0 0.0
        %3638 = vmatprep.subr.mxu0 0.0
        %3639 = vmatpush1.msra.mxu0 0.0
        %3640 = vmatprep.subr.mxu0 0.0
        %3641 = vmatpush1.msra.mxu0 0.0
        %3642 = vmatprep.subr.mxu0 0.0
        %3643 = vmatpush1.msra.mxu0 0.0
        %3644 = vmatprep.subr.mxu0 0.0
        %3645 = vmatpush1.msra.mxu0 0.0
        %3646 = vmatprep.subr.mxu0 0.0
        %3647 = vmatpush1.msra.mxu0 0.0
        %3648 = vmatprep.subr.mxu0 0.0
        %3649 = vmatpush1.msra.mxu0 0.0
        %3650 = vmatprep.subr.mxu0 0.0
        %3651 = vmatpush1.msra.mxu0 0.0
        %3652 = vmatprep.subr.mxu0 0.0
        %3653 = vmatpush1.msra.mxu0 0.0
        %3654 = vmatprep.subr.mxu0 0.0
        %3655 = vmatpush1.msra.mxu0 0.0
        %3656 = vmatprep.subr.mxu0 0.0
        %3657 = vmatpush1.msra.mxu0 0.0
        %3658 = vmatprep.subr.mxu0 0.0
        %3659 = vmatpush1.msra.mxu0 0.0
        %3660 = vmatprep.subr.mxu0 0.0
        %3661 = vmatpush1.msra.mxu0 0.0
        %3662 = vmatprep.subr.mxu0 0.0
        %3663 = vmatpush1.msra.mxu0 0.0
        %3664 = vmatprep.subr.mxu0 0.0
        %3665 = vmatpush1.msra.mxu0 0.0
        %3666 = vmatprep.subr.mxu0 0.0
        %3667 = vmatpush1.msra.mxu0 0.0
        %3668 = vmatprep.subr.mxu0 0.0
        %3669 = vmatpush1.msra.mxu0 0.0
        %3670 = vmatprep.subr.mxu0 0.0
        %3671 = vmatpush1.msra.mxu0 0.0
        %3672 = vmatprep.subr.mxu0 0.0
        %3673 = vmatpush1.msra.mxu0 0.0
        %3674 = vmatprep.subr.mxu0 0.0
        %3675 = vmatpush1.msra.mxu0 0.0
        %3676 = vmatprep.subr.mxu0 0.0
        %3677 = vmatpush1.msra.mxu0 0.0
        %3678 = vmatprep.subr.mxu0 0.0
        %3679 = vmatpush1.msra.mxu0 0.0
        %3680 = vmatprep.subr.mxu0 0.0
        %3681 = vmatpush1.msra.mxu0 0.0
        %3682 = vmatprep.mubr.f32.mxu0 0.0
        %3683 = vmatmul.mubr.f32.gmra.mrb[0].mxu0 %v2916
        %v3684 = vpop.f32.mrb[0].mxu0
        %v3685 = vadd.f32 %v2898, %v3684
        %v3686 = vpop.f32.mrb[0].mxu0
        %3687 = vdwg.mxu0
        %3688 = vmatprep.subr.mxu0 0.0
        %3689 = vmatpush1.msra.mxu0 %v2826
        %3690 = vmatprep.subr.mxu0 0.0
        %3691 = vmatpush1.msra.mxu0 %v2827
        %3692 = vmatprep.subr.mxu0 0.0
        %3693 = vmatpush1.msra.mxu0 %v2828
        %3694 = vmatprep.subr.mxu0 0.0
        %3695 = vmatpush1.msra.mxu0 %v2829
        %3696 = vmatprep.subr.mxu0 0.0
        %3697 = vmatpush1.msra.mxu0 0.0
        %3698 = vmatprep.subr.mxu0 0.0
        %3699 = vmatpush1.msra.mxu0 0.0
        %3700 = vmatprep.subr.mxu0 0.0
        %3701 = vmatpush1.msra.mxu0 0.0
        %3702 = vmatprep.subr.mxu0 0.0
        %3703 = vmatpush1.msra.mxu0 0.0
        %3704 = vmatprep.subr.mxu0 0.0
        %3705 = vmatpush1.msra.mxu0 0.0
        %3706 = vmatprep.subr.mxu0 0.0
        %3707 = vmatpush1.msra.mxu0 0.0
        %3708 = vmatprep.subr.mxu0 0.0
        %3709 = vmatpush1.msra.mxu0 0.0
        %3710 = vmatprep.subr.mxu0 0.0
        %3711 = vmatpush1.msra.mxu0 0.0
        %3712 = vmatprep.subr.mxu0 0.0
        %3713 = vmatpush1.msra.mxu0 0.0
        %3714 = vmatprep.subr.mxu0 0.0
        %3715 = vmatpush1.msra.mxu0 0.0
        %3716 = vmatprep.subr.mxu0 0.0
        %3717 = vmatpush1.msra.mxu0 0.0
        %3718 = vmatprep.subr.mxu0 0.0
        %3719 = vmatpush1.msra.mxu0 0.0
        %3720 = vmatprep.subr.mxu0 0.0
        %3721 = vmatpush1.msra.mxu0 0.0
        %3722 = vmatprep.subr.mxu0 0.0
        %3723 = vmatpush1.msra.mxu0 0.0
        %3724 = vmatprep.subr.mxu0 0.0
        %3725 = vmatpush1.msra.mxu0 0.0
        %3726 = vmatprep.subr.mxu0 0.0
        %3727 = vmatpush1.msra.mxu0 0.0
        %3728 = vmatprep.subr.mxu0 0.0
        %3729 = vmatpush1.msra.mxu0 0.0
        %3730 = vmatprep.subr.mxu0 0.0
        %3731 = vmatpush1.msra.mxu0 0.0
        %3732 = vmatprep.subr.mxu0 0.0
        %3733 = vmatpush1.msra.mxu0 0.0
        %3734 = vmatprep.subr.mxu0 0.0
        %3735 = vmatpush1.msra.mxu0 0.0
        %3736 = vmatprep.subr.mxu0 0.0
        %3737 = vmatpush1.msra.mxu0 0.0
        %3738 = vmatprep.subr.mxu0 0.0
        %3739 = vmatpush1.msra.mxu0 0.0
        %3740 = vmatprep.subr.mxu0 0.0
        %3741 = vmatpush1.msra.mxu0 0.0
        %3742 = vmatprep.subr.mxu0 0.0
        %3743 = vmatpush1.msra.mxu0 0.0
        %3744 = vmatprep.subr.mxu0 0.0
        %3745 = vmatpush1.msra.mxu0 0.0
        %3746 = vmatprep.subr.mxu0 0.0
        %3747 = vmatpush1.msra.mxu0 0.0
        %3748 = vmatprep.subr.mxu0 0.0
        %3749 = vmatpush1.msra.mxu0 0.0
        %3750 = vmatprep.subr.mxu0 0.0
        %3751 = vmatpush1.msra.mxu0 0.0
        %3752 = vmatprep.mubr.f32.mxu0 0.0
        %3753 = vmatmul.mubr.f32.gmra.mrb[0].mxu0 %v2916
        %v3754 = vpop.f32.mrb[0].mxu0
        %v3755 = vadd.f32 %v2902, %v3754
        %v3756 = vpop.f32.mrb[0].mxu0
        %3757 = vdwg.mxu0
        %v3759 = vsel %vm1598, %v2985, 0
        %v3762 = vsel %vm1598, %v3265, 0
        %3764 = vmatprep.subr.mxu0 0.0
        %3765 = vmatpush1.xpose.msra.mxu0 %v3762
        %3766 = vmatprep.subr.mxu0 0.0
        %3767 = vmatpush1.xpose.msra.mxu0 0.0
        %3768 = vmatprep.subr.mxu0 0.0
        %3769 = vmatpush1.xpose.msra.mxu0 0.0
        %3770 = vmatprep.subr.mxu0 0.0
        %3771 = vmatpush1.xpose.msra.mxu0 0.0
        %3772 = vmatprep.subr.mxu0 0.0
        %3773 = vmatpush1.xpose.msra.mxu0 0.0
        %3774 = vmatprep.subr.mxu0 0.0
        %3775 = vmatpush1.xpose.msra.mxu0 0.0
        %3776 = vmatprep.subr.mxu0 0.0
        %3777 = vmatpush1.xpose.msra.mxu0 0.0
        %3778 = vmatprep.subr.mxu0 0.0
        %3779 = vmatpush1.xpose.msra.mxu0 0.0
        %3780 = vmatprep.subr.mxu0 0.0
        %3781 = vmatpush1.xpose.msra.mxu0 0.0
        %3782 = vmatprep.subr.mxu0 0.0
        %3783 = vmatpush1.xpose.msra.mxu0 0.0
        %3784 = vmatprep.subr.mxu0 0.0
        %3785 = vmatpush1.xpose.msra.mxu0 0.0
        %3786 = vmatprep.subr.mxu0 0.0
        %3787 = vmatpush1.xpose.msra.mxu0 0.0
        %3788 = vmatprep.subr.mxu0 0.0
        %3789 = vmatpush1.xpose.msra.mxu0 0.0
        %3790 = vmatprep.subr.mxu0 0.0
        %3791 = vmatpush1.xpose.msra.mxu0 0.0
        %3792 = vmatprep.subr.mxu0 0.0
        %3793 = vmatpush1.xpose.msra.mxu0 0.0
        %3794 = vmatprep.subr.mxu0 0.0
        %3795 = vmatpush1.xpose.msra.mxu0 0.0
        %3796 = vmatprep.subr.mxu0 0.0
        %3797 = vmatpush1.xpose.msra.mxu0 0.0
        %3798 = vmatprep.subr.mxu0 0.0
        %3799 = vmatpush1.xpose.msra.mxu0 0.0
        %3800 = vmatprep.subr.mxu0 0.0
        %3801 = vmatpush1.xpose.msra.mxu0 0.0
        %3802 = vmatprep.subr.mxu0 0.0
        %3803 = vmatpush1.xpose.msra.mxu0 0.0
        %3804 = vmatprep.subr.mxu0 0.0
        %3805 = vmatpush1.xpose.msra.mxu0 0.0
        %3806 = vmatprep.subr.mxu0 0.0
        %3807 = vmatpush1.xpose.msra.mxu0 0.0
        %3808 = vmatprep.subr.mxu0 0.0
        %3809 = vmatpush1.xpose.msra.mxu0 0.0
        %3810 = vmatprep.subr.mxu0 0.0
        %3811 = vmatpush1.xpose.msra.mxu0 0.0
        %3812 = vmatprep.subr.mxu0 0.0
        %3813 = vmatpush1.xpose.msra.mxu0 0.0
        %3814 = vmatprep.subr.mxu0 0.0
        %3815 = vmatpush1.xpose.msra.mxu0 0.0
        %3816 = vmatprep.subr.mxu0 0.0
        %3817 = vmatpush1.xpose.msra.mxu0 0.0
        %3818 = vmatprep.subr.mxu0 0.0
        %3819 = vmatpush1.xpose.msra.mxu0 0.0
        %3820 = vmatprep.subr.mxu0 0.0
        %3821 = vmatpush1.xpose.msra.mxu0 0.0
        %3822 = vmatprep.subr.mxu0 0.0
        %3823 = vmatpush1.xpose.msra.mxu0 0.0
        %3824 = vmatprep.subr.mxu0 0.0
        %3825 = vmatpush1.xpose.msra.mxu0 0.0
        %3826 = vmatprep.subr.mxu0 0.0
        %3827 = vmatpush1.xpose.msra.mxu0 0.0
        %3828 = vmatprep.mubr.f32.mxu0 0.0
        %3829 = vmatmul.mubr.f32.gmra.mrb[0].mxu0 %v3759
        %v3830 = vpop.f32.mrb[0].mxu0
        %v3831 = vadd.f32 0.0, %v3830
        %v3832 = vpop.f32.mrb[0].mxu0
        %3833 = vdwg.mxu0
        %v3835 = vsel %vm1598, %v3055, 0
        %v3838 = vsel %vm1598, %v3335, 0
        %3840 = vmatprep.subr.mxu0 0.0
        %3841 = vmatpush1.xpose.msra.mxu0 %v3838
        %3842 = vmatprep.subr.mxu0 0.0
        %3843 = vmatpush1.xpose.msra.mxu0 0.0
        %3844 = vmatprep.subr.mxu0 0.0
        %3845 = vmatpush1.xpose.msra.mxu0 0.0
        %3846 = vmatprep.subr.mxu0 0.0
        %3847 = vmatpush1.xpose.msra.mxu0 0.0
        %3848 = vmatprep.subr.mxu0 0.0
        %3849 = vmatpush1.xpose.msra.mxu0 0.0
        %3850 = vmatprep.subr.mxu0 0.0
        %3851 = vmatpush1.xpose.msra.mxu0 0.0
        %3852 = vmatprep.subr.mxu0 0.0
        %3853 = vmatpush1.xpose.msra.mxu0 0.0
        %3854 = vmatprep.subr.mxu0 0.0
        %3855 = vmatpush1.xpose.msra.mxu0 0.0
        %3856 = vmatprep.subr.mxu0 0.0
        %3857 = vmatpush1.xpose.msra.mxu0 0.0
        %3858 = vmatprep.subr.mxu0 0.0
        %3859 = vmatpush1.xpose.msra.mxu0 0.0
        %3860 = vmatprep.subr.mxu0 0.0
        %3861 = vmatpush1.xpose.msra.mxu0 0.0
        %3862 = vmatprep.subr.mxu0 0.0
        %3863 = vmatpush1.xpose.msra.mxu0 0.0
        %3864 = vmatprep.subr.mxu0 0.0
        %3865 = vmatpush1.xpose.msra.mxu0 0.0
        %3866 = vmatprep.subr.mxu0 0.0
        %3867 = vmatpush1.xpose.msra.mxu0 0.0
        %3868 = vmatprep.subr.mxu0 0.0
        %3869 = vmatpush1.xpose.msra.mxu0 0.0
        %3870 = vmatprep.subr.mxu0 0.0
        %3871 = vmatpush1.xpose.msra.mxu0 0.0
        %3872 = vmatprep.subr.mxu0 0.0
        %3873 = vmatpush1.xpose.msra.mxu0 0.0
        %3874 = vmatprep.subr.mxu0 0.0
        %3875 = vmatpush1.xpose.msra.mxu0 0.0
        %3876 = vmatprep.subr.mxu0 0.0
        %3877 = vmatpush1.xpose.msra.mxu0 0.0
        %3878 = vmatprep.subr.mxu0 0.0
        %3879 = vmatpush1.xpose.msra.mxu0 0.0
        %3880 = vmatprep.subr.mxu0 0.0
        %3881 = vmatpush1.xpose.msra.mxu0 0.0
        %3882 = vmatprep.subr.mxu0 0.0
        %3883 = vmatpush1.xpose.msra.mxu0 0.0
        %3884 = vmatprep.subr.mxu0 0.0
        %3885 = vmatpush1.xpose.msra.mxu0 0.0
        %3886 = vmatprep.subr.mxu0 0.0
        %3887 = vmatpush1.xpose.msra.mxu0 0.0
        %3888 = vmatprep.subr.mxu0 0.0
        %3889 = vmatpush1.xpose.msra.mxu0 0.0
        %3890 = vmatprep.subr.mxu0 0.0
        %3891 = vmatpush1.xpose.msra.mxu0 0.0
        %3892 = vmatprep.subr.mxu0 0.0
        %3893 = vmatpush1.xpose.msra.mxu0 0.0
        %3894 = vmatprep.subr.mxu0 0.0
        %3895 = vmatpush1.xpose.msra.mxu0 0.0
        %3896 = vmatprep.subr.mxu0 0.0
        %3897 = vmatpush1.xpose.msra.mxu0 0.0
        %3898 = vmatprep.subr.mxu0 0.0
        %3899 = vmatpush1.xpose.msra.mxu0 0.0
        %3900 = vmatprep.subr.mxu0 0.0
        %3901 = vmatpush1.xpose.msra.mxu0 0.0
        %3902 = vmatprep.subr.mxu0 0.0
        %3903 = vmatpush1.xpose.msra.mxu0 0.0
        %3904 = vmatprep.mubr.f32.mxu0 0.0
        %3905 = vmatmul.mubr.f32.gmra.mrb[0].mxu0 %v3835
        %v3906 = vpop.f32.mrb[0].mxu0
        %v3907 = vadd.f32 0.0, %v3906
        %v3908 = vpop.f32.mrb[0].mxu0
        %3909 = vdwg.mxu0
        %v3911 = vsel %vm1598, %v3125, 0
        %v3914 = vsel %vm1598, %v3405, 0
        %3916 = vmatprep.subr.mxu0 0.0
        %3917 = vmatpush1.xpose.msra.mxu0 %v3914
        %3918 = vmatprep.subr.mxu0 0.0
        %3919 = vmatpush1.xpose.msra.mxu0 0.0
        %3920 = vmatprep.subr.mxu0 0.0
        %3921 = vmatpush1.xpose.msra.mxu0 0.0
        %3922 = vmatprep.subr.mxu0 0.0
        %3923 = vmatpush1.xpose.msra.mxu0 0.0
        %3924 = vmatprep.subr.mxu0 0.0
        %3925 = vmatpush1.xpose.msra.mxu0 0.0
        %3926 = vmatprep.subr.mxu0 0.0
        %3927 = vmatpush1.xpose.msra.mxu0 0.0
        %3928 = vmatprep.subr.mxu0 0.0
        %3929 = vmatpush1.xpose.msra.mxu0 0.0
        %3930 = vmatprep.subr.mxu0 0.0
        %3931 = vmatpush1.xpose.msra.mxu0 0.0
        %3932 = vmatprep.subr.mxu0 0.0
        %3933 = vmatpush1.xpose.msra.mxu0 0.0
        %3934 = vmatprep.subr.mxu0 0.0
        %3935 = vmatpush1.xpose.msra.mxu0 0.0
        %3936 = vmatprep.subr.mxu0 0.0
        %3937 = vmatpush1.xpose.msra.mxu0 0.0
        %3938 = vmatprep.subr.mxu0 0.0
        %3939 = vmatpush1.xpose.msra.mxu0 0.0
        %3940 = vmatprep.subr.mxu0 0.0
        %3941 = vmatpush1.xpose.msra.mxu0 0.0
        %3942 = vmatprep.subr.mxu0 0.0
        %3943 = vmatpush1.xpose.msra.mxu0 0.0
        %3944 = vmatprep.subr.mxu0 0.0
        %3945 = vmatpush1.xpose.msra.mxu0 0.0
        %3946 = vmatprep.subr.mxu0 0.0
        %3947 = vmatpush1.xpose.msra.mxu0 0.0
        %3948 = vmatprep.subr.mxu0 0.0
        %3949 = vmatpush1.xpose.msra.mxu0 0.0
        %3950 = vmatprep.subr.mxu0 0.0
        %3951 = vmatpush1.xpose.msra.mxu0 0.0
        %3952 = vmatprep.subr.mxu0 0.0
        %3953 = vmatpush1.xpose.msra.mxu0 0.0
        %3954 = vmatprep.subr.mxu0 0.0
        %3955 = vmatpush1.xpose.msra.mxu0 0.0
        %3956 = vmatprep.subr.mxu0 0.0
        %3957 = vmatpush1.xpose.msra.mxu0 0.0
        %3958 = vmatprep.subr.mxu0 0.0
        %3959 = vmatpush1.xpose.msra.mxu0 0.0
        %3960 = vmatprep.subr.mxu0 0.0
        %3961 = vmatpush1.xpose.msra.mxu0 0.0
        %3962 = vmatprep.subr.mxu0 0.0
        %3963 = vmatpush1.xpose.msra.mxu0 0.0
        %3964 = vmatprep.subr.mxu0 0.0
        %3965 = vmatpush1.xpose.msra.mxu0 0.0
        %3966 = vmatprep.subr.mxu0 0.0
        %3967 = vmatpush1.xpose.msra.mxu0 0.0
        %3968 = vmatprep.subr.mxu0 0.0
        %3969 = vmatpush1.xpose.msra.mxu0 0.0
        %3970 = vmatprep.subr.mxu0 0.0
        %3971 = vmatpush1.xpose.msra.mxu0 0.0
        %3972 = vmatprep.subr.mxu0 0.0
        %3973 = vmatpush1.xpose.msra.mxu0 0.0
        %3974 = vmatprep.subr.mxu0 0.0
        %3975 = vmatpush1.xpose.msra.mxu0 0.0
        %3976 = vmatprep.subr.mxu0 0.0
        %3977 = vmatpush1.xpose.msra.mxu0 0.0
        %3978 = vmatprep.subr.mxu0 0.0
        %3979 = vmatpush1.xpose.msra.mxu0 0.0
        %3980 = vmatprep.mubr.f32.mxu0 0.0
        %3981 = vmatmul.mubr.f32.gmra.mrb[0].mxu0 %v3911
        %v3982 = vpop.f32.mrb[0].mxu0
        %v3983 = vadd.f32 0.0, %v3982
        %v3984 = vpop.f32.mrb[0].mxu0
        %3985 = vdwg.mxu0
        %v3987 = vsel %vm1598, %v3195, 0
        %v3990 = vsel %vm1598, %v3475, 0
        %3992 = vmatprep.subr.mxu0 0.0
        %3993 = vmatpush1.xpose.msra.mxu0 %v3990
        %3994 = vmatprep.subr.mxu0 0.0
        %3995 = vmatpush1.xpose.msra.mxu0 0.0
        %3996 = vmatprep.subr.mxu0 0.0
        %3997 = vmatpush1.xpose.msra.mxu0 0.0
        %3998 = vmatprep.subr.mxu0 0.0
        %3999 = vmatpush1.xpose.msra.mxu0 0.0
        %4000 = vmatprep.subr.mxu0 0.0
        %4001 = vmatpush1.xpose.msra.mxu0 0.0
        %4002 = vmatprep.subr.mxu0 0.0
        %4003 = vmatpush1.xpose.msra.mxu0 0.0
        %4004 = vmatprep.subr.mxu0 0.0
        %4005 = vmatpush1.xpose.msra.mxu0 0.0
        %4006 = vmatprep.subr.mxu0 0.0
        %4007 = vmatpush1.xpose.msra.mxu0 0.0
        %4008 = vmatprep.subr.mxu0 0.0
        %4009 = vmatpush1.xpose.msra.mxu0 0.0
        %4010 = vmatprep.subr.mxu0 0.0
        %4011 = vmatpush1.xpose.msra.mxu0 0.0
        %4012 = vmatprep.subr.mxu0 0.0
        %4013 = vmatpush1.xpose.msra.mxu0 0.0
        %4014 = vmatprep.subr.mxu0 0.0
        %4015 = vmatpush1.xpose.msra.mxu0 0.0
        %4016 = vmatprep.subr.mxu0 0.0
        %4017 = vmatpush1.xpose.msra.mxu0 0.0
        %4018 = vmatprep.subr.mxu0 0.0
        %4019 = vmatpush1.xpose.msra.mxu0 0.0
        %4020 = vmatprep.subr.mxu0 0.0
        %4021 = vmatpush1.xpose.msra.mxu0 0.0
        %4022 = vmatprep.subr.mxu0 0.0
        %4023 = vmatpush1.xpose.msra.mxu0 0.0
        %4024 = vmatprep.subr.mxu0 0.0
        %4025 = vmatpush1.xpose.msra.mxu0 0.0
        %4026 = vmatprep.subr.mxu0 0.0
        %4027 = vmatpush1.xpose.msra.mxu0 0.0
        %4028 = vmatprep.subr.mxu0 0.0
        %4029 = vmatpush1.xpose.msra.mxu0 0.0
        %4030 = vmatprep.subr.mxu0 0.0
        %4031 = vmatpush1.xpose.msra.mxu0 0.0
        %4032 = vmatprep.subr.mxu0 0.0
        %4033 = vmatpush1.xpose.msra.mxu0 0.0
        %4034 = vmatprep.subr.mxu0 0.0
        %4035 = vmatpush1.xpose.msra.mxu0 0.0
        %4036 = vmatprep.subr.mxu0 0.0
        %4037 = vmatpush1.xpose.msra.mxu0 0.0
        %4038 = vmatprep.subr.mxu0 0.0
        %4039 = vmatpush1.xpose.msra.mxu0 0.0
        %4040 = vmatprep.subr.mxu0 0.0
        %4041 = vmatpush1.xpose.msra.mxu0 0.0
        %4042 = vmatprep.subr.mxu0 0.0
        %4043 = vmatpush1.xpose.msra.mxu0 0.0
        %4044 = vmatprep.subr.mxu0 0.0
        %4045 = vmatpush1.xpose.msra.mxu0 0.0
        %4046 = vmatprep.subr.mxu0 0.0
        %4047 = vmatpush1.xpose.msra.mxu0 0.0
        %4048 = vmatprep.subr.mxu0 0.0
        %4049 = vmatpush1.xpose.msra.mxu0 0.0
        %4050 = vmatprep.subr.mxu0 0.0
        %4051 = vmatpush1.xpose.msra.mxu0 0.0
        %4052 = vmatprep.subr.mxu0 0.0
        %4053 = vmatpush1.xpose.msra.mxu0 0.0
        %4054 = vmatprep.subr.mxu0 0.0
        %4055 = vmatpush1.xpose.msra.mxu0 0.0
        %4056 = vmatprep.mubr.f32.mxu0 0.0
        %4057 = vmatmul.mubr.f32.gmra.mrb[0].mxu0 %v3987
        %v4058 = vpop.f32.mrb[0].mxu0
        %v4059 = vadd.f32 0.0, %v4058
        %v4060 = vpop.f32.mrb[0].mxu0
        %4061 = vdwg.mxu0
        %v4062 = vsel %vm1598, %v3831, -inf
        %4063 = vmax.xlane.f32.xlu0 %v4062
        %v4064 = vpop.xlane.xlu0 %4063
        %v4065 = vsel %vm1598, %v3907, -inf
        %4066 = vmax.xlane.f32.xlu0 %v4065
        %v4067 = vpop.xlane.xlu0 %4066
        %v4068 = vsel %vm1598, %v3983, -inf
        %4069 = vmax.xlane.f32.xlu0 %v4068
        %v4070 = vpop.xlane.xlu0 %4069
        %v4071 = vsel %vm1598, %v4059, -inf
        %4072 = vmax.xlane.f32.xlu0 %v4071
        %v4073 = vpop.xlane.xlu0 %4072
        %v4074 = vsub.f32 %v3831, %v4064
        %v4075 = vsub.f32 %v3907, %v4067
        %v4076 = vsub.f32 %v3983, %v4070
        %v4077 = vsub.f32 %v4059, %v4073
        %v4078 = vmul.f32 %v4074, 1.442695
        %v4079 = vpow.pop %v4078
        %v4080 = vmul.f32 %v4075, 1.442695
        %v4081 = vpow.pop %v4080
        %v4082 = vmul.f32 %v4076, 1.442695
        %v4083 = vpow.pop %v4082
        %v4084 = vmul.f32 %v4077, 1.442695
        %v4085 = vpow.pop %v4084
        %v4086 = vsel %vm1598, %v4079, 0.0
        %4087 = vadd.xlane.f32.xlu0 %v4086
        %v4088 = vpop.xlane.xlu0 %4087
        %v4089 = vsel %vm1598, %v4081, 0.0
        %4090 = vadd.xlane.f32.xlu0 %v4089
        %v4091 = vpop.xlane.xlu0 %4090
        %v4092 = vsel %vm1598, %v4083, 0.0
        %4093 = vadd.xlane.f32.xlu0 %v4092
        %v4094 = vpop.xlane.xlu0 %4093
        %v4095 = vsel %vm1598, %v4085, 0.0
        %4096 = vadd.xlane.f32.xlu0 %v4095
        %v4097 = vpop.xlane.xlu0 %4096
        %v4098 = vrcp.pop %v4088
        %v4099 = vmul.f32 %v4079, %v4098
        %v4100 = vrcp.pop %v4091
        %v4101 = vmul.f32 %v4081, %v4100
        %v4102 = vrcp.pop %v4094
        %v4103 = vmul.f32 %v4083, %v4102
        %v4104 = vrcp.pop %v4097
        %v4105 = vmul.f32 %v4085, %v4104
        %4106 = vst.msk [vmem:[%s523] sm:$0xff] %vm1598, %v4099
        %4107 = vst.msk [vmem:[%s523 + $0x8] sm:$0xff] %vm1598, %v4101
        %4108 = vst.msk [vmem:[%s523 + $0x10] sm:$0xff] %vm1598, %v4103
        %4109 = vst.msk [vmem:[%s523 + $0x18] sm:$0xff] %vm1598, %v4105
        %v4111 = vsel %vm1598, %v4099, 0
        %4113 = vmatprep.subr.mxu0 0.0
        %4114 = vmatpush1.msra.mxu0 %v3545
        %4115 = vmatprep.subr.mxu0 0.0
        %4116 = vmatpush1.msra.mxu0 0.0
        %4117 = vmatprep.subr.mxu0 0.0
        %4118 = vmatpush1.msra.mxu0 0.0
        %4119 = vmatprep.subr.mxu0 0.0
        %4120 = vmatpush1.msra.mxu0 0.0
        %4121 = vmatprep.subr.mxu0 0.0
        %4122 = vmatpush1.msra.mxu0 0.0
        %4123 = vmatprep.subr.mxu0 0.0
        %4124 = vmatpush1.msra.mxu0 0.0
        %4125 = vmatprep.subr.mxu0 0.0
        %4126 = vmatpush1.msra.mxu0 0.0
        %4127 = vmatprep.subr.mxu0 0.0
        %4128 = vmatpush1.msra.mxu0 0.0
        %4129 = vmatprep.subr.mxu0 0.0
        %4130 = vmatpush1.msra.mxu0 0.0
        %4131 = vmatprep.subr.mxu0 0.0
        %4132 = vmatpush1.msra.mxu0 0.0
        %4133 = vmatprep.subr.mxu0 0.0
        %4134 = vmatpush1.msra.mxu0 0.0
        %4135 = vmatprep.subr.mxu0 0.0
        %4136 = vmatpush1.msra.mxu0 0.0
        %4137 = vmatprep.subr.mxu0 0.0
        %4138 = vmatpush1.msra.mxu0 0.0
        %4139 = vmatprep.subr.mxu0 0.0
        %4140 = vmatpush1.msra.mxu0 0.0
        %4141 = vmatprep.subr.mxu0 0.0
        %4142 = vmatpush1.msra.mxu0 0.0
        %4143 = vmatprep.subr.mxu0 0.0
        %4144 = vmatpush1.msra.mxu0 0.0
        %4145 = vmatprep.subr.mxu0 0.0
        %4146 = vmatpush1.msra.mxu0 0.0
        %4147 = vmatprep.subr.mxu0 0.0
        %4148 = vmatpush1.msra.mxu0 0.0
        %4149 = vmatprep.subr.mxu0 0.0
        %4150 = vmatpush1.msra.mxu0 0.0
        %4151 = vmatprep.subr.mxu0 0.0
        %4152 = vmatpush1.msra.mxu0 0.0
        %4153 = vmatprep.subr.mxu0 0.0
        %4154 = vmatpush1.msra.mxu0 0.0
        %4155 = vmatprep.subr.mxu0 0.0
        %4156 = vmatpush1.msra.mxu0 0.0
        %4157 = vmatprep.subr.mxu0 0.0
        %4158 = vmatpush1.msra.mxu0 0.0
        %4159 = vmatprep.subr.mxu0 0.0
        %4160 = vmatpush1.msra.mxu0 0.0
        %4161 = vmatprep.subr.mxu0 0.0
        %4162 = vmatpush1.msra.mxu0 0.0
        %4163 = vmatprep.subr.mxu0 0.0
        %4164 = vmatpush1.msra.mxu0 0.0
        %4165 = vmatprep.subr.mxu0 0.0
        %4166 = vmatpush1.msra.mxu0 0.0
        %4167 = vmatprep.subr.mxu0 0.0
        %4168 = vmatpush1.msra.mxu0 0.0
        %4169 = vmatprep.subr.mxu0 0.0
        %4170 = vmatpush1.msra.mxu0 0.0
        %4171 = vmatprep.subr.mxu0 0.0
        %4172 = vmatpush1.msra.mxu0 0.0
        %4173 = vmatprep.subr.mxu0 0.0
        %4174 = vmatpush1.msra.mxu0 0.0
        %4175 = vmatprep.subr.mxu0 0.0
        %4176 = vmatpush1.msra.mxu0 0.0
        %4177 = vmatprep.mubr.f32.mxu0 0.0
        %4178 = vmatmul.mubr.f32.gmra.mrb[0].mxu0 %v4111
        %v4179 = vpop.f32.mrb[0].mxu0
        %v4180 = vadd.f32 0.0, %v4179
        %v4181 = vpop.f32.mrb[0].mxu0
        %4182 = vdwg.mxu0
        %v4184 = vsel %vm1598, %v4101, 0
        %4186 = vmatprep.subr.mxu0 0.0
        %4187 = vmatpush1.msra.mxu0 %v3615
        %4188 = vmatprep.subr.mxu0 0.0
        %4189 = vmatpush1.msra.mxu0 0.0
        %4190 = vmatprep.subr.mxu0 0.0
        %4191 = vmatpush1.msra.mxu0 0.0
        %4192 = vmatprep.subr.mxu0 0.0
        %4193 = vmatpush1.msra.mxu0 0.0
        %4194 = vmatprep.subr.mxu0 0.0
        %4195 = vmatpush1.msra.mxu0 0.0
        %4196 = vmatprep.subr.mxu0 0.0
        %4197 = vmatpush1.msra.mxu0 0.0
        %4198 = vmatprep.subr.mxu0 0.0
        %4199 = vmatpush1.msra.mxu0 0.0
        %4200 = vmatprep.subr.mxu0 0.0
        %4201 = vmatpush1.msra.mxu0 0.0
        %4202 = vmatprep.subr.mxu0 0.0
        %4203 = vmatpush1.msra.mxu0 0.0
        %4204 = vmatprep.subr.mxu0 0.0
        %4205 = vmatpush1.msra.mxu0 0.0
        %4206 = vmatprep.subr.mxu0 0.0
        %4207 = vmatpush1.msra.mxu0 0.0
        %4208 = vmatprep.subr.mxu0 0.0
        %4209 = vmatpush1.msra.mxu0 0.0
        %4210 = vmatprep.subr.mxu0 0.0
        %4211 = vmatpush1.msra.mxu0 0.0
        %4212 = vmatprep.subr.mxu0 0.0
        %4213 = vmatpush1.msra.mxu0 0.0
        %4214 = vmatprep.subr.mxu0 0.0
        %4215 = vmatpush1.msra.mxu0 0.0
        %4216 = vmatprep.subr.mxu0 0.0
        %4217 = vmatpush1.msra.mxu0 0.0
        %4218 = vmatprep.subr.mxu0 0.0
        %4219 = vmatpush1.msra.mxu0 0.0
        %4220 = vmatprep.subr.mxu0 0.0
        %4221 = vmatpush1.msra.mxu0 0.0
        %4222 = vmatprep.subr.mxu0 0.0
        %4223 = vmatpush1.msra.mxu0 0.0
        %4224 = vmatprep.subr.mxu0 0.0
        %4225 = vmatpush1.msra.mxu0 0.0
        %4226 = vmatprep.subr.mxu0 0.0
        %4227 = vmatpush1.msra.mxu0 0.0
        %4228 = vmatprep.subr.mxu0 0.0
        %4229 = vmatpush1.msra.mxu0 0.0
        %4230 = vmatprep.subr.mxu0 0.0
        %4231 = vmatpush1.msra.mxu0 0.0
        %4232 = vmatprep.subr.mxu0 0.0
        %4233 = vmatpush1.msra.mxu0 0.0
        %4234 = vmatprep.subr.mxu0 0.0
        %4235 = vmatpush1.msra.mxu0 0.0
        %4236 = vmatprep.subr.mxu0 0.0
        %4237 = vmatpush1.msra.mxu0 0.0
        %4238 = vmatprep.subr.mxu0 0.0
        %4239 = vmatpush1.msra.mxu0 0.0
        %4240 = vmatprep.subr.mxu0 0.0
        %4241 = vmatpush1.msra.mxu0 0.0
        %4242 = vmatprep.subr.mxu0 0.0
        %4243 = vmatpush1.msra.mxu0 0.0
        %4244 = vmatprep.subr.mxu0 0.0
        %4245 = vmatpush1.msra.mxu0 0.0
        %4246 = vmatprep.subr.mxu0 0.0
        %4247 = vmatpush1.msra.mxu0 0.0
        %4248 = vmatprep.subr.mxu0 0.0
        %4249 = vmatpush1.msra.mxu0 0.0
        %4250 = vmatprep.mubr.f32.mxu0 0.0
        %4251 = vmatmul.mubr.f32.gmra.mrb[0].mxu0 %v4184
        %v4252 = vpop.f32.mrb[0].mxu0
        %v4253 = vadd.f32 0.0, %v4252
        %v4254 = vpop.f32.mrb[0].mxu0
        %4255 = vdwg.mxu0
        %v4257 = vsel %vm1598, %v4103, 0
        %4259 = vmatprep.subr.mxu0 0.0
        %4260 = vmatpush1.msra.mxu0 %v3685
        %4261 = vmatprep.subr.mxu0 0.0
        %4262 = vmatpush1.msra.mxu0 0.0
        %4263 = vmatprep.subr.mxu0 0.0
        %4264 = vmatpush1.msra.mxu0 0.0
        %4265 = vmatprep.subr.mxu0 0.0
        %4266 = vmatpush1.msra.mxu0 0.0
        %4267 = vmatprep.subr.mxu0 0.0
        %4268 = vmatpush1.msra.mxu0 0.0
        %4269 = vmatprep.subr.mxu0 0.0
        %4270 = vmatpush1.msra.mxu0 0.0
        %4271 = vmatprep.subr.mxu0 0.0
        %4272 = vmatpush1.msra.mxu0 0.0
        %4273 = vmatprep.subr.mxu0 0.0
        %4274 = vmatpush1.msra.mxu0 0.0
        %4275 = vmatprep.subr.mxu0 0.0
        %4276 = vmatpush1.msra.mxu0 0.0
        %4277 = vmatprep.subr.mxu0 0.0
        %4278 = vmatpush1.msra.mxu0 0.0
        %4279 = vmatprep.subr.mxu0 0.0
        %4280 = vmatpush1.msra.mxu0 0.0
        %4281 = vmatprep.subr.mxu0 0.0
        %4282 = vmatpush1.msra.mxu0 0.0
        %4283 = vmatprep.subr.mxu0 0.0
        %4284 = vmatpush1.msra.mxu0 0.0
        %4285 = vmatprep.subr.mxu0 0.0
        %4286 = vmatpush1.msra.mxu0 0.0
        %4287 = vmatprep.subr.mxu0 0.0
        %4288 = vmatpush1.msra.mxu0 0.0
        %4289 = vmatprep.subr.mxu0 0.0
        %4290 = vmatpush1.msra.mxu0 0.0
        %4291 = vmatprep.subr.mxu0 0.0
        %4292 = vmatpush1.msra.mxu0 0.0
        %4293 = vmatprep.subr.mxu0 0.0
        %4294 = vmatpush1.msra.mxu0 0.0
        %4295 = vmatprep.subr.mxu0 0.0
        %4296 = vmatpush1.msra.mxu0 0.0
        %4297 = vmatprep.subr.mxu0 0.0
        %4298 = vmatpush1.msra.mxu0 0.0
        %4299 = vmatprep.subr.mxu0 0.0
        %4300 = vmatpush1.msra.mxu0 0.0
        %4301 = vmatprep.subr.mxu0 0.0
        %4302 = vmatpush1.msra.mxu0 0.0
        %4303 = vmatprep.subr.mxu0 0.0
        %4304 = vmatpush1.msra.mxu0 0.0
        %4305 = vmatprep.subr.mxu0 0.0
        %4306 = vmatpush1.msra.mxu0 0.0
        %4307 = vmatprep.subr.mxu0 0.0
        %4308 = vmatpush1.msra.mxu0 0.0
        %4309 = vmatprep.subr.mxu0 0.0
        %4310 = vmatpush1.msra.mxu0 0.0
        %4311 = vmatprep.subr.mxu0 0.0
        %4312 = vmatpush1.msra.mxu0 0.0
        %4313 = vmatprep.subr.mxu0 0.0
        %4314 = vmatpush1.msra.mxu0 0.0
        %4315 = vmatprep.subr.mxu0 0.0
        %4316 = vmatpush1.msra.mxu0 0.0
        %4317 = vmatprep.subr.mxu0 0.0
        %4318 = vmatpush1.msra.mxu0 0.0
        %4319 = vmatprep.subr.mxu0 0.0
        %4320 = vmatpush1.msra.mxu0 0.0
        %4321 = vmatprep.subr.mxu0 0.0
        %4322 = vmatpush1.msra.mxu0 0.0
        %4323 = vmatprep.mubr.f32.mxu0 0.0
        %4324 = vmatmul.mubr.f32.gmra.mrb[0].mxu0 %v4257
        %v4325 = vpop.f32.mrb[0].mxu0
        %v4326 = vadd.f32 0.0, %v4325
        %v4327 = vpop.f32.mrb[0].mxu0
        %4328 = vdwg.mxu0
        %v4330 = vsel %vm1598, %v4105, 0
        %4332 = vmatprep.subr.mxu0 0.0
        %4333 = vmatpush1.msra.mxu0 %v3755
        %4334 = vmatprep.subr.mxu0 0.0
        %4335 = vmatpush1.msra.mxu0 0.0
        %4336 = vmatprep.subr.mxu0 0.0
        %4337 = vmatpush1.msra.mxu0 0.0
        %4338 = vmatprep.subr.mxu0 0.0
        %4339 = vmatpush1.msra.mxu0 0.0
        %4340 = vmatprep.subr.mxu0 0.0
        %4341 = vmatpush1.msra.mxu0 0.0
        %4342 = vmatprep.subr.mxu0 0.0
        %4343 = vmatpush1.msra.mxu0 0.0
        %4344 = vmatprep.subr.mxu0 0.0
        %4345 = vmatpush1.msra.mxu0 0.0
        %4346 = vmatprep.subr.mxu0 0.0
        %4347 = vmatpush1.msra.mxu0 0.0
        %4348 = vmatprep.subr.mxu0 0.0
        %4349 = vmatpush1.msra.mxu0 0.0
        %4350 = vmatprep.subr.mxu0 0.0
        %4351 = vmatpush1.msra.mxu0 0.0
        %4352 = vmatprep.subr.mxu0 0.0
        %4353 = vmatpush1.msra.mxu0 0.0
        %4354 = vmatprep.subr.mxu0 0.0
        %4355 = vmatpush1.msra.mxu0 0.0
        %4356 = vmatprep.subr.mxu0 0.0
        %4357 = vmatpush1.msra.mxu0 0.0
        %4358 = vmatprep.subr.mxu0 0.0
        %4359 = vmatpush1.msra.mxu0 0.0
        %4360 = vmatprep.subr.mxu0 0.0
        %4361 = vmatpush1.msra.mxu0 0.0
        %4362 = vmatprep.subr.mxu0 0.0
        %4363 = vmatpush1.msra.mxu0 0.0
        %4364 = vmatprep.subr.mxu0 0.0
        %4365 = vmatpush1.msra.mxu0 0.0
        %4366 = vmatprep.subr.mxu0 0.0
        %4367 = vmatpush1.msra.mxu0 0.0
        %4368 = vmatprep.subr.mxu0 0.0
        %4369 = vmatpush1.msra.mxu0 0.0
        %4370 = vmatprep.subr.mxu0 0.0
        %4371 = vmatpush1.msra.mxu0 0.0
        %4372 = vmatprep.subr.mxu0 0.0
        %4373 = vmatpush1.msra.mxu0 0.0
        %4374 = vmatprep.subr.mxu0 0.0
        %4375 = vmatpush1.msra.mxu0 0.0
        %4376 = vmatprep.subr.mxu0 0.0
        %4377 = vmatpush1.msra.mxu0 0.0
        %4378 = vmatprep.subr.mxu0 0.0
        %4379 = vmatpush1.msra.mxu0 0.0
        %4380 = vmatprep.subr.mxu0 0.0
        %4381 = vmatpush1.msra.mxu0 0.0
        %4382 = vmatprep.subr.mxu0 0.0
        %4383 = vmatpush1.msra.mxu0 0.0
        %4384 = vmatprep.subr.mxu0 0.0
        %4385 = vmatpush1.msra.mxu0 0.0
        %4386 = vmatprep.subr.mxu0 0.0
        %4387 = vmatpush1.msra.mxu0 0.0
        %4388 = vmatprep.subr.mxu0 0.0
        %4389 = vmatpush1.msra.mxu0 0.0
        %4390 = vmatprep.subr.mxu0 0.0
        %4391 = vmatpush1.msra.mxu0 0.0
        %4392 = vmatprep.subr.mxu0 0.0
        %4393 = vmatpush1.msra.mxu0 0.0
        %4394 = vmatprep.subr.mxu0 0.0
        %4395 = vmatpush1.msra.mxu0 0.0
        %4396 = vmatprep.mubr.f32.mxu0 0.0
        %4397 = vmatmul.mubr.f32.gmra.mrb[0].mxu0 %v4330
        %v4398 = vpop.f32.mrb[0].mxu0
        %v4399 = vadd.f32 0.0, %v4398
        %v4400 = vpop.f32.mrb[0].mxu0
        %4401 = vdwg.mxu0
        %s4402 = scalar_lea.vmem %s5, 32
        %v4403 = vld [vmem:[%s4402] sm:$0xff]
        %v4404 = vld [vmem:[%s4402 + $0x8] sm:$0xff]
        %v4405 = vld [vmem:[%s4402 + $0x10] sm:$0xff]
        %v4406 = vld [vmem:[%s4402 + $0x18] sm:$0xff]
        %v4408 = vsel %vm1598, %v4180, 0
        %4410 = vmatprep.subr.mxu0 0.0
        %4411 = vmatpush1.msra.mxu0 %v4403
        %4412 = vmatprep.subr.mxu0 0.0
        %4413 = vmatpush1.msra.mxu0 0.0
        %4414 = vmatprep.subr.mxu0 0.0
        %4415 = vmatpush1.msra.mxu0 0.0
        %4416 = vmatprep.subr.mxu0 0.0
        %4417 = vmatpush1.msra.mxu0 0.0
        %4418 = vmatprep.subr.mxu0 0.0
        %4419 = vmatpush1.msra.mxu0 0.0
        %4420 = vmatprep.subr.mxu0 0.0
        %4421 = vmatpush1.msra.mxu0 0.0
        %4422 = vmatprep.subr.mxu0 0.0
        %4423 = vmatpush1.msra.mxu0 0.0
        %4424 = vmatprep.subr.mxu0 0.0
        %4425 = vmatpush1.msra.mxu0 0.0
        %4426 = vmatprep.subr.mxu0 0.0
        %4427 = vmatpush1.msra.mxu0 0.0
        %4428 = vmatprep.subr.mxu0 0.0
        %4429 = vmatpush1.msra.mxu0 0.0
        %4430 = vmatprep.subr.mxu0 0.0
        %4431 = vmatpush1.msra.mxu0 0.0
        %4432 = vmatprep.subr.mxu0 0.0
        %4433 = vmatpush1.msra.mxu0 0.0
        %4434 = vmatprep.subr.mxu0 0.0
        %4435 = vmatpush1.msra.mxu0 0.0
        %4436 = vmatprep.subr.mxu0 0.0
        %4437 = vmatpush1.msra.mxu0 0.0
        %4438 = vmatprep.subr.mxu0 0.0
        %4439 = vmatpush1.msra.mxu0 0.0
        %4440 = vmatprep.subr.mxu0 0.0
        %4441 = vmatpush1.msra.mxu0 0.0
        %4442 = vmatprep.subr.mxu0 0.0
        %4443 = vmatpush1.msra.mxu0 0.0
        %4444 = vmatprep.subr.mxu0 0.0
        %4445 = vmatpush1.msra.mxu0 0.0
        %4446 = vmatprep.subr.mxu0 0.0
        %4447 = vmatpush1.msra.mxu0 0.0
        %4448 = vmatprep.subr.mxu0 0.0
        %4449 = vmatpush1.msra.mxu0 0.0
        %4450 = vmatprep.subr.mxu0 0.0
        %4451 = vmatpush1.msra.mxu0 0.0
        %4452 = vmatprep.subr.mxu0 0.0
        %4453 = vmatpush1.msra.mxu0 0.0
        %4454 = vmatprep.subr.mxu0 0.0
        %4455 = vmatpush1.msra.mxu0 0.0
        %4456 = vmatprep.subr.mxu0 0.0
        %4457 = vmatpush1.msra.mxu0 0.0
        %4458 = vmatprep.subr.mxu0 0.0
        %4459 = vmatpush1.msra.mxu0 0.0
        %4460 = vmatprep.subr.mxu0 0.0
        %4461 = vmatpush1.msra.mxu0 0.0
        %4462 = vmatprep.subr.mxu0 0.0
        %4463 = vmatpush1.msra.mxu0 0.0
        %4464 = vmatprep.subr.mxu0 0.0
        %4465 = vmatpush1.msra.mxu0 0.0
        %4466 = vmatprep.subr.mxu0 0.0
        %4467 = vmatpush1.msra.mxu0 0.0
        %4468 = vmatprep.subr.mxu0 0.0
        %4469 = vmatpush1.msra.mxu0 0.0
        %4470 = vmatprep.subr.mxu0 0.0
        %4471 = vmatpush1.msra.mxu0 0.0
        %4472 = vmatprep.subr.mxu0 0.0
        %4473 = vmatpush1.msra.mxu0 0.0
        %4474 = vmatprep.mubr.f32.mxu0 0.0
        %4475 = vmatmul.mubr.f32.gmra.mrb[0].mxu0 %v4408
        %v4476 = vpop.f32.mrb[0].mxu0
        %v4477 = vadd.f32 0.0, %v4476
        %v4478 = vpop.f32.mrb[0].mxu0
        %4479 = vdwg.mxu0
        %v4481 = vsel %vm1598, %v4253, 0
        %4483 = vmatprep.subr.mxu0 0.0
        %4484 = vmatpush1.msra.mxu0 %v4404
        %4485 = vmatprep.subr.mxu0 0.0
        %4486 = vmatpush1.msra.mxu0 0.0
        %4487 = vmatprep.subr.mxu0 0.0
        %4488 = vmatpush1.msra.mxu0 0.0
        %4489 = vmatprep.subr.mxu0 0.0
        %4490 = vmatpush1.msra.mxu0 0.0
        %4491 = vmatprep.subr.mxu0 0.0
        %4492 = vmatpush1.msra.mxu0 0.0
        %4493 = vmatprep.subr.mxu0 0.0
        %4494 = vmatpush1.msra.mxu0 0.0
        %4495 = vmatprep.subr.mxu0 0.0
        %4496 = vmatpush1.msra.mxu0 0.0
        %4497 = vmatprep.subr.mxu0 0.0
        %4498 = vmatpush1.msra.mxu0 0.0
        %4499 = vmatprep.subr.mxu0 0.0
        %4500 = vmatpush1.msra.mxu0 0.0
        %4501 = vmatprep.subr.mxu0 0.0
        %4502 = vmatpush1.msra.mxu0 0.0
        %4503 = vmatprep.subr.mxu0 0.0
        %4504 = vmatpush1.msra.mxu0 0.0
        %4505 = vmatprep.subr.mxu0 0.0
        %4506 = vmatpush1.msra.mxu0 0.0
        %4507 = vmatprep.subr.mxu0 0.0
        %4508 = vmatpush1.msra.mxu0 0.0
        %4509 = vmatprep.subr.mxu0 0.0
        %4510 = vmatpush1.msra.mxu0 0.0
        %4511 = vmatprep.subr.mxu0 0.0
        %4512 = vmatpush1.msra.mxu0 0.0
        %4513 = vmatprep.subr.mxu0 0.0
        %4514 = vmatpush1.msra.mxu0 0.0
        %4515 = vmatprep.subr.mxu0 0.0
        %4516 = vmatpush1.msra.mxu0 0.0
        %4517 = vmatprep.subr.mxu0 0.0
        %4518 = vmatpush1.msra.mxu0 0.0
        %4519 = vmatprep.subr.mxu0 0.0
        %4520 = vmatpush1.msra.mxu0 0.0
        %4521 = vmatprep.subr.mxu0 0.0
        %4522 = vmatpush1.msra.mxu0 0.0
        %4523 = vmatprep.subr.mxu0 0.0
        %4524 = vmatpush1.msra.mxu0 0.0
        %4525 = vmatprep.subr.mxu0 0.0
        %4526 = vmatpush1.msra.mxu0 0.0
        %4527 = vmatprep.subr.mxu0 0.0
        %4528 = vmatpush1.msra.mxu0 0.0
        %4529 = vmatprep.subr.mxu0 0.0
        %4530 = vmatpush1.msra.mxu0 0.0
        %4531 = vmatprep.subr.mxu0 0.0
        %4532 = vmatpush1.msra.mxu0 0.0
        %4533 = vmatprep.subr.mxu0 0.0
        %4534 = vmatpush1.msra.mxu0 0.0
        %4535 = vmatprep.subr.mxu0 0.0
        %4536 = vmatpush1.msra.mxu0 0.0
        %4537 = vmatprep.subr.mxu0 0.0
        %4538 = vmatpush1.msra.mxu0 0.0
        %4539 = vmatprep.subr.mxu0 0.0
        %4540 = vmatpush1.msra.mxu0 0.0
        %4541 = vmatprep.subr.mxu0 0.0
        %4542 = vmatpush1.msra.mxu0 0.0
        %4543 = vmatprep.subr.mxu0 0.0
        %4544 = vmatpush1.msra.mxu0 0.0
        %4545 = vmatprep.subr.mxu0 0.0
        %4546 = vmatpush1.msra.mxu0 0.0
        %4547 = vmatprep.mubr.f32.mxu0 0.0
        %4548 = vmatmul.mubr.f32.gmra.mrb[0].mxu0 %v4481
        %v4549 = vpop.f32.mrb[0].mxu0
        %v4550 = vadd.f32 0.0, %v4549
        %v4551 = vpop.f32.mrb[0].mxu0
        %4552 = vdwg.mxu0
        %v4554 = vsel %vm1598, %v4326, 0
        %4556 = vmatprep.subr.mxu0 0.0
        %4557 = vmatpush1.msra.mxu0 %v4405
        %4558 = vmatprep.subr.mxu0 0.0
        %4559 = vmatpush1.msra.mxu0 0.0
        %4560 = vmatprep.subr.mxu0 0.0
        %4561 = vmatpush1.msra.mxu0 0.0
        %4562 = vmatprep.subr.mxu0 0.0
        %4563 = vmatpush1.msra.mxu0 0.0
        %4564 = vmatprep.subr.mxu0 0.0
        %4565 = vmatpush1.msra.mxu0 0.0
        %4566 = vmatprep.subr.mxu0 0.0
        %4567 = vmatpush1.msra.mxu0 0.0
        %4568 = vmatprep.subr.mxu0 0.0
        %4569 = vmatpush1.msra.mxu0 0.0
        %4570 = vmatprep.subr.mxu0 0.0
        %4571 = vmatpush1.msra.mxu0 0.0
        %4572 = vmatprep.subr.mxu0 0.0
        %4573 = vmatpush1.msra.mxu0 0.0
        %4574 = vmatprep.subr.mxu0 0.0
        %4575 = vmatpush1.msra.mxu0 0.0
        %4576 = vmatprep.subr.mxu0 0.0
        %4577 = vmatpush1.msra.mxu0 0.0
        %4578 = vmatprep.subr.mxu0 0.0
        %4579 = vmatpush1.msra.mxu0 0.0
        %4580 = vmatprep.subr.mxu0 0.0
        %4581 = vmatpush1.msra.mxu0 0.0
        %4582 = vmatprep.subr.mxu0 0.0
        %4583 = vmatpush1.msra.mxu0 0.0
        %4584 = vmatprep.subr.mxu0 0.0
        %4585 = vmatpush1.msra.mxu0 0.0
        %4586 = vmatprep.subr.mxu0 0.0
        %4587 = vmatpush1.msra.mxu0 0.0
        %4588 = vmatprep.subr.mxu0 0.0
        %4589 = vmatpush1.msra.mxu0 0.0
        %4590 = vmatprep.subr.mxu0 0.0
        %4591 = vmatpush1.msra.mxu0 0.0
        %4592 = vmatprep.subr.mxu0 0.0
        %4593 = vmatpush1.msra.mxu0 0.0
        %4594 = vmatprep.subr.mxu0 0.0
        %4595 = vmatpush1.msra.mxu0 0.0
        %4596 = vmatprep.subr.mxu0 0.0
        %4597 = vmatpush1.msra.mxu0 0.0
        %4598 = vmatprep.subr.mxu0 0.0
        %4599 = vmatpush1.msra.mxu0 0.0
        %4600 = vmatprep.subr.mxu0 0.0
        %4601 = vmatpush1.msra.mxu0 0.0
        %4602 = vmatprep.subr.mxu0 0.0
        %4603 = vmatpush1.msra.mxu0 0.0
        %4604 = vmatprep.subr.mxu0 0.0
        %4605 = vmatpush1.msra.mxu0 0.0
        %4606 = vmatprep.subr.mxu0 0.0
        %4607 = vmatpush1.msra.mxu0 0.0
        %4608 = vmatprep.subr.mxu0 0.0
        %4609 = vmatpush1.msra.mxu0 0.0
        %4610 = vmatprep.subr.mxu0 0.0
        %4611 = vmatpush1.msra.mxu0 0.0
        %4612 = vmatprep.subr.mxu0 0.0
        %4613 = vmatpush1.msra.mxu0 0.0
        %4614 = vmatprep.subr.mxu0 0.0
        %4615 = vmatpush1.msra.mxu0 0.0
        %4616 = vmatprep.subr.mxu0 0.0
        %4617 = vmatpush1.msra.mxu0 0.0
        %4618 = vmatprep.subr.mxu0 0.0
        %4619 = vmatpush1.msra.mxu0 0.0
        %4620 = vmatprep.mubr.f32.mxu0 0.0
        %4621 = vmatmul.mubr.f32.gmra.mrb[0].mxu0 %v4554
        %v4622 = vpop.f32.mrb[0].mxu0
        %v4623 = vadd.f32 0.0, %v4622
        %v4624 = vpop.f32.mrb[0].mxu0
        %4625 = vdwg.mxu0
        %v4627 = vsel %vm1598, %v4399, 0
        %4629 = vmatprep.subr.mxu0 0.0
        %4630 = vmatpush1.msra.mxu0 %v4406
        %4631 = vmatprep.subr.mxu0 0.0
        %4632 = vmatpush1.msra.mxu0 0.0
        %4633 = vmatprep.subr.mxu0 0.0
        %4634 = vmatpush1.msra.mxu0 0.0
        %4635 = vmatprep.subr.mxu0 0.0
        %4636 = vmatpush1.msra.mxu0 0.0
        %4637 = vmatprep.subr.mxu0 0.0
        %4638 = vmatpush1.msra.mxu0 0.0
        %4639 = vmatprep.subr.mxu0 0.0
        %4640 = vmatpush1.msra.mxu0 0.0
        %4641 = vmatprep.subr.mxu0 0.0
        %4642 = vmatpush1.msra.mxu0 0.0
        %4643 = vmatprep.subr.mxu0 0.0
        %4644 = vmatpush1.msra.mxu0 0.0
        %4645 = vmatprep.subr.mxu0 0.0
        %4646 = vmatpush1.msra.mxu0 0.0
        %4647 = vmatprep.subr.mxu0 0.0
        %4648 = vmatpush1.msra.mxu0 0.0
        %4649 = vmatprep.subr.mxu0 0.0
        %4650 = vmatpush1.msra.mxu0 0.0
        %4651 = vmatprep.subr.mxu0 0.0
        %4652 = vmatpush1.msra.mxu0 0.0
        %4653 = vmatprep.subr.mxu0 0.0
        %4654 = vmatpush1.msra.mxu0 0.0
        %4655 = vmatprep.subr.mxu0 0.0
        %4656 = vmatpush1.msra.mxu0 0.0
        %4657 = vmatprep.subr.mxu0 0.0
        %4658 = vmatpush1.msra.mxu0 0.0
        %4659 = vmatprep.subr.mxu0 0.0
        %4660 = vmatpush1.msra.mxu0 0.0
        %4661 = vmatprep.subr.mxu0 0.0
        %4662 = vmatpush1.msra.mxu0 0.0
        %4663 = vmatprep.subr.mxu0 0.0
        %4664 = vmatpush1.msra.mxu0 0.0
        %4665 = vmatprep.subr.mxu0 0.0
        %4666 = vmatpush1.msra.mxu0 0.0
        %4667 = vmatprep.subr.mxu0 0.0
        %4668 = vmatpush1.msra.mxu0 0.0
        %4669 = vmatprep.subr.mxu0 0.0
        %4670 = vmatpush1.msra.mxu0 0.0
        %4671 = vmatprep.subr.mxu0 0.0
        %4672 = vmatpush1.msra.mxu0 0.0
        %4673 = vmatprep.subr.mxu0 0.0
        %4674 = vmatpush1.msra.mxu0 0.0
        %4675 = vmatprep.subr.mxu0 0.0
        %4676 = vmatpush1.msra.mxu0 0.0
        %4677 = vmatprep.subr.mxu0 0.0
        %4678 = vmatpush1.msra.mxu0 0.0
        %4679 = vmatprep.subr.mxu0 0.0
        %4680 = vmatpush1.msra.mxu0 0.0
        %4681 = vmatprep.subr.mxu0 0.0
        %4682 = vmatpush1.msra.mxu0 0.0
        %4683 = vmatprep.subr.mxu0 0.0
        %4684 = vmatpush1.msra.mxu0 0.0
        %4685 = vmatprep.subr.mxu0 0.0
        %4686 = vmatpush1.msra.mxu0 0.0
        %4687 = vmatprep.subr.mxu0 0.0
        %4688 = vmatpush1.msra.mxu0 0.0
        %4689 = vmatprep.subr.mxu0 0.0
        %4690 = vmatpush1.msra.mxu0 0.0
        %4691 = vmatprep.subr.mxu0 0.0
        %4692 = vmatpush1.msra.mxu0 0.0
        %4693 = vmatprep.mubr.f32.mxu0 0.0
        %4694 = vmatmul.mubr.f32.gmra.mrb[0].mxu0 %v4627
        %v4695 = vpop.f32.mrb[0].mxu0
        %v4696 = vadd.f32 0.0, %v4695
        %v4697 = vpop.f32.mrb[0].mxu0
        %4698 = vdwg.mxu0
        %v4699 = vadd.f32 %v4477, %v4550
        %v4700 = vadd.f32 %v4699, %v4623
        %v4701 = vadd.f32 %v4700, %v4696
        %s4702 = scalar_lea.vmem %s6, 1
        %v4703 = vld [vmem:[%s4702] sm:$0x1]
        %v4705 = vlaneseq
        %v4706 = vshrl.u32 %v4705, 7
        %v4707 = vsub.s32 0, %v4706
        %v4708 = vrot.slane %v4703, %v4707
        %v4710 = vadd.f32 %v4701, %v4708
        %s4711 = scalar_lea.vmem %s11, 1
        %v4712 = vld [vmem:[%s4711] sm:$0x1]
        %s4713 = scalar_lea.vmem %s12, 1
        %v4714 = vld [vmem:[%s4713] sm:$0x1]
        %v4715 = vadd.f32 %v2780, %v4710
        %v4716 = vsel %vm754, %v4715, 0.0
        %4717 = vadd.xlane.f32.xlu0 %v4716
        %v4718 = vpop.xlane.xlu0 %4717
        %v4719 = vmul.f32 %v4718, %v2552
        %v4720 = vsub.f32 %v4715, %v4719
        %v4721 = vmul.f32 %v4720, %v4720
        %v4722 = vsel %vm754, %v4721, 0.0
        %4723 = vadd.xlane.f32.xlu0 %v4722
        %v4724 = vpop.xlane.xlu0 %4723
        %v4725 = vmul.f32 %v4724, %v2552
        %v4726 = vadd.f32 %v4725, 1e-05
        %v4727 = vrsqrt.pop %v4726
        %v4728 = vmul.f32 %v4720, %v4727
        %v4730 = vlaneseq
        %v4731 = vshrl.u32 %v4730, 7
        %v4732 = vsub.s32 0, %v4731
        %v4733 = vrot.slane %v4712, %v4732
        %v4735 = vmul.f32 %v4728, %v4733
        %v4737 = vlaneseq
        %v4738 = vshrl.u32 %v4737, 7
        %v4739 = vsub.s32 0, %v4738
        %v4740 = vrot.slane %v4714, %v4739
        %v4742 = vadd.f32 %v4735, %v4740
        %s4743 = scalar_lea.vmem %s7, 32
        %v4744 = vld [vmem:[%s4743] sm:$0xff]
        %v4745 = vld [vmem:[%s4743 + $0x8] sm:$0xff]
        %v4746 = vld [vmem:[%s4743 + $0x10] sm:$0xff]
        %v4747 = vld [vmem:[%s4743 + $0x18] sm:$0xff]
        %s4748 = scalar_lea.vmem %s8, 1
        %v4749 = vld [vmem:[%s4748] sm:$0x1]
        %v4751 = vlaneseq
        %v4752 = vshrl.u32 %v4751, 7
        %v4753 = vsub.s32 0, %v4752
        %v4754 = vrot.slane %v4749, %v4753
        %v4757 = vsel %vm754, %v4742, 0
        %4759 = vmatprep.subr.mxu0 0.0
        %4760 = vmatpush1.msra.mxu0 %v4744
        %4761 = vmatprep.subr.mxu0 0.0
        %4762 = vmatpush1.msra.mxu0 %v4745
        %4763 = vmatprep.subr.mxu0 0.0
        %4764 = vmatpush1.msra.mxu0 %v4746
        %4765 = vmatprep.subr.mxu0 0.0
        %4766 = vmatpush1.msra.mxu0 %v4747
        %4767 = vmatprep.subr.mxu0 0.0
        %4768 = vmatpush1.msra.mxu0 0.0
        %4769 = vmatprep.subr.mxu0 0.0
        %4770 = vmatpush1.msra.mxu0 0.0
        %4771 = vmatprep.subr.mxu0 0.0
        %4772 = vmatpush1.msra.mxu0 0.0
        %4773 = vmatprep.subr.mxu0 0.0
        %4774 = vmatpush1.msra.mxu0 0.0
        %4775 = vmatprep.subr.mxu0 0.0
        %4776 = vmatpush1.msra.mxu0 0.0
        %4777 = vmatprep.subr.mxu0 0.0
        %4778 = vmatpush1.msra.mxu0 0.0
        %4779 = vmatprep.subr.mxu0 0.0
        %4780 = vmatpush1.msra.mxu0 0.0
        %4781 = vmatprep.subr.mxu0 0.0
        %4782 = vmatpush1.msra.mxu0 0.0
        %4783 = vmatprep.subr.mxu0 0.0
        %4784 = vmatpush1.msra.mxu0 0.0
        %4785 = vmatprep.subr.mxu0 0.0
        %4786 = vmatpush1.msra.mxu0 0.0
        %4787 = vmatprep.subr.mxu0 0.0
        %4788 = vmatpush1.msra.mxu0 0.0
        %4789 = vmatprep.subr.mxu0 0.0
        %4790 = vmatpush1.msra.mxu0 0.0
        %4791 = vmatprep.subr.mxu0 0.0
        %4792 = vmatpush1.msra.mxu0 0.0
        %4793 = vmatprep.subr.mxu0 0.0
        %4794 = vmatpush1.msra.mxu0 0.0
        %4795 = vmatprep.subr.mxu0 0.0
        %4796 = vmatpush1.msra.mxu0 0.0
        %4797 = vmatprep.subr.mxu0 0.0
        %4798 = vmatpush1.msra.mxu0 0.0
        %4799 = vmatprep.subr.mxu0 0.0
        %4800 = vmatpush1.msra.mxu0 0.0
        %4801 = vmatprep.subr.mxu0 0.0
        %4802 = vmatpush1.msra.mxu0 0.0
        %4803 = vmatprep.subr.mxu0 0.0
        %4804 = vmatpush1.msra.mxu0 0.0
        %4805 = vmatprep.subr.mxu0 0.0
        %4806 = vmatpush1.msra.mxu0 0.0
        %4807 = vmatprep.subr.mxu0 0.0
        %4808 = vmatpush1.msra.mxu0 0.0
        %4809 = vmatprep.subr.mxu0 0.0
        %4810 = vmatpush1.msra.mxu0 0.0
        %4811 = vmatprep.subr.mxu0 0.0
        %4812 = vmatpush1.msra.mxu0 0.0
        %4813 = vmatprep.subr.mxu0 0.0
        %4814 = vmatpush1.msra.mxu0 0.0
        %4815 = vmatprep.subr.mxu0 0.0
        %4816 = vmatpush1.msra.mxu0 0.0
        %4817 = vmatprep.subr.mxu0 0.0
        %4818 = vmatpush1.msra.mxu0 0.0
        %4819 = vmatprep.subr.mxu0 0.0
        %4820 = vmatpush1.msra.mxu0 0.0
        %4821 = vmatprep.subr.mxu0 0.0
        %4822 = vmatpush1.msra.mxu0 0.0
        %4823 = vmatprep.mubr.f32.mxu0 0.0
        %4824 = vmatmul.mubr.f32.gmra.mrb[0].mxu0 %v4757
        %v4825 = vpop.f32.mrb[0].mxu0
        %v4826 = vadd.f32 %v4754, %v4825
        %v4827 = vpop.f32.mrb[0].mxu0
        %4828 = vdwg.mxu0
        %v4829 = vmax.f32 %v4826, 0.0
        %s4830 = scalar_lea.vmem %s9, 64
        %v4831 = vld [vmem:[%s4830] sm:$0xff]
        %v4832 = vld [vmem:[%s4830 + $0x8] sm:$0xff]
        %v4833 = vld [vmem:[%s4830 + $0x10] sm:$0xff]
        %v4834 = vld [vmem:[%s4830 + $0x18] sm:$0xff]
        %v4835 = vld [vmem:[%s4830 + $0x20] sm:$0xff]
        %v4836 = vld [vmem:[%s4830 + $0x28] sm:$0xff]
        %v4837 = vld [vmem:[%s4830 + $0x30] sm:$0xff]
        %v4838 = vld [vmem:[%s4830 + $0x38] sm:$0xff]
        %s4839 = scalar_lea.vmem %s10, 1
        %v4840 = vld [vmem:[%s4839] sm:$0x1]
        %v4842 = vlaneseq
        %v4843 = vshrl.u32 %v4842, 7
        %v4844 = vsub.s32 0, %v4843
        %v4845 = vrot.slane %v4840, %v4844
        %v4848 = vsel %vm2677, %v4829, 0
        %4850 = vmatprep.subr.mxu0 0.0
        %4851 = vmatpush1.msra.mxu0 %v4831
        %4852 = vmatprep.subr.mxu0 0.0
        %4853 = vmatpush1.msra.mxu0 %v4832
        %4854 = vmatprep.subr.mxu0 0.0
        %4855 = vmatpush1.msra.mxu0 %v4833
        %4856 = vmatprep.subr.mxu0 0.0
        %4857 = vmatpush1.msra.mxu0 %v4834
        %4858 = vmatprep.subr.mxu0 0.0
        %4859 = vmatpush1.msra.mxu0 %v4835
        %4860 = vmatprep.subr.mxu0 0.0
        %4861 = vmatpush1.msra.mxu0 %v4836
        %4862 = vmatprep.subr.mxu0 0.0
        %4863 = vmatpush1.msra.mxu0 %v4837
        %4864 = vmatprep.subr.mxu0 0.0
        %4865 = vmatpush1.msra.mxu0 %v4838
        %4866 = vmatprep.subr.mxu0 0.0
        %4867 = vmatpush1.msra.mxu0 0.0
        %4868 = vmatprep.subr.mxu0 0.0
        %4869 = vmatpush1.msra.mxu0 0.0
        %4870 = vmatprep.subr.mxu0 0.0
        %4871 = vmatpush1.msra.mxu0 0.0
        %4872 = vmatprep.subr.mxu0 0.0
        %4873 = vmatpush1.msra.mxu0 0.0
        %4874 = vmatprep.subr.mxu0 0.0
        %4875 = vmatpush1.msra.mxu0 0.0
        %4876 = vmatprep.subr.mxu0 0.0
        %4877 = vmatpush1.msra.mxu0 0.0
        %4878 = vmatprep.subr.mxu0 0.0
        %4879 = vmatpush1.msra.mxu0 0.0
        %4880 = vmatprep.subr.mxu0 0.0
        %4881 = vmatpush1.msra.mxu0 0.0
        %4882 = vmatprep.subr.mxu0 0.0
        %4883 = vmatpush1.msra.mxu0 0.0
        %4884 = vmatprep.subr.mxu0 0.0
        %4885 = vmatpush1.msra.mxu0 0.0
        %4886 = vmatprep.subr.mxu0 0.0
        %4887 = vmatpush1.msra.mxu0 0.0
        %4888 = vmatprep.subr.mxu0 0.0
        %4889 = vmatpush1.msra.mxu0 0.0
        %4890 = vmatprep.subr.mxu0 0.0
        %4891 = vmatpush1.msra.mxu0 0.0
        %4892 = vmatprep.subr.mxu0 0.0
        %4893 = vmatpush1.msra.mxu0 0.0
        %4894 = vmatprep.subr.mxu0 0.0
        %4895 = vmatpush1.msra.mxu0 0.0
        %4896 = vmatprep.subr.mxu0 0.0
        %4897 = vmatpush1.msra.mxu0 0.0
        %4898 = vmatprep.subr.mxu0 0.0
        %4899 = vmatpush1.msra.mxu0 0.0
        %4900 = vmatprep.subr.mxu0 0.0
        %4901 = vmatpush1.msra.mxu0 0.0
        %4902 = vmatprep.subr.mxu0 0.0
        %4903 = vmatpush1.msra.mxu0 0.0
        %4904 = vmatprep.subr.mxu0 0.0
        %4905 = vmatpush1.msra.mxu0 0.0
        %4906 = vmatprep.subr.mxu0 0.0
        %4907 = vmatpush1.msra.mxu0 0.0
        %4908 = vmatprep.subr.mxu0 0.0
        %4909 = vmatpush1.msra.mxu0 0.0
        %4910 = vmatprep.subr.mxu0 0.0
        %4911 = vmatpush1.msra.mxu0 0.0
        %4912 = vmatprep.subr.mxu0 0.0
        %4913 = vmatpush1.msra.mxu0 0.0
        %4914 = vmatprep.mubr.f32.mxu0 0.0
        %4915 = vmatmul.mubr.f32.gmra.mrb[0].mxu0 %v4848
        %v4916 = vpop.f32.mrb[0].mxu0
        %v4917 = vadd.f32 %v4845, %v4916
        %v4918 = vpop.f32.mrb[0].mxu0
        %4919 = vdwg.mxu0
        %s4920 = scalar_lea.vmem %s13, 1
        %v4921 = vld [vmem:[%s4920] sm:$0x1]
        %s4922 = scalar_lea.vmem %s14, 1
        %v4923 = vld [vmem:[%s4922] sm:$0x1]
        %v4924 = vadd.f32 %v4742, %v4917
        %v4925 = vsel %vm754, %v4924, 0.0
        %4926 = vadd.xlane.f32.xlu0 %v4925
        %v4927 = vpop.xlane.xlu0 %4926
        %v4928 = vmul.f32 %v4927, %v2552
        %v4929 = vsub.f32 %v4924, %v4928
        %v4930 = vmul.f32 %v4929, %v4929
        %v4931 = vsel %vm754, %v4930, 0.0
        %4932 = vadd.xlane.f32.xlu0 %v4931
        %v4933 = vpop.xlane.xlu0 %4932
        %v4934 = vmul.f32 %v4933, %v2552
        %v4935 = vadd.f32 %v4934, 1e-05
        %v4936 = vrsqrt.pop %v4935
        %v4937 = vmul.f32 %v4929, %v4936
        %v4939 = vlaneseq
        %v4940 = vshrl.u32 %v4939, 7
        %v4941 = vsub.s32 0, %v4940
        %v4942 = vrot.slane %v4921, %v4941
        %v4944 = vmul.f32 %v4937, %v4942
        %v4946 = vlaneseq
        %v4947 = vshrl.u32 %v4946, 7
        %v4948 = vsub.s32 0, %v4947
        %v4949 = vrot.slane %v4923, %v4948
        %v4951 = vadd.f32 %v4944, %v4949
        %4952 = vst.msk [vmem:[%s516] sm:$0xff] %vm754, %v4951
        %s4953 = sand.u32 %s362, 1
        %s4954 = scalar_lea.sflag [#allocation3], %s4953
        %s4955 = sand.u32 %s362, 1
        %s4956 = smul.addr %s4955, 8
        %s4957 = scalar_lea.vmem [#allocation2], %s4956
        %s4958 = sand.u32 %s388, 1
        %s4959 = scalar_lea.sflag [#allocation5], %s4958
        %s4960 = sand.u32 %s388, 1
        %s4961 = smul.addr %s4960, 32
        %s4962 = scalar_lea.vmem [#allocation4], %s4961
        // Predicated region
        $region81: #{_encoder_forward_impl.1} parent=79 // pred_check
          %p4963 = pneg %p372
        $region82: #{_encoder_forward_impl.1} parent=79 // pred_check_branch
          %4965 = sbr.rel (%p4963) target = $region84
        $region83: #{_encoder_forward_impl.1} parent=79 // pred_region
          %s4967 = ssub.s32 128, 128
          %4968 = vsyncadd %s4954, %s4967
          %s4969 = smul.addr %s34, 128
          %s4970 = scalar_lea.hbm %s15, %s4969
          %s4972 = sshll.u32 %s4957, 4
          %s4973 = int_to_ptr.vmem [resolvable:$true] %s4972
          %4975 = dma.vmem_to_hbm [thread:$0]  %s4973, 128, %s4970, %s4954
        $region84: #{_encoder_forward_impl.1} parent=79 // pred_fallthru
          _
        // Predicated region
        $region85: #{_encoder_forward_impl.1} parent=79 // pred_check
          %p4976 = pneg %p398
        $region86: #{_encoder_forward_impl.1} parent=79 // pred_check_branch
          %4978 = sbr.rel (%p4976) target = $region88
        $region87: #{_encoder_forward_impl.1} parent=79 // pred_region
          %s4980 = ssub.s32 512, 512
          %4981 = vsyncadd %s4959, %s4980
          %s4982 = smul.addr %s34, 4
          %s4983 = smul.addr %s4982, 128
          %s4984 = scalar_lea.hbm %s16, %s4983
          %s4985 = sshll.u32 %s4962, 4
          %s4986 = int_to_ptr.vmem [resolvable:$true] %s4985
          %4991 = dma.vmem_to_hbm [thread:$0]  %s4986, 512, %s4984, %s4959, 128, 128, 8
        $region88: #{_encoder_forward_impl.1} parent=79 // pred_fallthru
          _
      $region80: #{_encoder_forward_impl.1} parent=5 // pred_fallthru
        _
      %p4992 = scmp.le.s32.totalorder 2, %s29
      // Predicated region
      $region89: #{_encoder_forward_impl.1} parent=5 // pred_check
        %p4993 = pneg %p4992
      $region90: #{_encoder_forward_impl.1} parent=5 // pred_check_branch
        %4995 = sbr.rel (%p4993) target = $region92
      $region91: #{_encoder_forward_impl.1} parent=5 // pred_region
        %s4996 = ssub.s32 %s29, 2
        // Predicated region
        $region93: #{_encoder_forward_impl.1} parent=91 // pred_check
          %p4997 = pneg %p378
        $region94: #{_encoder_forward_impl.1} parent=91 // pred_check_branch
          %4999 = sbr.rel (%p4997) target = $region96
        $region95: #{_encoder_forward_impl.1} parent=91 // pred_region
          %s5000 = sand.u32 %s363, 1
          %s5001 = scalar_lea.sflag [#allocation3], %s5000
          %s5002 = sand.u32 %s363, 1
          %s5003 = smul.addr %s5002, 8
          %s5004 = scalar_lea.vmem [#allocation2], %s5003
          %5005 = dma.done %s5001, 128
        $region96: #{_encoder_forward_impl.1} parent=91 // pred_fallthru
          _
        // Predicated region
        $region97: #{_encoder_forward_impl.1} parent=91 // pred_check
          %p5006 = pneg %p404
        $region98: #{_encoder_forward_impl.1} parent=91 // pred_check_branch
          %5008 = sbr.rel (%p5006) target = $region100
        $region99: #{_encoder_forward_impl.1} parent=91 // pred_region
          %s5009 = sand.u32 %s389, 1
          %s5010 = scalar_lea.sflag [#allocation5], %s5009
          %s5011 = sand.u32 %s389, 1
          %s5012 = smul.addr %s5011, 32
          %s5013 = scalar_lea.vmem [#allocation4], %s5012
          %5014 = dma.done %s5010, 512
        $region100: #{_encoder_forward_impl.1} parent=91 // pred_fallthru
          _
      $region92: #{_encoder_forward_impl.1} parent=5 // pred_fallthru
        _
    $region6: #{_encoder_forward_impl.1} parent=1 // loop_footer
      %s33 = sadd.s32 1, %s29
    $region7: #{_encoder_forward_impl.1} parent=1 // loop_footer_branch
      %28 = sbr.rel target = $region3
    $region8: #{_encoder_forward_impl.1} parent=1 // loop_exit
      _
    %5015 = vsyncpa [#allocation3], 1
    %s5016 = scalar_lea.sflag [#allocation3], 1
    %5017 = vsyncpa %s5016, 1
    %5018 = vsyncpa [#allocation5], 1
    %s5019 = scalar_lea.sflag [#allocation5], 1
    %5020 = vsyncpa %s5019, 1

</llo_original>
